<compile_context>
chip_gen: v6e
topology: v6e:2x2x1
jax: 0.10.0
libtpu: 0.0.40
codegen_flags: <defaults>
</compile_context>

<pallas_src>
import functools

import jax
import jax.numpy as jnp
from jax.experimental import pallas as pl
from jax.experimental.pallas import tpu as pltpu


_PARAM_ORDER = ("wqkv", "bqkv", "wo", "bo", "ln1_g", "ln1_b",
                "w1", "b1", "w2", "b2", "ln2_g", "ln2_b")


def encoder_stack_kernel(tok_ref, x0_ref,
                         wqkv_ref, bqkv_ref, wo_ref, bo_ref,
                         ln1_g_ref, ln1_b_ref,
                         w1_ref, b1_ref, w2_ref, b2_ref,
                         ln2_g_ref, ln2_b_ref,
                         out_ref,
                         x_sc, mask_sc,
                         *, n_heads, mask_id):
    """All Post-LN encoder layers for one batch tile (grid = (batch_tile, layer))."""
    l = pl.program_id(1)
    Bt, S, D = x0_ref.shape
    H = n_heads
    dk = D // H
    eps = 1e-5

    # ---- once per batch tile: load embedded input, build (Bt,S,S) additive mask ----
    @pl.when(l == 0)
    def _init():
        x_sc[...] = x0_ref[...]
        tok = tok_ref[...]                                               # (Bt, S) int32
        pad_bias = jnp.where(tok == mask_id,
                             jnp.float32(-1e9), jnp.float32(0.0))        # (Bt, S)
        q_idx = jax.lax.broadcasted_iota(jnp.int32, (S, S), 0)
        k_idx = jax.lax.broadcasted_iota(jnp.int32, (S, S), 1)
        causal_bias = jnp.where(k_idx > q_idx,
                                jnp.float32(-1e9), jnp.float32(0.0))     # (S, S)
        mask_sc[...] = jnp.minimum(pad_bias[:, None, :], causal_bias[None, :, :])

    x = x_sc[...]                                                        # (Bt, S, D) f32
    addmask = mask_sc[...]                                               # (Bt, S, S) f32
    x2d = x.reshape(Bt * S, D)

    # ---- fused QKV projection: one (Bt*S, D) @ (D, 3D) bf16 GEMM, f32 accumulate ----
    qkv = jnp.dot(x2d.astype(jnp.bfloat16), wqkv_ref[...],
                  preferred_element_type=jnp.float32) + bqkv_ref[...]    # (Bt*S, 3D) f32
    # 1/sqrt(dk) already folded into the Q columns / bias on the host.
    q = qkv[:, 0:D].reshape(Bt, S, D).astype(jnp.bfloat16)
    k = qkv[:, D:2 * D].reshape(Bt, S, D).astype(jnp.bfloat16)
    v = qkv[:, 2 * D:3 * D].reshape(Bt, S, D).astype(jnp.bfloat16)

    # ---- attention: static loop over heads; only one head's (Bt,S,S) scores live ----
    ctx_heads = []
    for h in range(H):
        lo, hi = h * dk, (h + 1) * dk
        s_h = jnp.einsum('bqd,bkd->bqk', q[:, :, lo:hi], k[:, :, lo:hi],
                         preferred_element_type=jnp.float32) + addmask   # (Bt, S, S)
        s_h = s_h - jnp.max(s_h, axis=-1, keepdims=True)
        p_h = jnp.exp(s_h)
        p_h = p_h * pl.reciprocal(jnp.sum(p_h, axis=-1, keepdims=True), approx=True)
        ctx_h = jnp.einsum('bqk,bkd->bqd', p_h.astype(jnp.bfloat16), v[:, :, lo:hi],
                           preferred_element_type=jnp.float32)           # (Bt, S, dk)
        ctx_heads.append(ctx_h)
    ctx = jnp.concatenate(ctx_heads, axis=-1)                            # (Bt, S, D) f32

    # ---- output projection: head-sum folded into a single (Bt*S,D)@(D,D) GEMM ----
    attn = jnp.dot(ctx.reshape(Bt * S, D).astype(jnp.bfloat16), wo_ref[...],
                   preferred_element_type=jnp.float32) + bo_ref[...]     # (Bt*S, D)

    # ---- residual + LayerNorm 1 (Post-LN), f32 ----
    h1 = x2d + attn
    mu1 = jnp.mean(h1, axis=-1, keepdims=True)
    var1 = jnp.mean(jnp.square(h1 - mu1), axis=-1, keepdims=True)
    h1n = (h1 - mu1) * jax.lax.rsqrt(var1 + eps) * ln1_g_ref[...] + ln1_b_ref[...]

    # ---- position-wise FFN: shared 2-D weights, bf16 MXU, f32 accumulate ----
    f = jnp.dot(h1n.astype(jnp.bfloat16), w1_ref[...],
                preferred_element_type=jnp.float32) + b1_ref[...]        # (Bt*S, d_fc)
    f = jnp.maximum(f, 0.0)
    f = jnp.dot(f.astype(jnp.bfloat16), w2_ref[...],
                preferred_element_type=jnp.float32) + b2_ref[...]        # (Bt*S, D)

    # ---- residual + LayerNorm 2 (Post-LN), f32 ----
    h2 = h1n + f
    mu2 = jnp.mean(h2, axis=-1, keepdims=True)
    var2 = jnp.mean(jnp.square(h2 - mu2), axis=-1, keepdims=True)
    x_new = (h2 - mu2) * jax.lax.rsqrt(var2 + eps) * ln2_g_ref[...] + ln2_b_ref[...]

    x_new3 = x_new.reshape(Bt, S, D)
    x_sc[...] = x_new3

    # ---- the caller only consumes enc_output[:, -1, :]: emit a lane-dense (Bt, D) ----
    @pl.when(l == pl.num_programs(1) - 1)
    def _finalize():
        out_ref[...] = x_new3[:, S - 1, :]


def encoder_stack(enc_input, x0, stacked, *, n_heads, mask_id, batch_tile=None):
    """Run the fused encoder stack; returns last-position features (B, D)."""
    B, S, D = x0.shape
    L = stacked["wqkv"].shape[0]
    if batch_tile is None:
        batch_tile = B
    assert B % batch_tile == 0
    n_bt = B // batch_tile

    def per_layer(arr):
        nd = arr.ndim
        return pl.BlockSpec((None,) + arr.shape[1:],
                            lambda b, l, _nd=nd: (l,) + (0,) * (_nd - 1))

    weights = [stacked[n] for n in _PARAM_ORDER]
    in_specs = ([pl.BlockSpec((batch_tile, S), lambda b, l: (b, 0)),        # token ids
                 pl.BlockSpec((batch_tile, S, D), lambda b, l: (b, 0, 0))]  # embedded in
                + [per_layer(a) for a in weights])

    kernel = functools.partial(encoder_stack_kernel, n_heads=n_heads, mask_id=mask_id)
    out = pl.pallas_call(
        kernel,
        out_shape=jax.ShapeDtypeStruct((B, D), jnp.float32),
        grid=(n_bt, L),                                   # batch tiles outer (parallel),
        in_specs=in_specs,                                # layers inner (sequential)
        out_specs=pl.BlockSpec((batch_tile, D), lambda b, l: (b, 0)),
        scratch_shapes=[pltpu.VMEM((batch_tile, S, D), jnp.float32),   # resident acts
                        pltpu.VMEM((batch_tile, S, S), jnp.float32)],  # additive mask
        compiler_params=pltpu.CompilerParams(
            dimension_semantics=("parallel", "arbitrary"),
            vmem_limit_bytes=64 * 1024 * 1024,            # above v5e's 16 MiB default
        ),
    )(enc_input, x0, *weights)
    return out


def encoder_forward(enc_input, emb_table, pos_table, stacked, *, n_heads, mask_id,
                    batch_tile=None):
    """Encoder.forward (eval mode). enc_input: [B, S] int32 token ids -> [B, D]."""
    B, S = enc_input.shape
    d = emb_table.shape[1]
    # seq_embed(enc_input) * sqrt(d)  (padding row already zeroed) + position encoding;
    # embed_dropout is identity in eval mode.
    x0 = emb_table[enc_input] * (d ** 0.5) + pos_table[:S][None, :, :]
    return encoder_stack(enc_input.astype(jnp.int32), x0.astype(jnp.float32),
                         stacked, n_heads=n_heads, mask_id=mask_id,
                         batch_tile=batch_tile)


def init_layer_params(key, d, d_fc):
    ks = jax.random.split(key, 6)
    scale_d = 1.0 / (d ** 0.5)
    scale_fc = 1.0 / (d_fc ** 0.5)
    return {
        "wq": jax.random.normal(ks[0], (d, d), jnp.float32) * scale_d,
        "bq": jnp.zeros((1, d), jnp.float32),
        "wk": jax.random.normal(ks[1], (d, d), jnp.float32) * scale_d,
        "bk": jnp.zeros((1, d), jnp.float32),
        "wv": jax.random.normal(ks[2], (d, d), jnp.float32) * scale_d,
        "bv": jnp.zeros((1, d), jnp.float32),
        "wo": jax.random.normal(ks[3], (d, d), jnp.float32) * scale_d,
        "bo": jnp.zeros((1, d), jnp.float32),
        "ln1_g": jnp.ones((1, d), jnp.float32),
        "ln1_b": jnp.zeros((1, d), jnp.float32),
        "w1": jax.random.normal(ks[4], (d, d_fc), jnp.float32) * scale_d,
        "b1": jnp.zeros((1, d_fc), jnp.float32),
        "w2": jax.random.normal(ks[5], (d_fc, d), jnp.float32) * scale_fc,
        "b2": jnp.zeros((1, d), jnp.float32),
        "ln2_g": jnp.ones((1, d), jnp.float32),
        "ln2_b": jnp.zeros((1, d), jnp.float32),
    }


def stack_layer_params(layer_params, n_heads):
    """Stack per-layer params on a leading L axis.

    Host-side, once: fuse Wq/Wk/Wv into a (d, 3d) projection, fold 1/sqrt(dk) into the
    Q columns/bias, and cast matmul weights to bf16 (biases / LN params stay f32).
    Head h uses Q/K/V output columns h*dk:(h+1)*dk; Wo rows are in the same head-concat
    order, so it stays un-split.
    """
    d = layer_params[0]["wq"].shape[0]
    dk = d // n_heads
    scale = 1.0 / (dk ** 0.5)

    def stack(name):
        return jnp.stack([p[name] for p in layer_params], axis=0)

    wqkv = jnp.concatenate([stack("wq") * scale, stack("wk"), stack("wv")], axis=-1)
    bqkv = jnp.concatenate([stack("bq") * scale, stack("bk"), stack("bv")], axis=-1)

    return {
        "wqkv": wqkv.astype(jnp.bfloat16),           # (L, d, 3d)
        "bqkv": bqkv,                                # (L, 1, 3d) f32
        "wo": stack("wo").astype(jnp.bfloat16),      # (L, d, d)
        "bo": stack("bo"),
        "ln1_g": stack("ln1_g"), "ln1_b": stack("ln1_b"),
        "w1": stack("w1").astype(jnp.bfloat16), "b1": stack("b1"),
        "w2": stack("w2").astype(jnp.bfloat16), "b2": stack("b2"),
        "ln2_g": stack("ln2_g"), "ln2_b": stack("ln2_b"),
    }


if __name__ == "__main__":
    key = jax.random.PRNGKey(0)

    # Small shapes consistent with the module; batch sized so the parallel batch-tile
    # grid axis (2 tiles of 8) is actually exercised.
    B, S = 16, 8
    d, d_fc, n_heads, n_layers = 32, 64, 4, 2
    input_types, posenc_buffer_size = 16, 16
    mask_item = [0]

    k_emb, k_pos, k_tok, k_layers = jax.random.split(key, 4)

    # seq_embed: Embedding(input_types, d, padding_idx=mask_item[0]) -> zero padding row
    emb_table = jax.random.normal(k_emb, (input_types, d), jnp.float32) * 0.02
    emb_table = emb_table.at[mask_item[0]].set(0.0)

    # LearnablePositionEncoding(d, posenc_buffer_size)
    pos_table = jax.random.normal(k_pos, (posenc_buffer_size, d), jnp.float32) * 0.02

    layer_params = [init_layer_params(k, d, d_fc)
                    for k in jax.random.split(k_layers, n_layers)]
    stacked = stack_layer_params(layer_params, n_heads)

    # Token ids; 0 is the padding/mask id and may appear (exercises the pad mask).
    enc_input = jax.random.randint(k_tok, (B, S), 0, input_types, dtype=jnp.int32)

    fwd = jax.jit(functools.partial(encoder_forward,
                                    n_heads=n_heads, mask_id=mask_item[0],
                                    batch_tile=8))
    out = jax.block_until_ready(fwd(enc_input, emb_table, pos_table, stacked))
    assert out.shape == (B, d) and out.dtype == jnp.float32
    print("KERNEL_OK")
</pallas_src>

<mosaic_0001>
module attributes {stable_mosaic.version = 11 : i64} {
  func.func @encoder_stack_kernel(%arg0: i32, %arg1: i32, %arg2: memref<8x8xi32, #tpu.memory_space<vmem>>, %arg3: memref<8x8x32xf32, #tpu.memory_space<vmem>>, %arg4: memref<1x32x96xbf16, #tpu.memory_space<vmem>>, %arg5: memref<1x1x96xf32, #tpu.memory_space<vmem>>, %arg6: memref<1x32x32xbf16, #tpu.memory_space<vmem>>, %arg7: memref<1x1x32xf32, #tpu.memory_space<vmem>>, %arg8: memref<1x1x32xf32, #tpu.memory_space<vmem>>, %arg9: memref<1x1x32xf32, #tpu.memory_space<vmem>>, %arg10: memref<1x32x64xbf16, #tpu.memory_space<vmem>>, %arg11: memref<1x1x64xf32, #tpu.memory_space<vmem>>, %arg12: memref<1x64x32xbf16, #tpu.memory_space<vmem>>, %arg13: memref<1x1x32xf32, #tpu.memory_space<vmem>>, %arg14: memref<1x1x32xf32, #tpu.memory_space<vmem>>, %arg15: memref<1x1x32xf32, #tpu.memory_space<vmem>>, %arg16: memref<8x32xf32, #tpu.memory_space<vmem>>, %arg17: memref<8x8x32xf32, #tpu.memory_space<vmem>>, %arg18: memref<8x8x8xf32, #tpu.memory_space<vmem>>) attributes {dimension_semantics = [#tpu.dimension_semantics<parallel>, #tpu.dimension_semantics<arbitrary>], iteration_bounds = array<i64: 2, 2>, scalar_prefetch = 0 : i64, scratch_operands = 2 : i64, tpu.core_type = #tpu.core_type<tc>, window_params = [{transform_indices = @transform_0, window_bounds = array<i64: 8, 8>}, {transform_indices = @transform_1, window_bounds = array<i64: 8, 8, 32>}, {transform_indices = @transform_2, window_bounds = array<i64: 1, 32, 96>}, {transform_indices = @transform_3, window_bounds = array<i64: 1, 1, 96>}, {transform_indices = @transform_4, window_bounds = array<i64: 1, 32, 32>}, {transform_indices = @transform_5, window_bounds = array<i64: 1, 1, 32>}, {transform_indices = @transform_6, window_bounds = array<i64: 1, 1, 32>}, {transform_indices = @transform_7, window_bounds = array<i64: 1, 1, 32>}, {transform_indices = @transform_8, window_bounds = array<i64: 1, 32, 64>}, {transform_indices = @transform_9, window_bounds = array<i64: 1, 1, 64>}, {transform_indices = @transform_10, window_bounds = array<i64: 1, 64, 32>}, {transform_indices = @transform_11, window_bounds = array<i64: 1, 1, 32>}, {transform_indices = @transform_12, window_bounds = array<i64: 1, 1, 32>}, {transform_indices = @transform_13, window_bounds = array<i64: 1, 1, 32>}, {transform_indices = @transform_14, window_bounds = array<i64: 8, 32>}]} {
    %c0_i32 = arith.constant 0 : i32
    %0 = arith.cmpi eq, %arg1, %c0_i32 : i32
    %1 = arith.extui %0 : i1 to i32
    %c0_i32_0 = arith.constant 0 : i32
    %2 = arith.cmpi ne, %1, %c0_i32_0 : i32
    scf.if %2 {
      %c0_76 = arith.constant 0 : index
      %c0_77 = arith.constant 0 : index
      %c0_78 = arith.constant 0 : index
      %178 = vector.load %arg3[%c0_76, %c0_77, %c0_78] : memref<8x8x32xf32, #tpu.memory_space<vmem>>, vector<8x8x32xf32>
      %c0_79 = arith.constant 0 : index
      %c0_80 = arith.constant 0 : index
      %c0_81 = arith.constant 0 : index
      %179 = vector.load %arg17[%c0_79, %c0_80, %c0_81] : memref<8x8x32xf32, #tpu.memory_space<vmem>>, vector<8x8x32xf32>
      tpu.vector_store %arg17[%c0_79, %c0_80, %c0_81], %178 {strides = array<i32>} : memref<8x8x32xf32, #tpu.memory_space<vmem>>, vector<8x8x32xf32>,
      %c0_82 = arith.constant 0 : index
      %c0_83 = arith.constant 0 : index
      %180 = vector.load %arg2[%c0_82, %c0_83] : memref<8x8xi32, #tpu.memory_space<vmem>>, vector<8x8xi32>
      %c0_i32_84 = arith.constant 0 : i32
      %181 = vector.broadcast %c0_i32_84 : i32 to vector<8x8xi32>
      %182 = arith.cmpi eq, %180, %181 : vector<8x8xi32>
      %cst_85 = arith.constant -1.000000e+09 : f32
      %cst_86 = arith.constant 0.000000e+00 : f32
      %183 = vector.broadcast %cst_85 : f32 to vector<8x8xf32>
      %184 = vector.broadcast %cst_86 : f32 to vector<8x8xf32>
      %185 = arith.select %182, %183, %184 : vector<8x8xi1>, vector<8x8xf32>
      %186 = tpu.iota {dimensions = array<i32: 0>} : vector<8x8xi32>
      %187 = tpu.iota {dimensions = array<i32: 1>} : vector<8x8xi32>
      %188 = arith.cmpi sgt, %187, %186 : vector<8x8xi32>
      %cst_87 = arith.constant -1.000000e+09 : f32
      %cst_88 = arith.constant 0.000000e+00 : f32
      %189 = vector.broadcast %cst_87 : f32 to vector<8x8xf32>
      %190 = vector.broadcast %cst_88 : f32 to vector<8x8xf32>
      %191 = arith.select %188, %189, %190 : vector<8x8xi1>, vector<8x8xf32>
      %192 = vector.shape_cast %185 : vector<8x8xf32> to vector<8x1x8xf32>
      %193 = vector.shape_cast %191 : vector<8x8xf32> to vector<1x8x8xf32>
      %194 = vector.broadcast %192 : vector<8x1x8xf32> to vector<8x8x8xf32>
      %195 = vector.broadcast %193 : vector<1x8x8xf32> to vector<8x8x8xf32>
      %196 = arith.minimumf %194, %195 : vector<8x8x8xf32>
      %c0_89 = arith.constant 0 : index
      %c0_90 = arith.constant 0 : index
      %c0_91 = arith.constant 0 : index
      %197 = vector.load %arg18[%c0_89, %c0_90, %c0_91] : memref<8x8x8xf32, #tpu.memory_space<vmem>>, vector<8x8x8xf32>
      tpu.vector_store %arg18[%c0_89, %c0_90, %c0_91], %196 {strides = array<i32>} : memref<8x8x8xf32, #tpu.memory_space<vmem>>, vector<8x8x8xf32>,
    } else {
    }
    %c0 = arith.constant 0 : index
    %c0_1 = arith.constant 0 : index
    %c0_2 = arith.constant 0 : index
    %3 = vector.load %arg17[%c0, %c0_1, %c0_2] : memref<8x8x32xf32, #tpu.memory_space<vmem>>, vector<8x8x32xf32>
    %c0_3 = arith.constant 0 : index
    %c0_4 = arith.constant 0 : index
    %c0_5 = arith.constant 0 : index
    %4 = vector.load %arg18[%c0_3, %c0_4, %c0_5] : memref<8x8x8xf32, #tpu.memory_space<vmem>>, vector<8x8x8xf32>
    %5 = vector.shape_cast %3 : vector<8x8x32xf32> to vector<64x32xf32>
    %6 = arith.truncf %5 : vector<64x32xf32> to vector<64x32xbf16>
    %c0_6 = arith.constant 0 : index
    %c0_7 = arith.constant 0 : index
    %c0_8 = arith.constant 0 : index
    %7 = vector.load %arg4[%c0_6, %c0_7, %c0_8] : memref<1x32x96xbf16, #tpu.memory_space<vmem>>, vector<1x32x96xbf16>
    %8 = vector.shape_cast %7 : vector<1x32x96xbf16> to vector<32x96xbf16>
    %cst = arith.constant dense<0.000000e+00> : vector<64x96xf32>
    %9 = tpu.matmul %6, %8, %cst {dimension_numbers = #tpu.dot_dimension_numbers<[1], [0], [0], [1], [0, 0, 1, 1], [], []>} : vector<64x32xbf16>, vector<32x96xbf16>, vector<64x96xf32> -> vector<64x96xf32>
    %c0_9 = arith.constant 0 : index
    %c0_10 = arith.constant 0 : index
    %c0_11 = arith.constant 0 : index
    %10 = vector.load %arg5[%c0_9, %c0_10, %c0_11] : memref<1x1x96xf32, #tpu.memory_space<vmem>>, vector<1x1x96xf32>
    %11 = vector.shape_cast %10 : vector<1x1x96xf32> to vector<1x96xf32>
    %12 = vector.broadcast %11 : vector<1x96xf32> to vector<64x96xf32>
    %13 = arith.addf %9, %12 : vector<64x96xf32>
    %14 = vector.extract_strided_slice %13 {offsets = [0, 0], sizes = [64, 32], strides = [1, 1]} : vector<64x96xf32> to vector<64x32xf32>
    %15 = vector.shape_cast %14 : vector<64x32xf32> to vector<8x8x32xf32>
    %16 = arith.truncf %15 : vector<8x8x32xf32> to vector<8x8x32xbf16>
    %17 = vector.extract_strided_slice %13 {offsets = [0, 32], sizes = [64, 32], strides = [1, 1]} : vector<64x96xf32> to vector<64x32xf32>
    %18 = vector.shape_cast %17 : vector<64x32xf32> to vector<8x8x32xf32>
    %19 = arith.truncf %18 : vector<8x8x32xf32> to vector<8x8x32xbf16>
    %20 = vector.extract_strided_slice %13 {offsets = [0, 64], sizes = [64, 32], strides = [1, 1]} : vector<64x96xf32> to vector<64x32xf32>
    %21 = vector.shape_cast %20 : vector<64x32xf32> to vector<8x8x32xf32>
    %22 = arith.truncf %21 : vector<8x8x32xf32> to vector<8x8x32xbf16>
    %23 = vector.extract_strided_slice %16 {offsets = [0, 0, 0], sizes = [8, 8, 8], strides = [1, 1, 1]} : vector<8x8x32xbf16> to vector<8x8x8xbf16>
    %24 = vector.extract_strided_slice %19 {offsets = [0, 0, 0], sizes = [8, 8, 8], strides = [1, 1, 1]} : vector<8x8x32xbf16> to vector<8x8x8xbf16>
    "tpu.trace_start"() <{level = 10 : i32, message = "bqd,bkd->bqk"}> : () -> ()
    %cst_12 = arith.constant dense<0.000000e+00> : vector<8x8x8xf32>
    %25 = tpu.matmul %23, %24, %cst_12 {dimension_numbers = #tpu.dot_dimension_numbers<[2], [2], [1], [1], [0, 0, 0, 1, 1, 1], [0], [0]>} : vector<8x8x8xbf16>, vector<8x8x8xbf16>, vector<8x8x8xf32> -> vector<8x8x8xf32>
    "tpu.trace_stop"() : () -> ()
    %26 = arith.addf %25, %4 : vector<8x8x8xf32>
    %cst_13 = arith.constant dense<0xFF800000> : vector<8x8xf32>
    %27 = vector.multi_reduction <maximumf>, %26, %cst_13 [2] : vector<8x8x8xf32> to vector<8x8xf32>
    %28 = vector.shape_cast %27 : vector<8x8xf32> to vector<8x8x1xf32>
    %29 = vector.broadcast %28 : vector<8x8x1xf32> to vector<8x8x8xf32>
    %30 = arith.subf %26, %29 : vector<8x8x8xf32>
    %31 = math.exp %30 : vector<8x8x8xf32>
    %cst_14 = arith.constant dense<0.000000e+00> : vector<8x8xf32>
    %32 = vector.multi_reduction <add>, %31, %cst_14 [2] : vector<8x8x8xf32> to vector<8x8xf32>
    %33 = vector.shape_cast %32 : vector<8x8xf32> to vector<8x8x1xf32>
    %34 = tpu.reciprocal %33 {approx = true} : vector<8x8x1xf32> -> vector<8x8x1xf32>
    %35 = vector.broadcast %34 : vector<8x8x1xf32> to vector<8x8x8xf32>
    %36 = arith.mulf %31, %35 : vector<8x8x8xf32>
    %37 = arith.truncf %36 : vector<8x8x8xf32> to vector<8x8x8xbf16>
    %38 = vector.extract_strided_slice %22 {offsets = [0, 0, 0], sizes = [8, 8, 8], strides = [1, 1, 1]} : vector<8x8x32xbf16> to vector<8x8x8xbf16>
    "tpu.trace_start"() <{level = 10 : i32, message = "bqk,bkd->bqd"}> : () -> ()
    %cst_15 = arith.constant dense<0.000000e+00> : vector<8x8x8xf32>
    %39 = tpu.matmul %37, %38, %cst_15 {dimension_numbers = #tpu.dot_dimension_numbers<[2], [1], [1], [2], [0, 0, 0, 1, 1, 2], [0], [0]>} : vector<8x8x8xbf16>, vector<8x8x8xbf16>, vector<8x8x8xf32> -> vector<8x8x8xf32>
    "tpu.trace_stop"() : () -> ()
    %40 = vector.extract_strided_slice %16 {offsets = [0, 0, 8], sizes = [8, 8, 8], strides = [1, 1, 1]} : vector<8x8x32xbf16> to vector<8x8x8xbf16>
    %41 = vector.extract_strided_slice %19 {offsets = [0, 0, 8], sizes = [8, 8, 8], strides = [1, 1, 1]} : vector<8x8x32xbf16> to vector<8x8x8xbf16>
    "tpu.trace_start"() <{level = 10 : i32, message = "bqd,bkd->bqk"}> : () -> ()
    %cst_16 = arith.constant dense<0.000000e+00> : vector<8x8x8xf32>
    %42 = tpu.matmul %40, %41, %cst_16 {dimension_numbers = #tpu.dot_dimension_numbers<[2], [2], [1], [1], [0, 0, 0, 1, 1, 1], [0], [0]>} : vector<8x8x8xbf16>, vector<8x8x8xbf16>, vector<8x8x8xf32> -> vector<8x8x8xf32>
    "tpu.trace_stop"() : () -> ()
    %43 = arith.addf %42, %4 : vector<8x8x8xf32>
    %cst_17 = arith.constant dense<0xFF800000> : vector<8x8xf32>
    %44 = vector.multi_reduction <maximumf>, %43, %cst_17 [2] : vector<8x8x8xf32> to vector<8x8xf32>
    %45 = vector.shape_cast %44 : vector<8x8xf32> to vector<8x8x1xf32>
    %46 = vector.broadcast %45 : vector<8x8x1xf32> to vector<8x8x8xf32>
    %47 = arith.subf %43, %46 : vector<8x8x8xf32>
    %48 = math.exp %47 : vector<8x8x8xf32>
    %cst_18 = arith.constant dense<0.000000e+00> : vector<8x8xf32>
    %49 = vector.multi_reduction <add>, %48, %cst_18 [2] : vector<8x8x8xf32> to vector<8x8xf32>
    %50 = vector.shape_cast %49 : vector<8x8xf32> to vector<8x8x1xf32>
    %51 = tpu.reciprocal %50 {approx = true} : vector<8x8x1xf32> -> vector<8x8x1xf32>
    %52 = vector.broadcast %51 : vector<8x8x1xf32> to vector<8x8x8xf32>
    %53 = arith.mulf %48, %52 : vector<8x8x8xf32>
    %54 = arith.truncf %53 : vector<8x8x8xf32> to vector<8x8x8xbf16>
    %55 = vector.extract_strided_slice %22 {offsets = [0, 0, 8], sizes = [8, 8, 8], strides = [1, 1, 1]} : vector<8x8x32xbf16> to vector<8x8x8xbf16>
    "tpu.trace_start"() <{level = 10 : i32, message = "bqk,bkd->bqd"}> : () -> ()
    %cst_19 = arith.constant dense<0.000000e+00> : vector<8x8x8xf32>
    %56 = tpu.matmul %54, %55, %cst_19 {dimension_numbers = #tpu.dot_dimension_numbers<[2], [1], [1], [2], [0, 0, 0, 1, 1, 2], [0], [0]>} : vector<8x8x8xbf16>, vector<8x8x8xbf16>, vector<8x8x8xf32> -> vector<8x8x8xf32>
    "tpu.trace_stop"() : () -> ()
    %57 = vector.extract_strided_slice %16 {offsets = [0, 0, 16], sizes = [8, 8, 8], strides = [1, 1, 1]} : vector<8x8x32xbf16> to vector<8x8x8xbf16>
    %58 = vector.extract_strided_slice %19 {offsets = [0, 0, 16], sizes = [8, 8, 8], strides = [1, 1, 1]} : vector<8x8x32xbf16> to vector<8x8x8xbf16>
    "tpu.trace_start"() <{level = 10 : i32, message = "bqd,bkd->bqk"}> : () -> ()
    %cst_20 = arith.constant dense<0.000000e+00> : vector<8x8x8xf32>
    %59 = tpu.matmul %57, %58, %cst_20 {dimension_numbers = #tpu.dot_dimension_numbers<[2], [2], [1], [1], [0, 0, 0, 1, 1, 1], [0], [0]>} : vector<8x8x8xbf16>, vector<8x8x8xbf16>, vector<8x8x8xf32> -> vector<8x8x8xf32>
    "tpu.trace_stop"() : () -> ()
    %60 = arith.addf %59, %4 : vector<8x8x8xf32>
    %cst_21 = arith.constant dense<0xFF800000> : vector<8x8xf32>
    %61 = vector.multi_reduction <maximumf>, %60, %cst_21 [2] : vector<8x8x8xf32> to vector<8x8xf32>
    %62 = vector.shape_cast %61 : vector<8x8xf32> to vector<8x8x1xf32>
    %63 = vector.broadcast %62 : vector<8x8x1xf32> to vector<8x8x8xf32>
    %64 = arith.subf %60, %63 : vector<8x8x8xf32>
    %65 = math.exp %64 : vector<8x8x8xf32>
    %cst_22 = arith.constant dense<0.000000e+00> : vector<8x8xf32>
    %66 = vector.multi_reduction <add>, %65, %cst_22 [2] : vector<8x8x8xf32> to vector<8x8xf32>
    %67 = vector.shape_cast %66 : vector<8x8xf32> to vector<8x8x1xf32>
    %68 = tpu.reciprocal %67 {approx = true} : vector<8x8x1xf32> -> vector<8x8x1xf32>
    %69 = vector.broadcast %68 : vector<8x8x1xf32> to vector<8x8x8xf32>
    %70 = arith.mulf %65, %69 : vector<8x8x8xf32>
    %71 = arith.truncf %70 : vector<8x8x8xf32> to vector<8x8x8xbf16>
    %72 = vector.extract_strided_slice %22 {offsets = [0, 0, 16], sizes = [8, 8, 8], strides = [1, 1, 1]} : vector<8x8x32xbf16> to vector<8x8x8xbf16>
    "tpu.trace_start"() <{level = 10 : i32, message = "bqk,bkd->bqd"}> : () -> ()
    %cst_23 = arith.constant dense<0.000000e+00> : vector<8x8x8xf32>
    %73 = tpu.matmul %71, %72, %cst_23 {dimension_numbers = #tpu.dot_dimension_numbers<[2], [1], [1], [2], [0, 0, 0, 1, 1, 2], [0], [0]>} : vector<8x8x8xbf16>, vector<8x8x8xbf16>, vector<8x8x8xf32> -> vector<8x8x8xf32>
    "tpu.trace_stop"() : () -> ()
    %74 = vector.extract_strided_slice %16 {offsets = [0, 0, 24], sizes = [8, 8, 8], strides = [1, 1, 1]} : vector<8x8x32xbf16> to vector<8x8x8xbf16>
    %75 = vector.extract_strided_slice %19 {offsets = [0, 0, 24], sizes = [8, 8, 8], strides = [1, 1, 1]} : vector<8x8x32xbf16> to vector<8x8x8xbf16>
    "tpu.trace_start"() <{level = 10 : i32, message = "bqd,bkd->bqk"}> : () -> ()
    %cst_24 = arith.constant dense<0.000000e+00> : vector<8x8x8xf32>
    %76 = tpu.matmul %74, %75, %cst_24 {dimension_numbers = #tpu.dot_dimension_numbers<[2], [2], [1], [1], [0, 0, 0, 1, 1, 1], [0], [0]>} : vector<8x8x8xbf16>, vector<8x8x8xbf16>, vector<8x8x8xf32> -> vector<8x8x8xf32>
    "tpu.trace_stop"() : () -> ()
    %77 = arith.addf %76, %4 : vector<8x8x8xf32>
    %cst_25 = arith.constant dense<0xFF800000> : vector<8x8xf32>
    %78 = vector.multi_reduction <maximumf>, %77, %cst_25 [2] : vector<8x8x8xf32> to vector<8x8xf32>
    %79 = vector.shape_cast %78 : vector<8x8xf32> to vector<8x8x1xf32>
    %80 = vector.broadcast %79 : vector<8x8x1xf32> to vector<8x8x8xf32>
    %81 = arith.subf %77, %80 : vector<8x8x8xf32>
    %82 = math.exp %81 : vector<8x8x8xf32>
    %cst_26 = arith.constant dense<0.000000e+00> : vector<8x8xf32>
    %83 = vector.multi_reduction <add>, %82, %cst_26 [2] : vector<8x8x8xf32> to vector<8x8xf32>
    %84 = vector.shape_cast %83 : vector<8x8xf32> to vector<8x8x1xf32>
    %85 = tpu.reciprocal %84 {approx = true} : vector<8x8x1xf32> -> vector<8x8x1xf32>
    %86 = vector.broadcast %85 : vector<8x8x1xf32> to vector<8x8x8xf32>
    %87 = arith.mulf %82, %86 : vector<8x8x8xf32>
    %88 = arith.truncf %87 : vector<8x8x8xf32> to vector<8x8x8xbf16>
    %89 = vector.extract_strided_slice %22 {offsets = [0, 0, 24], sizes = [8, 8, 8], strides = [1, 1, 1]} : vector<8x8x32xbf16> to vector<8x8x8xbf16>
    "tpu.trace_start"() <{level = 10 : i32, message = "bqk,bkd->bqd"}> : () -> ()
    %cst_27 = arith.constant dense<0.000000e+00> : vector<8x8x8xf32>
    %90 = tpu.matmul %88, %89, %cst_27 {dimension_numbers = #tpu.dot_dimension_numbers<[2], [1], [1], [2], [0, 0, 0, 1, 1, 2], [0], [0]>} : vector<8x8x8xbf16>, vector<8x8x8xbf16>, vector<8x8x8xf32> -> vector<8x8x8xf32>
    "tpu.trace_stop"() : () -> ()
    %91 = tpu.concatenate %39, %56, %73, %90 in 2 : vector<8x8x8xf32>, vector<8x8x8xf32>, vector<8x8x8xf32>, vector<8x8x8xf32> -> vector<8x8x32xf32>
    %92 = vector.shape_cast %91 : vector<8x8x32xf32> to vector<64x32xf32>
    %93 = arith.truncf %92 : vector<64x32xf32> to vector<64x32xbf16>
    %c0_28 = arith.constant 0 : index
    %c0_29 = arith.constant 0 : index
    %c0_30 = arith.constant 0 : index
    %94 = vector.load %arg6[%c0_28, %c0_29, %c0_30] : memref<1x32x32xbf16, #tpu.memory_space<vmem>>, vector<1x32x32xbf16>
    %95 = vector.shape_cast %94 : vector<1x32x32xbf16> to vector<32x32xbf16>
    %cst_31 = arith.constant dense<0.000000e+00> : vector<64x32xf32>
    %96 = tpu.matmul %93, %95, %cst_31 {dimension_numbers = #tpu.dot_dimension_numbers<[1], [0], [0], [1], [0, 0, 1, 1], [], []>} : vector<64x32xbf16>, vector<32x32xbf16>, vector<64x32xf32> -> vector<64x32xf32>
    %c0_32 = arith.constant 0 : index
    %c0_33 = arith.constant 0 : index
    %c0_34 = arith.constant 0 : index
    %97 = vector.load %arg7[%c0_32, %c0_33, %c0_34] : memref<1x1x32xf32, #tpu.memory_space<vmem>>, vector<1x1x32xf32>
    %98 = vector.shape_cast %97 : vector<1x1x32xf32> to vector<1x32xf32>
    %99 = vector.broadcast %98 : vector<1x32xf32> to vector<64x32xf32>
    %100 = arith.addf %96, %99 : vector<64x32xf32>
    %101 = arith.addf %5, %100 : vector<64x32xf32>
    %cst_35 = arith.constant dense<0.000000e+00> : vector<64xf32>
    %102 = vector.multi_reduction <add>, %101, %cst_35 [1] : vector<64x32xf32> to vector<64xf32>
    %103 = vector.shape_cast %102 : vector<64xf32> to vector<64x1xf32>
    %cst_36 = arith.constant 3.200000e+01 : f32
    %104 = vector.broadcast %cst_36 : f32 to vector<64x1xf32>
    %105 = arith.divf %103, %104 : vector<64x1xf32>
    %106 = vector.broadcast %105 : vector<64x1xf32> to vector<64x32xf32>
    %107 = arith.subf %101, %106 : vector<64x32xf32>
    %108 = arith.mulf %107, %107 : vector<64x32xf32>
    %cst_37 = arith.constant dense<0.000000e+00> : vector<64xf32>
    %109 = vector.multi_reduction <add>, %108, %cst_37 [1] : vector<64x32xf32> to vector<64xf32>
    %110 = vector.shape_cast %109 : vector<64xf32> to vector<64x1xf32>
    %cst_38 = arith.constant 3.200000e+01 : f32
    %111 = vector.broadcast %cst_38 : f32 to vector<64x1xf32>
    %112 = arith.divf %110, %111 : vector<64x1xf32>
    %113 = vector.broadcast %105 : vector<64x1xf32> to vector<64x32xf32>
    %114 = arith.subf %101, %113 : vector<64x32xf32>
    %cst_39 = arith.constant 9.99999974E-6 : f32
    %115 = vector.broadcast %cst_39 : f32 to vector<64x1xf32>
    %116 = arith.addf %112, %115 : vector<64x1xf32>
    %117 = math.rsqrt %116 : vector<64x1xf32>
    %118 = vector.broadcast %117 : vector<64x1xf32> to vector<64x32xf32>
    %119 = arith.mulf %114, %118 : vector<64x32xf32>
    %c0_40 = arith.constant 0 : index
    %c0_41 = arith.constant 0 : index
    %c0_42 = arith.constant 0 : index
    %120 = vector.load %arg8[%c0_40, %c0_41, %c0_42] : memref<1x1x32xf32, #tpu.memory_space<vmem>>, vector<1x1x32xf32>
    %121 = vector.shape_cast %120 : vector<1x1x32xf32> to vector<1x32xf32>
    %122 = vector.broadcast %121 : vector<1x32xf32> to vector<64x32xf32>
    %123 = arith.mulf %119, %122 : vector<64x32xf32>
    %c0_43 = arith.constant 0 : index
    %c0_44 = arith.constant 0 : index
    %c0_45 = arith.constant 0 : index
    %124 = vector.load %arg9[%c0_43, %c0_44, %c0_45] : memref<1x1x32xf32, #tpu.memory_space<vmem>>, vector<1x1x32xf32>
    %125 = vector.shape_cast %124 : vector<1x1x32xf32> to vector<1x32xf32>
    %126 = vector.broadcast %125 : vector<1x32xf32> to vector<64x32xf32>
    %127 = arith.addf %123, %126 : vector<64x32xf32>
    %128 = arith.truncf %127 : vector<64x32xf32> to vector<64x32xbf16>
    %c0_46 = arith.constant 0 : index
    %c0_47 = arith.constant 0 : index
    %c0_48 = arith.constant 0 : index
    %129 = vector.load %arg10[%c0_46, %c0_47, %c0_48] : memref<1x32x64xbf16, #tpu.memory_space<vmem>>, vector<1x32x64xbf16>
    %130 = vector.shape_cast %129 : vector<1x32x64xbf16> to vector<32x64xbf16>
    %cst_49 = arith.constant dense<0.000000e+00> : vector<64x64xf32>
    %131 = tpu.matmul %128, %130, %cst_49 {dimension_numbers = #tpu.dot_dimension_numbers<[1], [0], [0], [1], [0, 0, 1, 1], [], []>} : vector<64x32xbf16>, vector<32x64xbf16>, vector<64x64xf32> -> vector<64x64xf32>
    %c0_50 = arith.constant 0 : index
    %c0_51 = arith.constant 0 : index
    %c0_52 = arith.constant 0 : index
    %132 = vector.load %arg11[%c0_50, %c0_51, %c0_52] : memref<1x1x64xf32, #tpu.memory_space<vmem>>, vector<1x1x64xf32>
    %133 = vector.shape_cast %132 : vector<1x1x64xf32> to vector<1x64xf32>
    %134 = vector.broadcast %133 : vector<1x64xf32> to vector<64x64xf32>
    %135 = arith.addf %131, %134 : vector<64x64xf32>
    %cst_53 = arith.constant 0.000000e+00 : f32
    %136 = vector.broadcast %cst_53 : f32 to vector<64x64xf32>
    %137 = arith.maximumf %135, %136 : vector<64x64xf32>
    %138 = arith.truncf %137 : vector<64x64xf32> to vector<64x64xbf16>
    %c0_54 = arith.constant 0 : index
    %c0_55 = arith.constant 0 : index
    %c0_56 = arith.constant 0 : index
    %139 = vector.load %arg12[%c0_54, %c0_55, %c0_56] : memref<1x64x32xbf16, #tpu.memory_space<vmem>>, vector<1x64x32xbf16>
    %140 = vector.shape_cast %139 : vector<1x64x32xbf16> to vector<64x32xbf16>
    %cst_57 = arith.constant dense<0.000000e+00> : vector<64x32xf32>
    %141 = tpu.matmul %138, %140, %cst_57 {dimension_numbers = #tpu.dot_dimension_numbers<[1], [0], [0], [1], [0, 0, 1, 1], [], []>} : vector<64x64xbf16>, vector<64x32xbf16>, vector<64x32xf32> -> vector<64x32xf32>
    %c0_58 = arith.constant 0 : index
    %c0_59 = arith.constant 0 : index
    %c0_60 = arith.constant 0 : index
    %142 = vector.load %arg13[%c0_58, %c0_59, %c0_60] : memref<1x1x32xf32, #tpu.memory_space<vmem>>, vector<1x1x32xf32>
    %143 = vector.shape_cast %142 : vector<1x1x32xf32> to vector<1x32xf32>
    %144 = vector.broadcast %143 : vector<1x32xf32> to vector<64x32xf32>
    %145 = arith.addf %141, %144 : vector<64x32xf32>
    %146 = arith.addf %127, %145 : vector<64x32xf32>
    %cst_61 = arith.constant dense<0.000000e+00> : vector<64xf32>
    %147 = vector.multi_reduction <add>, %146, %cst_61 [1] : vector<64x32xf32> to vector<64xf32>
    %148 = vector.shape_cast %147 : vector<64xf32> to vector<64x1xf32>
    %cst_62 = arith.constant 3.200000e+01 : f32
    %149 = vector.broadcast %cst_62 : f32 to vector<64x1xf32>
    %150 = arith.divf %148, %149 : vector<64x1xf32>
    %151 = vector.broadcast %150 : vector<64x1xf32> to vector<64x32xf32>
    %152 = arith.subf %146, %151 : vector<64x32xf32>
    %153 = arith.mulf %152, %152 : vector<64x32xf32>
    %cst_63 = arith.constant dense<0.000000e+00> : vector<64xf32>
    %154 = vector.multi_reduction <add>, %153, %cst_63 [1] : vector<64x32xf32> to vector<64xf32>
    %155 = vector.shape_cast %154 : vector<64xf32> to vector<64x1xf32>
    %cst_64 = arith.constant 3.200000e+01 : f32
    %156 = vector.broadcast %cst_64 : f32 to vector<64x1xf32>
    %157 = arith.divf %155, %156 : vector<64x1xf32>
    %158 = vector.broadcast %150 : vector<64x1xf32> to vector<64x32xf32>
    %159 = arith.subf %146, %158 : vector<64x32xf32>
    %cst_65 = arith.constant 9.99999974E-6 : f32
    %160 = vector.broadcast %cst_65 : f32 to vector<64x1xf32>
    %161 = arith.addf %157, %160 : vector<64x1xf32>
    %162 = math.rsqrt %161 : vector<64x1xf32>
    %163 = vector.broadcast %162 : vector<64x1xf32> to vector<64x32xf32>
    %164 = arith.mulf %159, %163 : vector<64x32xf32>
    %c0_66 = arith.constant 0 : index
    %c0_67 = arith.constant 0 : index
    %c0_68 = arith.constant 0 : index
    %165 = vector.load %arg14[%c0_66, %c0_67, %c0_68] : memref<1x1x32xf32, #tpu.memory_space<vmem>>, vector<1x1x32xf32>
    %166 = vector.shape_cast %165 : vector<1x1x32xf32> to vector<1x32xf32>
    %167 = vector.broadcast %166 : vector<1x32xf32> to vector<64x32xf32>
    %168 = arith.mulf %164, %167 : vector<64x32xf32>
    %c0_69 = arith.constant 0 : index
    %c0_70 = arith.constant 0 : index
    %c0_71 = arith.constant 0 : index
    %169 = vector.load %arg15[%c0_69, %c0_70, %c0_71] : memref<1x1x32xf32, #tpu.memory_space<vmem>>, vector<1x1x32xf32>
    %170 = vector.shape_cast %169 : vector<1x1x32xf32> to vector<1x32xf32>
    %171 = vector.broadcast %170 : vector<1x32xf32> to vector<64x32xf32>
    %172 = arith.addf %168, %171 : vector<64x32xf32>
    %173 = vector.shape_cast %172 : vector<64x32xf32> to vector<8x8x32xf32>
    %c0_72 = arith.constant 0 : index
    %c0_73 = arith.constant 0 : index
    %c0_74 = arith.constant 0 : index
    %174 = vector.load %arg17[%c0_72, %c0_73, %c0_74] : memref<8x8x32xf32, #tpu.memory_space<vmem>>, vector<8x8x32xf32>
    tpu.vector_store %arg17[%c0_72, %c0_73, %c0_74], %173 {strides = array<i32>} : memref<8x8x32xf32, #tpu.memory_space<vmem>>, vector<8x8x32xf32>,
    %c1_i32 = arith.constant 1 : i32
    %175 = arith.cmpi eq, %arg1, %c1_i32 : i32
    %176 = arith.extui %175 : i1 to i32
    %c0_i32_75 = arith.constant 0 : i32
    %177 = arith.cmpi ne, %176, %c0_i32_75 : i32
    scf.if %177 {
      %178 = vector.extract_strided_slice %173 {offsets = [0, 7, 0], sizes = [8, 1, 32], strides = [1, 1, 1]} : vector<8x8x32xf32> to vector<8x1x32xf32>
      %179 = vector.shape_cast %178 : vector<8x1x32xf32> to vector<8x32xf32>
      %c0_76 = arith.constant 0 : index
      %c0_77 = arith.constant 0 : index
      %180 = vector.load %arg16[%c0_76, %c0_77] : memref<8x32xf32, #tpu.memory_space<vmem>>, vector<8x32xf32>
      tpu.vector_store %arg16[%c0_76, %c0_77], %179 {strides = array<i32>} : memref<8x32xf32, #tpu.memory_space<vmem>>, vector<8x32xf32>,
    } else {
    }
    return
  }
  func.func @transform_0(%arg0: i32, %arg1: i32) -> (i32, i32) {
    %c0_i32 = arith.constant 0 : i32
    %c0_i32_0 = arith.constant 0 : i32
    return %arg0, %c0_i32 : i32, i32
  }
  func.func @transform_1(%arg0: i32, %arg1: i32) -> (i32, i32, i32) {
    %c0_i32 = arith.constant 0 : i32
    %c0_i32_0 = arith.constant 0 : i32
    %c0_i32_1 = arith.constant 0 : i32
    return %arg0, %c0_i32, %c0_i32_0 : i32, i32, i32
  }
  func.func @transform_2(%arg0: i32, %arg1: i32) -> (i32, i32, i32) {
    %c0_i32 = arith.constant 0 : i32
    %c0_i32_0 = arith.constant 0 : i32
    %c0_i32_1 = arith.constant 0 : i32
    return %arg1, %c0_i32, %c0_i32_0 : i32, i32, i32
  }
  func.func @transform_3(%arg0: i32, %arg1: i32) -> (i32, i32, i32) {
    %c0_i32 = arith.constant 0 : i32
    %c0_i32_0 = arith.constant 0 : i32
    %c0_i32_1 = arith.constant 0 : i32
    return %arg1, %c0_i32, %c0_i32_0 : i32, i32, i32
  }
  func.func @transform_4(%arg0: i32, %arg1: i32) -> (i32, i32, i32) {
    %c0_i32 = arith.constant 0 : i32
    %c0_i32_0 = arith.constant 0 : i32
    %c0_i32_1 = arith.constant 0 : i32
    return %arg1, %c0_i32, %c0_i32_0 : i32, i32, i32
  }
  func.func @transform_5(%arg0: i32, %arg1: i32) -> (i32, i32, i32) {
    %c0_i32 = arith.constant 0 : i32
    %c0_i32_0 = arith.constant 0 : i32
    %c0_i32_1 = arith.constant 0 : i32
    return %arg1, %c0_i32, %c0_i32_0 : i32, i32, i32
  }
  func.func @transform_6(%arg0: i32, %arg1: i32) -> (i32, i32, i32) {
    %c0_i32 = arith.constant 0 : i32
    %c0_i32_0 = arith.constant 0 : i32
    %c0_i32_1 = arith.constant 0 : i32
    return %arg1, %c0_i32, %c0_i32_0 : i32, i32, i32
  }
  func.func @transform_7(%arg0: i32, %arg1: i32) -> (i32, i32, i32) {
    %c0_i32 = arith.constant 0 : i32
    %c0_i32_0 = arith.constant 0 : i32
    %c0_i32_1 = arith.constant 0 : i32
    return %arg1, %c0_i32, %c0_i32_0 : i32, i32, i32
  }
  func.func @transform_8(%arg0: i32, %arg1: i32) -> (i32, i32, i32) {
    %c0_i32 = arith.constant 0 : i32
    %c0_i32_0 = arith.constant 0 : i32
    %c0_i32_1 = arith.constant 0 : i32
    return %arg1, %c0_i32, %c0_i32_0 : i32, i32, i32
  }
  func.func @transform_9(%arg0: i32, %arg1: i32) -> (i32, i32, i32) {
    %c0_i32 = arith.constant 0 : i32
    %c0_i32_0 = arith.constant 0 : i32
    %c0_i32_1 = arith.constant 0 : i32
    return %arg1, %c0_i32, %c0_i32_0 : i32, i32, i32
  }
  func.func @transform_10(%arg0: i32, %arg1: i32) -> (i32, i32, i32) {
    %c0_i32 = arith.constant 0 : i32
    %c0_i32_0 = arith.constant 0 : i32
    %c0_i32_1 = arith.constant 0 : i32
    return %arg1, %c0_i32, %c0_i32_0 : i32, i32, i32
  }
  func.func @transform_11(%arg0: i32, %arg1: i32) -> (i32, i32, i32) {
    %c0_i32 = arith.constant 0 : i32
    %c0_i32_0 = arith.constant 0 : i32
    %c0_i32_1 = arith.constant 0 : i32
    return %arg1, %c0_i32, %c0_i32_0 : i32, i32, i32
  }
  func.func @transform_12(%arg0: i32, %arg1: i32) -> (i32, i32, i32) {
    %c0_i32 = arith.constant 0 : i32
    %c0_i32_0 = arith.constant 0 : i32
    %c0_i32_1 = arith.constant 0 : i32
    return %arg1, %c0_i32, %c0_i32_0 : i32, i32, i32
  }
  func.func @transform_13(%arg0: i32, %arg1: i32) -> (i32, i32, i32) {
    %c0_i32 = arith.constant 0 : i32
    %c0_i32_0 = arith.constant 0 : i32
    %c0_i32_1 = arith.constant 0 : i32
    return %arg1, %c0_i32, %c0_i32_0 : i32, i32, i32
  }
  func.func @transform_14(%arg0: i32, %arg1: i32) -> (i32, i32) {
    %c0_i32 = arith.constant 0 : i32
    %c0_i32_0 = arith.constant 0 : i32
    return %arg0, %c0_i32 : i32, i32
  }
}

</mosaic_0001>

<llo_original>
// kernel: encoder_forward.1
$region0: #{encoder_forward.1}
  #allocation0 [shape = 'u32[]', space=smem, size = 0x4, offset = 0x4, fixed_abs, tag = 'smem constant byte address 0x4 - core index']
  #allocation1 [shape = 'u32[144,128]{1,0:T(1,128)}', space=vmem, size = 0x12000, scoped, tag = 'internal scratch']
  #allocation2 [shape = 'f32[8,8,32]{2,1,0:T(8,128)}', space=vmem, size = 0x8000, scoped, tag = 'scratch operand']
  #allocation3 [shape = 'f32[8,8,8]{2,1,0:T(8,128)}', space=vmem, size = 0x8000, scoped, tag = 'scratch operand']
  %s0 = inlined_call_operand.vmem [shape: s32[16,8], index: 0, kind: input, shape index: {}]
  %s1 = inlined_call_operand.vmem [shape: f32[16,8,32], index: 1, kind: input, shape index: {}]
  %s2 = inlined_call_operand.vmem [shape: bf16[2,32,96], index: 2, kind: input, shape index: {}]
  %s3 = inlined_call_operand.vmem [shape: f32[2,1,96], index: 3, kind: input, shape index: {}]
  %s4 = inlined_call_operand.vmem [shape: bf16[2,32,32], index: 4, kind: input, shape index: {}]
  %s5 = inlined_call_operand.vmem [shape: f32[2,1,32], index: 5, kind: input, shape index: {}]
  %s6 = inlined_call_operand.vmem [shape: f32[2,1,32], index: 6, kind: input, shape index: {}]
  %s7 = inlined_call_operand.vmem [shape: f32[2,1,32], index: 7, kind: input, shape index: {}]
  %s8 = inlined_call_operand.vmem [shape: bf16[2,32,64], index: 8, kind: input, shape index: {}]
  %s9 = inlined_call_operand.vmem [shape: f32[2,1,64], index: 9, kind: input, shape index: {}]
  %s10 = inlined_call_operand.vmem [shape: bf16[2,64,32], index: 10, kind: input, shape index: {}]
  %s11 = inlined_call_operand.vmem [shape: f32[2,1,32], index: 11, kind: input, shape index: {}]
  %s12 = inlined_call_operand.vmem [shape: f32[2,1,32], index: 12, kind: input, shape index: {}]
  %s13 = inlined_call_operand.vmem [shape: f32[2,1,32], index: 13, kind: input, shape index: {}]
  %s14 = inlined_call_operand.hbm [shape: f32[16,32], index: 14, kind: output, shape index: {}]
  %s15 = sld [smem:[#allocation0]]
  $region97: #{encoder_forward.1} parent=0
    _
  %s17 = ssub.s32 1, %s15
  %s18 = scalar_select 0, %s17, %s15
  $region1: #{encoder_forward.1} parent=0
    #allocation4 [shape = 'u8[8192]{0}', space=vmem, size = 0x2000, scoped, tag = 'output window, operand 0']
    #allocation5 [shape = 's32[2]{0}', space=sflag, size = 0x8, scoped, tag = 'scoped memory for encoder_forward.1']
    %19 = vsyncpa [#allocation5], 0
    %s20 = scalar_lea.sflag [#allocation5], 1
    %21 = vsyncpa %s20, 0
    loop: start=0, step=1, limit=6
    $region2: #{encoder_forward.1} parent=1 // loop_pre_header
      _
    $region3: #{encoder_forward.1} parent=1 // loop_header
      %s23 = sphi 0, %s27
      %p24 = scmp.ge.s32.totalorder %s23, 6
      %s30 = sphi 0, %s42
      %s31 = sphi 0, %s38
      %s32 = sphi 0, %s30
      %s33 = sphi 0, %s31
      %s34 = sphi 0, %s32
      %s35 = sphi 0, %s33
      %s45 = sphi 0, %s47
      %s48 = sphi 0, %s45
      %s49 = sphi 0, %s48
      %s65 = sphi 0, %s49
      %s71 = sphi 0, %s73
      %s74 = sphi 0, %s71
      %s75 = sphi 0, %s74
      %s91 = sphi 0, %s75
      %s97 = sphi 0, %s99
      %s100 = sphi 0, %s97
      %s101 = sphi 0, %s100
      %s117 = sphi 0, %s101
      %s123 = sphi 0, %s125
      %s126 = sphi 0, %s123
      %s127 = sphi 0, %s126
      %s143 = sphi 0, %s127
      %s149 = sphi 0, %s151
      %s152 = sphi 0, %s149
      %s153 = sphi 0, %s152
      %s169 = sphi 0, %s153
      %s175 = sphi 0, %s177
      %s178 = sphi 0, %s175
      %s179 = sphi 0, %s178
      %s195 = sphi 0, %s179
      %s201 = sphi 0, %s203
      %s204 = sphi 0, %s201
      %s205 = sphi 0, %s204
      %s221 = sphi 0, %s205
      %s227 = sphi 0, %s229
      %s230 = sphi 0, %s227
      %s231 = sphi 0, %s230
      %s247 = sphi 0, %s231
      %s253 = sphi 0, %s255
      %s256 = sphi 0, %s253
      %s257 = sphi 0, %s256
      %s273 = sphi 0, %s257
      %s279 = sphi 0, %s281
      %s282 = sphi 0, %s279
      %s283 = sphi 0, %s282
      %s299 = sphi 0, %s283
      %s305 = sphi 0, %s307
      %s308 = sphi 0, %s305
      %s309 = sphi 0, %s308
      %s325 = sphi 0, %s309
      %s331 = sphi 0, %s333
      %s334 = sphi 0, %s331
      %s335 = sphi 0, %s334
      %s351 = sphi 0, %s335
      %s357 = sphi 0, %s359
      %s360 = sphi 0, %s357
      %s361 = sphi 0, %s360
      %s377 = sphi 0, %s361
      %s383 = sphi 0, %s385
      %s386 = sphi 0, %s383
      %s387 = sphi 0, %s386
      %s403 = sphi 0, %s387
      %s409 = sphi 0, %s411
      %s412 = sphi 0, %s409
      %s413 = sphi 0, %s412
      %s429 = sphi 0, %s413
    $region4: #{encoder_forward.1} parent=1 // loop_header_branch
      %26 = sbr.rel (%p24) target = $region8
    $region5: #{encoder_forward.1} parent=1 // loop_body
      %s28 = ssub.s32 %s23, 1
      %s29 = ssub.s32 %s23, 2
      %s36 = sadd.s32 1, %s31
      %p37 = scmp.ge.s32.totalorder %s36, 2
      %s38 = scalar_select %p37, 0, %s36
      %s39 = sadd.s32 1, %s30
      %s40 = scalar_select %p37, %s39, %s30
      %p41 = scmp.ge.s32.totalorder %s40, 2
      %s42 = scalar_select %p41, 0, %s40
      %s43 = ssub.s32 %s30, %s42
      %p44 = scmp.eq.s32.totalorder %s43, 0
      %s46 = sadd.s32 %s45, 1
      %s47 = scalar_select %p44, %s45, %s46
      %p50 = pneg %p44
      %p51 = scmp.eq.s32.totalorder %s23, 3
      %p52 = por %p50, %p51
      %p53 = scmp.ne.s32.totalorder %s45, %s48
      %p54 = scmp.eq.s32.totalorder %s23, 0
      %p55 = por %p53, %p54
      %p56 = scmp.ne.s32.totalorder %s45, %s48
      %p57 = scmp.eq.s32.totalorder %s28, 3
      %p58 = por %p56, %p57
      %p59 = scmp.ne.s32.totalorder %s48, %s49
      %p60 = scmp.eq.s32.totalorder %s28, 0
      %p61 = por %p59, %p60
      %p62 = scmp.ne.s32.totalorder %s48, %s49
      %p63 = scmp.eq.s32.totalorder %s29, 3
      %p64 = por %p62, %p63
      %p66 = scmp.ne.s32.totalorder %s49, %s65
      %p67 = scmp.eq.s32.totalorder %s29, 0
      %p68 = por %p66, %p67
      %s69 = ssub.s32 %s30, %s42
      %p70 = scmp.eq.s32.totalorder %s69, 0
      %s72 = sadd.s32 %s71, 1
      %s73 = scalar_select %p70, %s71, %s72
      %p76 = pneg %p70
      %p77 = scmp.eq.s32.totalorder %s23, 3
      %p78 = por %p76, %p77
      %p79 = scmp.ne.s32.totalorder %s71, %s74
      %p80 = scmp.eq.s32.totalorder %s23, 0
      %p81 = por %p79, %p80
      %p82 = scmp.ne.s32.totalorder %s71, %s74
      %p83 = scmp.eq.s32.totalorder %s28, 3
      %p84 = por %p82, %p83
      %p85 = scmp.ne.s32.totalorder %s74, %s75
      %p86 = scmp.eq.s32.totalorder %s28, 0
      %p87 = por %p85, %p86
      %p88 = scmp.ne.s32.totalorder %s74, %s75
      %p89 = scmp.eq.s32.totalorder %s29, 3
      %p90 = por %p88, %p89
      %p92 = scmp.ne.s32.totalorder %s75, %s91
      %p93 = scmp.eq.s32.totalorder %s29, 0
      %p94 = por %p92, %p93
      %s95 = ssub.s32 %s31, %s38
      %p96 = scmp.eq.s32.totalorder %s95, 0
      %s98 = sadd.s32 %s97, 1
      %s99 = scalar_select %p96, %s97, %s98
      %p102 = pneg %p96
      %p103 = scmp.eq.s32.totalorder %s23, 3
      %p104 = por %p102, %p103
      %p105 = scmp.ne.s32.totalorder %s97, %s100
      %p106 = scmp.eq.s32.totalorder %s23, 0
      %p107 = por %p105, %p106
      %p108 = scmp.ne.s32.totalorder %s97, %s100
      %p109 = scmp.eq.s32.totalorder %s28, 3
      %p110 = por %p108, %p109
      %p111 = scmp.ne.s32.totalorder %s100, %s101
      %p112 = scmp.eq.s32.totalorder %s28, 0
      %p113 = por %p111, %p112
      %p114 = scmp.ne.s32.totalorder %s100, %s101
      %p115 = scmp.eq.s32.totalorder %s29, 3
      %p116 = por %p114, %p115
      %p118 = scmp.ne.s32.totalorder %s101, %s117
      %p119 = scmp.eq.s32.totalorder %s29, 0
      %p120 = por %p118, %p119
      %s121 = ssub.s32 %s31, %s38
      %p122 = scmp.eq.s32.totalorder %s121, 0
      %s124 = sadd.s32 %s123, 1
      %s125 = scalar_select %p122, %s123, %s124
      %p128 = pneg %p122
      %p129 = scmp.eq.s32.totalorder %s23, 3
      %p130 = por %p128, %p129
      %p131 = scmp.ne.s32.totalorder %s123, %s126
      %p132 = scmp.eq.s32.totalorder %s23, 0
      %p133 = por %p131, %p132
      %p134 = scmp.ne.s32.totalorder %s123, %s126
      %p135 = scmp.eq.s32.totalorder %s28, 3
      %p136 = por %p134, %p135
      %p137 = scmp.ne.s32.totalorder %s126, %s127
      %p138 = scmp.eq.s32.totalorder %s28, 0
      %p139 = por %p137, %p138
      %p140 = scmp.ne.s32.totalorder %s126, %s127
      %p141 = scmp.eq.s32.totalorder %s29, 3
      %p142 = por %p140, %p141
      %p144 = scmp.ne.s32.totalorder %s127, %s143
      %p145 = scmp.eq.s32.totalorder %s29, 0
      %p146 = por %p144, %p145
      %s147 = ssub.s32 %s31, %s38
      %p148 = scmp.eq.s32.totalorder %s147, 0
      %s150 = sadd.s32 %s149, 1
      %s151 = scalar_select %p148, %s149, %s150
      %p154 = pneg %p148
      %p155 = scmp.eq.s32.totalorder %s23, 3
      %p156 = por %p154, %p155
      %p157 = scmp.ne.s32.totalorder %s149, %s152
      %p158 = scmp.eq.s32.totalorder %s23, 0
      %p159 = por %p157, %p158
      %p160 = scmp.ne.s32.totalorder %s149, %s152
      %p161 = scmp.eq.s32.totalorder %s28, 3
      %p162 = por %p160, %p161
      %p163 = scmp.ne.s32.totalorder %s152, %s153
      %p164 = scmp.eq.s32.totalorder %s28, 0
      %p165 = por %p163, %p164
      %p166 = scmp.ne.s32.totalorder %s152, %s153
      %p167 = scmp.eq.s32.totalorder %s29, 3
      %p168 = por %p166, %p167
      %p170 = scmp.ne.s32.totalorder %s153, %s169
      %p171 = scmp.eq.s32.totalorder %s29, 0
      %p172 = por %p170, %p171
      %s173 = ssub.s32 %s31, %s38
      %p174 = scmp.eq.s32.totalorder %s173, 0
      %s176 = sadd.s32 %s175, 1
      %s177 = scalar_select %p174, %s175, %s176
      %p180 = pneg %p174
      %p181 = scmp.eq.s32.totalorder %s23, 3
      %p182 = por %p180, %p181
      %p183 = scmp.ne.s32.totalorder %s175, %s178
      %p184 = scmp.eq.s32.totalorder %s23, 0
      %p185 = por %p183, %p184
      %p186 = scmp.ne.s32.totalorder %s175, %s178
      %p187 = scmp.eq.s32.totalorder %s28, 3
      %p188 = por %p186, %p187
      %p189 = scmp.ne.s32.totalorder %s178, %s179
      %p190 = scmp.eq.s32.totalorder %s28, 0
      %p191 = por %p189, %p190
      %p192 = scmp.ne.s32.totalorder %s178, %s179
      %p193 = scmp.eq.s32.totalorder %s29, 3
      %p194 = por %p192, %p193
      %p196 = scmp.ne.s32.totalorder %s179, %s195
      %p197 = scmp.eq.s32.totalorder %s29, 0
      %p198 = por %p196, %p197
      %s199 = ssub.s32 %s31, %s38
      %p200 = scmp.eq.s32.totalorder %s199, 0
      %s202 = sadd.s32 %s201, 1
      %s203 = scalar_select %p200, %s201, %s202
      %p206 = pneg %p200
      %p207 = scmp.eq.s32.totalorder %s23, 3
      %p208 = por %p206, %p207
      %p209 = scmp.ne.s32.totalorder %s201, %s204
      %p210 = scmp.eq.s32.totalorder %s23, 0
      %p211 = por %p209, %p210
      %p212 = scmp.ne.s32.totalorder %s201, %s204
      %p213 = scmp.eq.s32.totalorder %s28, 3
      %p214 = por %p212, %p213
      %p215 = scmp.ne.s32.totalorder %s204, %s205
      %p216 = scmp.eq.s32.totalorder %s28, 0
      %p217 = por %p215, %p216
      %p218 = scmp.ne.s32.totalorder %s204, %s205
      %p219 = scmp.eq.s32.totalorder %s29, 3
      %p220 = por %p218, %p219
      %p222 = scmp.ne.s32.totalorder %s205, %s221
      %p223 = scmp.eq.s32.totalorder %s29, 0
      %p224 = por %p222, %p223
      %s225 = ssub.s32 %s31, %s38
      %p226 = scmp.eq.s32.totalorder %s225, 0
      %s228 = sadd.s32 %s227, 1
      %s229 = scalar_select %p226, %s227, %s228
      %p232 = pneg %p226
      %p233 = scmp.eq.s32.totalorder %s23, 3
      %p234 = por %p232, %p233
      %p235 = scmp.ne.s32.totalorder %s227, %s230
      %p236 = scmp.eq.s32.totalorder %s23, 0
      %p237 = por %p235, %p236
      %p238 = scmp.ne.s32.totalorder %s227, %s230
      %p239 = scmp.eq.s32.totalorder %s28, 3
      %p240 = por %p238, %p239
      %p241 = scmp.ne.s32.totalorder %s230, %s231
      %p242 = scmp.eq.s32.totalorder %s28, 0
      %p243 = por %p241, %p242
      %p244 = scmp.ne.s32.totalorder %s230, %s231
      %p245 = scmp.eq.s32.totalorder %s29, 3
      %p246 = por %p244, %p245
      %p248 = scmp.ne.s32.totalorder %s231, %s247
      %p249 = scmp.eq.s32.totalorder %s29, 0
      %p250 = por %p248, %p249
      %s251 = ssub.s32 %s31, %s38
      %p252 = scmp.eq.s32.totalorder %s251, 0
      %s254 = sadd.s32 %s253, 1
      %s255 = scalar_select %p252, %s253, %s254
      %p258 = pneg %p252
      %p259 = scmp.eq.s32.totalorder %s23, 3
      %p260 = por %p258, %p259
      %p261 = scmp.ne.s32.totalorder %s253, %s256
      %p262 = scmp.eq.s32.totalorder %s23, 0
      %p263 = por %p261, %p262
      %p264 = scmp.ne.s32.totalorder %s253, %s256
      %p265 = scmp.eq.s32.totalorder %s28, 3
      %p266 = por %p264, %p265
      %p267 = scmp.ne.s32.totalorder %s256, %s257
      %p268 = scmp.eq.s32.totalorder %s28, 0
      %p269 = por %p267, %p268
      %p270 = scmp.ne.s32.totalorder %s256, %s257
      %p271 = scmp.eq.s32.totalorder %s29, 3
      %p272 = por %p270, %p271
      %p274 = scmp.ne.s32.totalorder %s257, %s273
      %p275 = scmp.eq.s32.totalorder %s29, 0
      %p276 = por %p274, %p275
      %s277 = ssub.s32 %s31, %s38
      %p278 = scmp.eq.s32.totalorder %s277, 0
      %s280 = sadd.s32 %s279, 1
      %s281 = scalar_select %p278, %s279, %s280
      %p284 = pneg %p278
      %p285 = scmp.eq.s32.totalorder %s23, 3
      %p286 = por %p284, %p285
      %p287 = scmp.ne.s32.totalorder %s279, %s282
      %p288 = scmp.eq.s32.totalorder %s23, 0
      %p289 = por %p287, %p288
      %p290 = scmp.ne.s32.totalorder %s279, %s282
      %p291 = scmp.eq.s32.totalorder %s28, 3
      %p292 = por %p290, %p291
      %p293 = scmp.ne.s32.totalorder %s282, %s283
      %p294 = scmp.eq.s32.totalorder %s28, 0
      %p295 = por %p293, %p294
      %p296 = scmp.ne.s32.totalorder %s282, %s283
      %p297 = scmp.eq.s32.totalorder %s29, 3
      %p298 = por %p296, %p297
      %p300 = scmp.ne.s32.totalorder %s283, %s299
      %p301 = scmp.eq.s32.totalorder %s29, 0
      %p302 = por %p300, %p301
      %s303 = ssub.s32 %s31, %s38
      %p304 = scmp.eq.s32.totalorder %s303, 0
      %s306 = sadd.s32 %s305, 1
      %s307 = scalar_select %p304, %s305, %s306
      %p310 = pneg %p304
      %p311 = scmp.eq.s32.totalorder %s23, 3
      %p312 = por %p310, %p311
      %p313 = scmp.ne.s32.totalorder %s305, %s308
      %p314 = scmp.eq.s32.totalorder %s23, 0
      %p315 = por %p313, %p314
      %p316 = scmp.ne.s32.totalorder %s305, %s308
      %p317 = scmp.eq.s32.totalorder %s28, 3
      %p318 = por %p316, %p317
      %p319 = scmp.ne.s32.totalorder %s308, %s309
      %p320 = scmp.eq.s32.totalorder %s28, 0
      %p321 = por %p319, %p320
      %p322 = scmp.ne.s32.totalorder %s308, %s309
      %p323 = scmp.eq.s32.totalorder %s29, 3
      %p324 = por %p322, %p323
      %p326 = scmp.ne.s32.totalorder %s309, %s325
      %p327 = scmp.eq.s32.totalorder %s29, 0
      %p328 = por %p326, %p327
      %s329 = ssub.s32 %s31, %s38
      %p330 = scmp.eq.s32.totalorder %s329, 0
      %s332 = sadd.s32 %s331, 1
      %s333 = scalar_select %p330, %s331, %s332
      %p336 = pneg %p330
      %p337 = scmp.eq.s32.totalorder %s23, 3
      %p338 = por %p336, %p337
      %p339 = scmp.ne.s32.totalorder %s331, %s334
      %p340 = scmp.eq.s32.totalorder %s23, 0
      %p341 = por %p339, %p340
      %p342 = scmp.ne.s32.totalorder %s331, %s334
      %p343 = scmp.eq.s32.totalorder %s28, 3
      %p344 = por %p342, %p343
      %p345 = scmp.ne.s32.totalorder %s334, %s335
      %p346 = scmp.eq.s32.totalorder %s28, 0
      %p347 = por %p345, %p346
      %p348 = scmp.ne.s32.totalorder %s334, %s335
      %p349 = scmp.eq.s32.totalorder %s29, 3
      %p350 = por %p348, %p349
      %p352 = scmp.ne.s32.totalorder %s335, %s351
      %p353 = scmp.eq.s32.totalorder %s29, 0
      %p354 = por %p352, %p353
      %s355 = ssub.s32 %s31, %s38
      %p356 = scmp.eq.s32.totalorder %s355, 0
      %s358 = sadd.s32 %s357, 1
      %s359 = scalar_select %p356, %s357, %s358
      %p362 = pneg %p356
      %p363 = scmp.eq.s32.totalorder %s23, 3
      %p364 = por %p362, %p363
      %p365 = scmp.ne.s32.totalorder %s357, %s360
      %p366 = scmp.eq.s32.totalorder %s23, 0
      %p367 = por %p365, %p366
      %p368 = scmp.ne.s32.totalorder %s357, %s360
      %p369 = scmp.eq.s32.totalorder %s28, 3
      %p370 = por %p368, %p369
      %p371 = scmp.ne.s32.totalorder %s360, %s361
      %p372 = scmp.eq.s32.totalorder %s28, 0
      %p373 = por %p371, %p372
      %p374 = scmp.ne.s32.totalorder %s360, %s361
      %p375 = scmp.eq.s32.totalorder %s29, 3
      %p376 = por %p374, %p375
      %p378 = scmp.ne.s32.totalorder %s361, %s377
      %p379 = scmp.eq.s32.totalorder %s29, 0
      %p380 = por %p378, %p379
      %s381 = ssub.s32 %s31, %s38
      %p382 = scmp.eq.s32.totalorder %s381, 0
      %s384 = sadd.s32 %s383, 1
      %s385 = scalar_select %p382, %s383, %s384
      %p388 = pneg %p382
      %p389 = scmp.eq.s32.totalorder %s23, 3
      %p390 = por %p388, %p389
      %p391 = scmp.ne.s32.totalorder %s383, %s386
      %p392 = scmp.eq.s32.totalorder %s23, 0
      %p393 = por %p391, %p392
      %p394 = scmp.ne.s32.totalorder %s383, %s386
      %p395 = scmp.eq.s32.totalorder %s28, 3
      %p396 = por %p394, %p395
      %p397 = scmp.ne.s32.totalorder %s386, %s387
      %p398 = scmp.eq.s32.totalorder %s28, 0
      %p399 = por %p397, %p398
      %p400 = scmp.ne.s32.totalorder %s386, %s387
      %p401 = scmp.eq.s32.totalorder %s29, 3
      %p402 = por %p400, %p401
      %p404 = scmp.ne.s32.totalorder %s387, %s403
      %p405 = scmp.eq.s32.totalorder %s29, 0
      %p406 = por %p404, %p405
      %s407 = ssub.s32 %s30, %s42
      %p408 = scmp.eq.s32.totalorder %s407, 0
      %s410 = sadd.s32 %s409, 1
      %s411 = scalar_select %p408, %s409, %s410
      %p414 = pneg %p408
      %p415 = scmp.eq.s32.totalorder %s23, 3
      %p416 = por %p414, %p415
      %p417 = scmp.ne.s32.totalorder %s409, %s412
      %p418 = scmp.eq.s32.totalorder %s23, 0
      %p419 = por %p417, %p418
      %p420 = scmp.ne.s32.totalorder %s409, %s412
      %p421 = scmp.eq.s32.totalorder %s28, 3
      %p422 = por %p420, %p421
      %p423 = scmp.ne.s32.totalorder %s412, %s413
      %p424 = scmp.eq.s32.totalorder %s28, 0
      %p425 = por %p423, %p424
      %p426 = scmp.ne.s32.totalorder %s412, %s413
      %p427 = scmp.eq.s32.totalorder %s29, 3
      %p428 = por %p426, %p427
      %p430 = scmp.ne.s32.totalorder %s413, %s429
      %p431 = scmp.eq.s32.totalorder %s29, 0
      %p432 = por %p430, %p431
      %p433 = scmp.le.s32.totalorder 1, %s23
      %p434 = scmp.lt.s32.totalorder %s23, 5
      %p435 = pnand %p433, %p434
      %p436 = pneg %p435
      // Predicated region
      $region9: #{encoder_forward.1} parent=5 // pred_check
        _
      $region10: #{encoder_forward.1} parent=5 // pred_check_branch
        %438 = sbr.rel (%p435) target = $region12
      $region11: #{encoder_forward.1} parent=5 // pred_region
        %s439 = ssub.s32 %s23, 1
      $region12: #{encoder_forward.1} parent=5 // pred_fallthru
        _
      %p440 = scmp.lt.s32.totalorder %s23, 4
      // Predicated region
      $region13: #{encoder_forward.1} parent=5 // pred_check
        %p441 = pneg %p440
      $region14: #{encoder_forward.1} parent=5 // pred_check_branch
        %443 = sbr.rel (%p441) target = $region16
      $region15: #{encoder_forward.1} parent=5 // pred_region
        // Predicated region
        $region17: #{encoder_forward.1} parent=15 // pred_check
          %p444 = pneg %p55
        $region18: #{encoder_forward.1} parent=15 // pred_check_branch
          %446 = sbr.rel (%p444) target = $region20
        $region19: #{encoder_forward.1} parent=15 // pred_region
          %p447 = scmp.lt.s32.totalorder %s30, 1
          %s448 = scalar_select %p447, %s30, 1
          %s449 = smul.addr %s448, 8
          %s450 = scalar_lea.vmem %s0, %s449
        $region20: #{encoder_forward.1} parent=15 // pred_fallthru
          _
        // Predicated region
        $region21: #{encoder_forward.1} parent=15 // pred_check
          %p451 = pneg %p81
        $region22: #{encoder_forward.1} parent=15 // pred_check_branch
          %453 = sbr.rel (%p451) target = $region24
        $region23: #{encoder_forward.1} parent=15 // pred_region
          %s454 = smul.u32 8, %s30
          %p455 = scmp.lt.s32.totalorder %s454, 15
          %s456 = scalar_select %p455, %s454, 15
          %s457 = smul.addr %s456, 8
          %s458 = scalar_lea.vmem %s1, %s457
          %s459 = smul.u32 8, %s30
        $region24: #{encoder_forward.1} parent=15 // pred_fallthru
          _
        // Predicated region
        $region25: #{encoder_forward.1} parent=15 // pred_check
          %p460 = pneg %p107
        $region26: #{encoder_forward.1} parent=15 // pred_check_branch
          %462 = sbr.rel (%p460) target = $region28
        $region27: #{encoder_forward.1} parent=15 // pred_region
          %p463 = scmp.lt.s32.totalorder %s31, 1
          %s464 = scalar_select %p463, %s31, 1
          %s465 = smul.addr %s464, 4
          %s466 = smul.addr %s465, 4
          %s467 = scalar_lea.vmem %s2, %s466
        $region28: #{encoder_forward.1} parent=15 // pred_fallthru
          _
        // Predicated region
        $region29: #{encoder_forward.1} parent=15 // pred_check
          %p468 = pneg %p133
        $region30: #{encoder_forward.1} parent=15 // pred_check_branch
          %470 = sbr.rel (%p468) target = $region32
        $region31: #{encoder_forward.1} parent=15 // pred_region
          %p471 = scmp.lt.s32.totalorder %s31, 1
          %s472 = scalar_select %p471, %s31, 1
          %s473 = scalar_lea.vmem %s3, %s472
        $region32: #{encoder_forward.1} parent=15 // pred_fallthru
          _
        // Predicated region
        $region33: #{encoder_forward.1} parent=15 // pred_check
          %p474 = pneg %p159
        $region34: #{encoder_forward.1} parent=15 // pred_check_branch
          %476 = sbr.rel (%p474) target = $region36
        $region35: #{encoder_forward.1} parent=15 // pred_region
          %p477 = scmp.lt.s32.totalorder %s31, 1
          %s478 = scalar_select %p477, %s31, 1
          %s479 = smul.addr %s478, 4
          %s480 = smul.addr %s479, 4
          %s481 = scalar_lea.vmem %s4, %s480
        $region36: #{encoder_forward.1} parent=15 // pred_fallthru
          _
        // Predicated region
        $region37: #{encoder_forward.1} parent=15 // pred_check
          %p482 = pneg %p185
        $region38: #{encoder_forward.1} parent=15 // pred_check_branch
          %484 = sbr.rel (%p482) target = $region40
        $region39: #{encoder_forward.1} parent=15 // pred_region
          %p485 = scmp.lt.s32.totalorder %s31, 1
          %s486 = scalar_select %p485, %s31, 1
          %s487 = scalar_lea.vmem %s5, %s486
        $region40: #{encoder_forward.1} parent=15 // pred_fallthru
          _
        // Predicated region
        $region41: #{encoder_forward.1} parent=15 // pred_check
          %p488 = pneg %p211
        $region42: #{encoder_forward.1} parent=15 // pred_check_branch
          %490 = sbr.rel (%p488) target = $region44
        $region43: #{encoder_forward.1} parent=15 // pred_region
          %p491 = scmp.lt.s32.totalorder %s31, 1
          %s492 = scalar_select %p491, %s31, 1
          %s493 = scalar_lea.vmem %s6, %s492
        $region44: #{encoder_forward.1} parent=15 // pred_fallthru
          _
        // Predicated region
        $region45: #{encoder_forward.1} parent=15 // pred_check
          %p494 = pneg %p237
        $region46: #{encoder_forward.1} parent=15 // pred_check_branch
          %496 = sbr.rel (%p494) target = $region48
        $region47: #{encoder_forward.1} parent=15 // pred_region
          %p497 = scmp.lt.s32.totalorder %s31, 1
          %s498 = scalar_select %p497, %s31, 1
          %s499 = scalar_lea.vmem %s7, %s498
        $region48: #{encoder_forward.1} parent=15 // pred_fallthru
          _
        // Predicated region
        $region49: #{encoder_forward.1} parent=15 // pred_check
          %p500 = pneg %p263
        $region50: #{encoder_forward.1} parent=15 // pred_check_branch
          %502 = sbr.rel (%p500) target = $region52
        $region51: #{encoder_forward.1} parent=15 // pred_region
          %p503 = scmp.lt.s32.totalorder %s31, 1
          %s504 = scalar_select %p503, %s31, 1
          %s505 = smul.addr %s504, 4
          %s506 = smul.addr %s505, 4
          %s507 = scalar_lea.vmem %s8, %s506
        $region52: #{encoder_forward.1} parent=15 // pred_fallthru
          _
        // Predicated region
        $region53: #{encoder_forward.1} parent=15 // pred_check
          %p508 = pneg %p289
        $region54: #{encoder_forward.1} parent=15 // pred_check_branch
          %510 = sbr.rel (%p508) target = $region56
        $region55: #{encoder_forward.1} parent=15 // pred_region
          %p511 = scmp.lt.s32.totalorder %s31, 1
          %s512 = scalar_select %p511, %s31, 1
          %s513 = scalar_lea.vmem %s9, %s512
        $region56: #{encoder_forward.1} parent=15 // pred_fallthru
          _
        // Predicated region
        $region57: #{encoder_forward.1} parent=15 // pred_check
          %p514 = pneg %p315
        $region58: #{encoder_forward.1} parent=15 // pred_check_branch
          %516 = sbr.rel (%p514) target = $region60
        $region59: #{encoder_forward.1} parent=15 // pred_region
          %p517 = scmp.lt.s32.totalorder %s31, 1
          %s518 = scalar_select %p517, %s31, 1
          %s519 = smul.addr %s518, 8
          %s520 = smul.addr %s519, 4
          %s521 = scalar_lea.vmem %s10, %s520
        $region60: #{encoder_forward.1} parent=15 // pred_fallthru
          _
        // Predicated region
        $region61: #{encoder_forward.1} parent=15 // pred_check
          %p522 = pneg %p341
        $region62: #{encoder_forward.1} parent=15 // pred_check_branch
          %524 = sbr.rel (%p522) target = $region64
        $region63: #{encoder_forward.1} parent=15 // pred_region
          %p525 = scmp.lt.s32.totalorder %s31, 1
          %s526 = scalar_select %p525, %s31, 1
          %s527 = scalar_lea.vmem %s11, %s526
        $region64: #{encoder_forward.1} parent=15 // pred_fallthru
          _
        // Predicated region
        $region65: #{encoder_forward.1} parent=15 // pred_check
          %p528 = pneg %p367
        $region66: #{encoder_forward.1} parent=15 // pred_check_branch
          %530 = sbr.rel (%p528) target = $region68
        $region67: #{encoder_forward.1} parent=15 // pred_region
          %p531 = scmp.lt.s32.totalorder %s31, 1
          %s532 = scalar_select %p531, %s31, 1
          %s533 = scalar_lea.vmem %s12, %s532
        $region68: #{encoder_forward.1} parent=15 // pred_fallthru
          _
        // Predicated region
        $region69: #{encoder_forward.1} parent=15 // pred_check
          %p534 = pneg %p393
        $region70: #{encoder_forward.1} parent=15 // pred_check_branch
          %536 = sbr.rel (%p534) target = $region72
        $region71: #{encoder_forward.1} parent=15 // pred_region
          %p537 = scmp.lt.s32.totalorder %s31, 1
          %s538 = scalar_select %p537, %s31, 1
          %s539 = scalar_lea.vmem %s13, %s538
        $region72: #{encoder_forward.1} parent=15 // pred_fallthru
          _
      $region16: #{encoder_forward.1} parent=5 // pred_fallthru
        _
      %p540 = scmp.le.s32.totalorder 1, %s23
      %p541 = scmp.lt.s32.totalorder %s23, 5
      %p542 = pnand %p540, %p541
      %p543 = pneg %p542
      // Predicated region
      $region73: #{encoder_forward.1} parent=5 // pred_check
        _
      $region74: #{encoder_forward.1} parent=5 // pred_check_branch
        %545 = sbr.rel (%p542) target = $region76
      $region75: #{encoder_forward.1} parent=5 // pred_region
        %s546 = ssub.s32 %s23, 1
        %p547 = scmp.lt.s32.totalorder %s32, 1
        %s548 = scalar_select %p547, %s32, 1
        %s549 = smul.addr %s548, 8
        %s550 = scalar_lea.vmem %s0, %s549
        %p551 = pneg %p61
        %p552 = pneg %p58
        %s553 = smul.u32 8, %s32
        %p554 = scmp.lt.s32.totalorder %s553, 15
        %s555 = scalar_select %p554, %s553, 15
        %s556 = smul.addr %s555, 8
        %s557 = scalar_lea.vmem %s1, %s556
        %p558 = pneg %p87
        %p559 = pneg %p84
        %p560 = scmp.lt.s32.totalorder %s33, 1
        %s561 = scalar_select %p560, %s33, 1
        %s562 = smul.addr %s561, 4
        %s563 = smul.addr %s562, 4
        %s564 = scalar_lea.vmem %s2, %s563
        %p565 = pneg %p113
        %p566 = pneg %p110
        %p567 = scmp.lt.s32.totalorder %s33, 1
        %s568 = scalar_select %p567, %s33, 1
        %s569 = scalar_lea.vmem %s3, %s568
        %p570 = pneg %p139
        %p571 = pneg %p136
        %p572 = scmp.lt.s32.totalorder %s33, 1
        %s573 = scalar_select %p572, %s33, 1
        %s574 = smul.addr %s573, 4
        %s575 = smul.addr %s574, 4
        %s576 = scalar_lea.vmem %s4, %s575
        %p577 = pneg %p165
        %p578 = pneg %p162
        %p579 = scmp.lt.s32.totalorder %s33, 1
        %s580 = scalar_select %p579, %s33, 1
        %s581 = scalar_lea.vmem %s5, %s580
        %p582 = pneg %p191
        %p583 = pneg %p188
        %p584 = scmp.lt.s32.totalorder %s33, 1
        %s585 = scalar_select %p584, %s33, 1
        %s586 = scalar_lea.vmem %s6, %s585
        %p587 = pneg %p217
        %p588 = pneg %p214
        %p589 = scmp.lt.s32.totalorder %s33, 1
        %s590 = scalar_select %p589, %s33, 1
        %s591 = scalar_lea.vmem %s7, %s590
        %p592 = pneg %p243
        %p593 = pneg %p240
        %p594 = scmp.lt.s32.totalorder %s33, 1
        %s595 = scalar_select %p594, %s33, 1
        %s596 = smul.addr %s595, 4
        %s597 = smul.addr %s596, 4
        %s598 = scalar_lea.vmem %s8, %s597
        %p599 = pneg %p269
        %p600 = pneg %p266
        %p601 = scmp.lt.s32.totalorder %s33, 1
        %s602 = scalar_select %p601, %s33, 1
        %s603 = scalar_lea.vmem %s9, %s602
        %p604 = pneg %p295
        %p605 = pneg %p292
        %p606 = scmp.lt.s32.totalorder %s33, 1
        %s607 = scalar_select %p606, %s33, 1
        %s608 = smul.addr %s607, 8
        %s609 = smul.addr %s608, 4
        %s610 = scalar_lea.vmem %s10, %s609
        %p611 = pneg %p321
        %p612 = pneg %p318
        %p613 = scmp.lt.s32.totalorder %s33, 1
        %s614 = scalar_select %p613, %s33, 1
        %s615 = scalar_lea.vmem %s11, %s614
        %p616 = pneg %p347
        %p617 = pneg %p344
        %p618 = scmp.lt.s32.totalorder %s33, 1
        %s619 = scalar_select %p618, %s33, 1
        %s620 = scalar_lea.vmem %s12, %s619
        %p621 = pneg %p373
        %p622 = pneg %p370
        %p623 = scmp.lt.s32.totalorder %s33, 1
        %s624 = scalar_select %p623, %s33, 1
        %s625 = scalar_lea.vmem %s13, %s624
        %p626 = pneg %p399
        %p627 = pneg %p396
        %p628 = pneg %p425
        %p629 = pneg %p422
        %s630 = sand.u32 %s412, 1
        %s631 = scalar_lea.sflag [#allocation5], %s630
        %s632 = sand.u32 %s412, 1
        %s633 = smul.addr %s632, 8
        %s634 = scalar_lea.vmem [#allocation4], %s633
        %p635 = scmp.lt.s32.totalorder %s32, 1
        %s636 = scalar_select %p635, %s32, 1
        %s637 = smul.addr %s636, 8
        %s638 = scalar_lea.vmem %s0, %s637
        %s639 = smul.u32 8, %s32
        %p640 = scmp.lt.s32.totalorder %s639, 15
        %s641 = scalar_select %p640, %s639, 15
        %s642 = smul.addr %s641, 8
        %s643 = scalar_lea.vmem %s1, %s642
        %s644 = smul.u32 8, %s32
        %p645 = scmp.lt.s32.totalorder %s33, 1
        %s646 = scalar_select %p645, %s33, 1
        %s647 = smul.addr %s646, 4
        %s648 = smul.addr %s647, 4
        %s649 = scalar_lea.vmem %s2, %s648
        %p650 = scmp.lt.s32.totalorder %s33, 1
        %s651 = scalar_select %p650, %s33, 1
        %s652 = scalar_lea.vmem %s3, %s651
        %p653 = scmp.lt.s32.totalorder %s33, 1
        %s654 = scalar_select %p653, %s33, 1
        %s655 = smul.addr %s654, 4
        %s656 = smul.addr %s655, 4
        %s657 = scalar_lea.vmem %s4, %s656
        %p658 = scmp.lt.s32.totalorder %s33, 1
        %s659 = scalar_select %p658, %s33, 1
        %s660 = scalar_lea.vmem %s5, %s659
        %p661 = scmp.lt.s32.totalorder %s33, 1
        %s662 = scalar_select %p661, %s33, 1
        %s663 = scalar_lea.vmem %s6, %s662
        %p664 = scmp.lt.s32.totalorder %s33, 1
        %s665 = scalar_select %p664, %s33, 1
        %s666 = scalar_lea.vmem %s7, %s665
        %p667 = scmp.lt.s32.totalorder %s33, 1
        %s668 = scalar_select %p667, %s33, 1
        %s669 = smul.addr %s668, 4
        %s670 = smul.addr %s669, 4
        %s671 = scalar_lea.vmem %s8, %s670
        %p672 = scmp.lt.s32.totalorder %s33, 1
        %s673 = scalar_select %p672, %s33, 1
        %s674 = scalar_lea.vmem %s9, %s673
        %p675 = scmp.lt.s32.totalorder %s33, 1
        %s676 = scalar_select %p675, %s33, 1
        %s677 = smul.addr %s676, 8
        %s678 = smul.addr %s677, 4
        %s679 = scalar_lea.vmem %s10, %s678
        %p680 = scmp.lt.s32.totalorder %s33, 1
        %s681 = scalar_select %p680, %s33, 1
        %s682 = scalar_lea.vmem %s11, %s681
        %p683 = scmp.lt.s32.totalorder %s33, 1
        %s684 = scalar_select %p683, %s33, 1
        %s685 = scalar_lea.vmem %s12, %s684
        %p686 = scmp.lt.s32.totalorder %s33, 1
        %s687 = scalar_select %p686, %s33, 1
        %s688 = scalar_lea.vmem %s13, %s687
        %p690 = scmp.eq.s32.totalorder %s33, 0
        // Predicated region
        $region77: #{encoder_forward.1} parent=75 // pred_check
          %p691 = pneg %p690
        $region78: #{encoder_forward.1} parent=75 // pred_check_branch
          %693 = sbr.rel (%p691) target = $region80
        $region79: #{encoder_forward.1} parent=75 // pred_region
          %v694 = vld [vmem:[%s643] sm:$0xff]
          %v695 = vld [vmem:[%s643 + $0x8] sm:$0xff]
          %v696 = vld [vmem:[%s643 + $0x10] sm:$0xff]
          %v697 = vld [vmem:[%s643 + $0x18] sm:$0xff]
          %v698 = vld [vmem:[%s643 + $0x20] sm:$0xff]
          %v699 = vld [vmem:[%s643 + $0x28] sm:$0xff]
          %v700 = vld [vmem:[%s643 + $0x30] sm:$0xff]
          %v701 = vld [vmem:[%s643 + $0x38] sm:$0xff]
          %vm702 = vcmask 261120
          %703 = vst.msk [vmem:[#allocation2] sm:$0xff] %vm702, %v694
          %704 = vst.msk [vmem:[#allocation2 + $0x8] sm:$0xff] %vm702, %v695
          %705 = vst.msk [vmem:[#allocation2 + $0x10] sm:$0xff] %vm702, %v696
          %706 = vst.msk [vmem:[#allocation2 + $0x18] sm:$0xff] %vm702, %v697
          %707 = vst.msk [vmem:[#allocation2 + $0x20] sm:$0xff] %vm702, %v698
          %708 = vst.msk [vmem:[#allocation2 + $0x28] sm:$0xff] %vm702, %v699
          %709 = vst.msk [vmem:[#allocation2 + $0x30] sm:$0xff] %vm702, %v700
          %710 = vst.msk [vmem:[#allocation2 + $0x38] sm:$0xff] %vm702, %v701
          %v711 = vld [vmem:[%s638] sm:$0xff]
          %vm712 = vcmp.eq.s32.totalorder %v711, 0
          %v713 = vsel %vm712, -1e+09, 0.0
          %v714 = vlaneseq
          %v715 = vshrl.u32 %v714, 7
          %v716 = vlaneseq
          %v717 = vand.u32 %v716, 127
          %vm718 = vcmp.gt.s32.totalorder %v717, %v715
          %v719 = vsel %vm718, -1e+09, 0.0
          %v721 = vcombine.high %v713, %v713
          %v723 = vunpack.c.l.s4 1966171168
          %v724 = vunpack.c.0.s8 %v723
          %v725 = vlaneseq
          %v726 = vshrl.u32 %v725, 7
          %v727 = vsub.s32 %v724, %v726
          %v728 = vrot.slane %v713, %v727
          %v730 = vunpack.c.l.s4 1966171168
          %v731 = vunpack.c.0.s8 %v730
          %v732 = vlaneseq
          %v733 = vshrl.u32 %v732, 7
          %v734 = vsub.s32 %v731, %v733
          %v735 = vrot.slane %v721, %v734
          %v736 = vcombine.high %v728, %v728
          %v737 = vcombine.high %v735, %v735
          %v739 = vunpack.c.l.s4 1966171168
          %v740 = vunpack.c.0.s8 %v739
          %v741 = vlaneseq
          %v742 = vshrl.u32 %v741, 7
          %v743 = vsub.s32 %v740, %v742
          %v744 = vrot.slane %v728, %v743
          %v746 = vunpack.c.l.s4 1966171168
          %v747 = vunpack.c.0.s8 %v746
          %v748 = vlaneseq
          %v749 = vshrl.u32 %v748, 7
          %v750 = vsub.s32 %v747, %v749
          %v751 = vrot.slane %v735, %v750
          %v753 = vunpack.c.l.s4 1966171168
          %v754 = vunpack.c.0.s8 %v753
          %v755 = vlaneseq
          %v756 = vshrl.u32 %v755, 7
          %v757 = vsub.s32 %v754, %v756
          %v758 = vrot.slane %v736, %v757
          %v760 = vunpack.c.l.s4 1966171168
          %v761 = vunpack.c.0.s8 %v760
          %v762 = vlaneseq
          %v763 = vshrl.u32 %v762, 7
          %v764 = vsub.s32 %v761, %v763
          %v765 = vrot.slane %v737, %v764
          %v766 = vcombine.high %v744, %v744
          %v767 = vcombine.high %v751, %v751
          %v768 = vcombine.high %v758, %v758
          %v769 = vcombine.high %v765, %v765
          %v770 = vlaneseq
          %v771 = vshrl.u32 %v770, 7
          %v772 = vsub.s32 0, %v771
          %v773 = vrot.slane %v744, %v772
          %v774 = vlaneseq
          %v775 = vshrl.u32 %v774, 7
          %v776 = vsub.s32 0, %v775
          %v777 = vrot.slane %v758, %v776
          %v778 = vlaneseq
          %v779 = vshrl.u32 %v778, 7
          %v780 = vsub.s32 0, %v779
          %v781 = vrot.slane %v766, %v780
          %v782 = vlaneseq
          %v783 = vshrl.u32 %v782, 7
          %v784 = vsub.s32 0, %v783
          %v785 = vrot.slane %v768, %v784
          %v786 = vlaneseq
          %v787 = vshrl.u32 %v786, 7
          %v788 = vsub.s32 0, %v787
          %v789 = vrot.slane %v751, %v788
          %v790 = vlaneseq
          %v791 = vshrl.u32 %v790, 7
          %v792 = vsub.s32 0, %v791
          %v793 = vrot.slane %v765, %v792
          %v794 = vlaneseq
          %v795 = vshrl.u32 %v794, 7
          %v796 = vsub.s32 0, %v795
          %v797 = vrot.slane %v767, %v796
          %v798 = vlaneseq
          %v799 = vshrl.u32 %v798, 7
          %v800 = vsub.s32 0, %v799
          %v801 = vrot.slane %v769, %v800
          %v810 = vmin.f32 %v773, %v719
          %v811 = vmin.f32 %v777, %v719
          %v812 = vmin.f32 %v781, %v719
          %v813 = vmin.f32 %v785, %v719
          %v814 = vmin.f32 %v789, %v719
          %v815 = vmin.f32 %v793, %v719
          %v816 = vmin.f32 %v797, %v719
          %v817 = vmin.f32 %v801, %v719
          %vm818 = vcmask 64512
          %819 = vst.msk [vmem:[#allocation3] sm:$0xff] %vm818, %v810
          %820 = vst.msk [vmem:[#allocation3 + $0x8] sm:$0xff] %vm818, %v811
          %821 = vst.msk [vmem:[#allocation3 + $0x10] sm:$0xff] %vm818, %v812
          %822 = vst.msk [vmem:[#allocation3 + $0x18] sm:$0xff] %vm818, %v813
          %823 = vst.msk [vmem:[#allocation3 + $0x20] sm:$0xff] %vm818, %v814
          %824 = vst.msk [vmem:[#allocation3 + $0x28] sm:$0xff] %vm818, %v815
          %825 = vst.msk [vmem:[#allocation3 + $0x30] sm:$0xff] %vm818, %v816
          %826 = vst.msk [vmem:[#allocation3 + $0x38] sm:$0xff] %vm818, %v817
        $region80: #{encoder_forward.1} parent=75 // pred_fallthru
          _
        %v827 = vld [vmem:[#allocation2] sm:$0xff]
        %v828 = vld [vmem:[#allocation2 + $0x8] sm:$0xff]
        %v829 = vld [vmem:[#allocation2 + $0x10] sm:$0xff]
        %v830 = vld [vmem:[#allocation2 + $0x18] sm:$0xff]
        %v831 = vld [vmem:[#allocation2 + $0x20] sm:$0xff]
        %v832 = vld [vmem:[#allocation2 + $0x28] sm:$0xff]
        %v833 = vld [vmem:[#allocation2 + $0x30] sm:$0xff]
        %v834 = vld [vmem:[#allocation2 + $0x38] sm:$0xff]
        %v835 = vld [vmem:[#allocation3] sm:$0xff]
        %v836 = vld [vmem:[#allocation3 + $0x8] sm:$0xff]
        %v837 = vld [vmem:[#allocation3 + $0x10] sm:$0xff]
        %v838 = vld [vmem:[#allocation3 + $0x18] sm:$0xff]
        %v839 = vld [vmem:[#allocation3 + $0x20] sm:$0xff]
        %v840 = vld [vmem:[#allocation3 + $0x28] sm:$0xff]
        %v841 = vld [vmem:[#allocation3 + $0x30] sm:$0xff]
        %v842 = vld [vmem:[#allocation3 + $0x38] sm:$0xff]
        %v843 = vpack.c.bf16 %v828, %v827
        %v844 = vpack.c.bf16 %v830, %v829
        %v845 = vpack.c.bf16 %v832, %v831
        %v846 = vpack.c.bf16 %v834, %v833
        %v847 = vld [vmem:[%s649] sm:$0xf]
        %v848 = vld [vmem:[%s649 + $0x4] sm:$0xf]
        %v849 = vld [vmem:[%s649 + $0x8] sm:$0xf]
        %v850 = vld [vmem:[%s649 + $0xc] sm:$0xf]
        %v851 = vld [vmem:[%s652] sm:$0x1]
        %v853 = vlaneseq
        %v854 = vshrl.u32 %v853, 7
        %v855 = vsub.s32 0, %v854
        %v856 = vrot.slane %v851, %v855
        %v862 = vunpack.c.l.b16 %v847
        %v863 = vunpack.c.l.b16 %v848
        %v864 = vunpack.c.l.b16 %v849
        %v865 = vunpack.c.l.b16 %v850
        %v866 = vpack.c.b16 %v863, %v862
        %v867 = vpack.c.b16 %v865, %v864
        %vm870 = vcmask 261120
        %v872 = vsel %vm870, %v843, 0
        %v875 = vsel %vm870, %v844, 0
        %v878 = vsel %vm870, %v845, 0
        %v881 = vsel %vm870, %v846, 0
        %883 = vmatprep.subr.bf16.mxu0 0
        %884 = vmatpush1.bf16.msra.mxu0 0
        %885 = vmatprep.subr.bf16.mxu0 0
        %886 = vmatpush1.bf16.msra.mxu0 0
        %887 = vmatprep.subr.bf16.mxu0 0
        %888 = vmatpush1.bf16.msra.mxu0 0
        %889 = vmatprep.subr.bf16.mxu0 0
        %890 = vmatpush1.bf16.msra.mxu0 0
        %891 = vmatprep.subr.bf16.mxu0 0
        %892 = vmatpush1.bf16.msra.mxu0 0
        %893 = vmatprep.subr.bf16.mxu0 0
        %894 = vmatpush1.bf16.msra.mxu0 0
        %895 = vmatprep.subr.bf16.mxu0 0
        %896 = vmatpush1.bf16.msra.mxu0 %v867
        %897 = vmatprep.subr.bf16.mxu0 0
        %898 = vmatpush1.bf16.msra.mxu0 %v866
        %899 = vmatprep.subr.bf16.mxu0 0
        %900 = vmatpush2.bf16.msra.mxu0 0
        %901 = vmatprep.subr.bf16.mxu0 0
        %902 = vmatpush2.bf16.msra.mxu0 0
        %903 = vmatprep.subr.bf16.mxu0 0
        %904 = vmatpush2.bf16.msra.mxu0 0
        %905 = vmatprep.subr.bf16.mxu0 0
        %906 = vmatpush2.bf16.msra.mxu0 0
        %907 = vmatprep.subr.bf16.mxu0 0
        %908 = vmatpush2.bf16.msra.mxu0 0
        %909 = vmatprep.subr.bf16.mxu0 0
        %910 = vmatpush2.bf16.msra.mxu0 0
        %911 = vmatprep.subr.bf16.mxu0 0
        %912 = vmatpush2.bf16.msra.mxu0 0
        %913 = vmatprep.subr.bf16.mxu0 0
        %914 = vmatpush2.bf16.msra.mxu0 0
        %915 = vmatprep.mubr.bf16.mxu0 0
        %916 = vmatmul.mubr.bf16.gmra.mxu0 %v872
        %v917 = vpop.f32.mrf.mxu0
        %v918 = vadd.f32 %v856, %v917
        %v919 = vpop.f32.mrf.mxu0
        %v920 = vpop.f32.mrf.mxu0
        %v921 = vadd.f32 %v856, %v920
        %v922 = vpop.f32.mrf.mxu0
        %923 = vmatprep.mubr.bf16.mxu0 0
        %924 = vmatmul.mubr.bf16.gmra.mxu0 %v875
        %v925 = vpop.f32.mrf.mxu0
        %v926 = vadd.f32 %v856, %v925
        %v927 = vpop.f32.mrf.mxu0
        %v928 = vpop.f32.mrf.mxu0
        %v929 = vadd.f32 %v856, %v928
        %v930 = vpop.f32.mrf.mxu0
        %931 = vmatprep.mubr.bf16.mxu0 0
        %932 = vmatmul.mubr.bf16.gmra.mxu0 %v878
        %v933 = vpop.f32.mrf.mxu0
        %v934 = vadd.f32 %v856, %v933
        %v935 = vpop.f32.mrf.mxu0
        %v936 = vpop.f32.mrf.mxu0
        %v937 = vadd.f32 %v856, %v936
        %v938 = vpop.f32.mrf.mxu0
        %939 = vmatprep.mubr.bf16.mxu0 0
        %940 = vmatmul.mubr.bf16.gmra.mxu0 %v881
        %v941 = vpop.f32.mrf.mxu0
        %v942 = vadd.f32 %v856, %v941
        %v943 = vpop.f32.mrf.mxu0
        %v944 = vpop.f32.mrf.mxu0
        %v945 = vadd.f32 %v856, %v944
        %v946 = vpop.f32.mrf.mxu0
        %947 = vdwg.mxu0
        %v948 = vpack.c.bf16 %v918, %v918
        %v949 = vpack.c.bf16 %v921, %v921
        %v950 = vpack.c.bf16 %v926, %v926
        %v951 = vpack.c.bf16 %v929, %v929
        %v952 = vpack.c.bf16 %v934, %v934
        %v953 = vpack.c.bf16 %v937, %v937
        %v954 = vpack.c.bf16 %v942, %v942
        %v955 = vpack.c.bf16 %v945, %v945
        %957 = vrot.lane.b32.xlu0 %v948, 96
        %v958 = vpop.permute.xlu0 %957
        %vm959 = vcmask 64512
        %v961 = vsel %vm959, %v948, 0
        %v964 = vsel %vm959, %v958, 0
        %966 = vmatprep.subr.bf16.mxu0 0
        %967 = vmatpush1.bf16.xpose.msra.mxu0 0
        %968 = vmatprep.subr.bf16.mxu0 0
        %969 = vmatpush1.bf16.xpose.msra.mxu0 0
        %970 = vmatprep.subr.bf16.mxu0 0
        %971 = vmatpush1.bf16.xpose.msra.mxu0 0
        %972 = vmatprep.subr.bf16.mxu0 0
        %973 = vmatpush1.bf16.xpose.msra.mxu0 0
        %974 = vmatprep.subr.bf16.mxu0 0
        %975 = vmatpush1.bf16.xpose.msra.mxu0 0
        %976 = vmatprep.subr.bf16.mxu0 0
        %977 = vmatpush1.bf16.xpose.msra.mxu0 0
        %978 = vmatprep.subr.bf16.mxu0 0
        %979 = vmatpush1.bf16.xpose.msra.mxu0 0
        %980 = vmatprep.subr.bf16.mxu0 0
        %981 = vmatpush1.bf16.xpose.msra.mxu0 %v964
        %982 = vmatprep.subr.bf16.mxu0 0
        %983 = vmatpush2.bf16.xpose.msra.mxu0 0
        %984 = vmatprep.subr.bf16.mxu0 0
        %985 = vmatpush2.bf16.xpose.msra.mxu0 0
        %986 = vmatprep.subr.bf16.mxu0 0
        %987 = vmatpush2.bf16.xpose.msra.mxu0 0
        %988 = vmatprep.subr.bf16.mxu0 0
        %989 = vmatpush2.bf16.xpose.msra.mxu0 0
        %990 = vmatprep.subr.bf16.mxu0 0
        %991 = vmatpush2.bf16.xpose.msra.mxu0 0
        %992 = vmatprep.subr.bf16.mxu0 0
        %993 = vmatpush2.bf16.xpose.msra.mxu0 0
        %994 = vmatprep.subr.bf16.mxu0 0
        %995 = vmatpush2.bf16.xpose.msra.mxu0 0
        %996 = vmatprep.subr.bf16.mxu0 0
        %997 = vmatpush2.bf16.xpose.msra.mxu0 0
        %998 = vmatprep.mubr.bf16.mxu0 0
        %999 = vmatmul.mubr.bf16.gmra.mxu0 %v961
        %v1000 = vpop.f32.mrf.mxu0
        %v1001 = vadd.f32 %v835, %v1000
        %v1002 = vpop.f32.mrf.mxu0
        %v1003 = vpop.f32.mrf.mxu0
        %v1004 = vpop.f32.mrf.mxu0
        %1005 = vdwg.mxu0
        %1007 = vrot.lane.b32.xlu0 %v949, 96
        %v1008 = vpop.permute.xlu0 %1007
        %v1010 = vsel %vm959, %v949, 0
        %v1013 = vsel %vm959, %v1008, 0
        %1015 = vmatprep.subr.bf16.mxu0 0
        %1016 = vmatpush1.bf16.xpose.msra.mxu0 0
        %1017 = vmatprep.subr.bf16.mxu0 0
        %1018 = vmatpush1.bf16.xpose.msra.mxu0 0
        %1019 = vmatprep.subr.bf16.mxu0 0
        %1020 = vmatpush1.bf16.xpose.msra.mxu0 0
        %1021 = vmatprep.subr.bf16.mxu0 0
        %1022 = vmatpush1.bf16.xpose.msra.mxu0 0
        %1023 = vmatprep.subr.bf16.mxu0 0
        %1024 = vmatpush1.bf16.xpose.msra.mxu0 0
        %1025 = vmatprep.subr.bf16.mxu0 0
        %1026 = vmatpush1.bf16.xpose.msra.mxu0 0
        %1027 = vmatprep.subr.bf16.mxu0 0
        %1028 = vmatpush1.bf16.xpose.msra.mxu0 0
        %1029 = vmatprep.subr.bf16.mxu0 0
        %1030 = vmatpush1.bf16.xpose.msra.mxu0 %v1013
        %1031 = vmatprep.subr.bf16.mxu0 0
        %1032 = vmatpush2.bf16.xpose.msra.mxu0 0
        %1033 = vmatprep.subr.bf16.mxu0 0
        %1034 = vmatpush2.bf16.xpose.msra.mxu0 0
        %1035 = vmatprep.subr.bf16.mxu0 0
        %1036 = vmatpush2.bf16.xpose.msra.mxu0 0
        %1037 = vmatprep.subr.bf16.mxu0 0
        %1038 = vmatpush2.bf16.xpose.msra.mxu0 0
        %1039 = vmatprep.subr.bf16.mxu0 0
        %1040 = vmatpush2.bf16.xpose.msra.mxu0 0
        %1041 = vmatprep.subr.bf16.mxu0 0
        %1042 = vmatpush2.bf16.xpose.msra.mxu0 0
        %1043 = vmatprep.subr.bf16.mxu0 0
        %1044 = vmatpush2.bf16.xpose.msra.mxu0 0
        %1045 = vmatprep.subr.bf16.mxu0 0
        %1046 = vmatpush2.bf16.xpose.msra.mxu0 0
        %1047 = vmatprep.mubr.bf16.mxu0 0
        %1048 = vmatmul.mubr.bf16.gmra.mxu0 %v1010
        %v1049 = vpop.f32.mrf.mxu0
        %v1050 = vadd.f32 %v836, %v1049
        %v1051 = vpop.f32.mrf.mxu0
        %v1052 = vpop.f32.mrf.mxu0
        %v1053 = vpop.f32.mrf.mxu0
        %1054 = vdwg.mxu0
        %1056 = vrot.lane.b32.xlu0 %v950, 96
        %v1057 = vpop.permute.xlu0 %1056
        %v1059 = vsel %vm959, %v950, 0
        %v1062 = vsel %vm959, %v1057, 0
        %1064 = vmatprep.subr.bf16.mxu0 0
        %1065 = vmatpush1.bf16.xpose.msra.mxu0 0
        %1066 = vmatprep.subr.bf16.mxu0 0
        %1067 = vmatpush1.bf16.xpose.msra.mxu0 0
        %1068 = vmatprep.subr.bf16.mxu0 0
        %1069 = vmatpush1.bf16.xpose.msra.mxu0 0
        %1070 = vmatprep.subr.bf16.mxu0 0
        %1071 = vmatpush1.bf16.xpose.msra.mxu0 0
        %1072 = vmatprep.subr.bf16.mxu0 0
        %1073 = vmatpush1.bf16.xpose.msra.mxu0 0
        %1074 = vmatprep.subr.bf16.mxu0 0
        %1075 = vmatpush1.bf16.xpose.msra.mxu0 0
        %1076 = vmatprep.subr.bf16.mxu0 0
        %1077 = vmatpush1.bf16.xpose.msra.mxu0 0
        %1078 = vmatprep.subr.bf16.mxu0 0
        %1079 = vmatpush1.bf16.xpose.msra.mxu0 %v1062
        %1080 = vmatprep.subr.bf16.mxu0 0
        %1081 = vmatpush2.bf16.xpose.msra.mxu0 0
        %1082 = vmatprep.subr.bf16.mxu0 0
        %1083 = vmatpush2.bf16.xpose.msra.mxu0 0
        %1084 = vmatprep.subr.bf16.mxu0 0
        %1085 = vmatpush2.bf16.xpose.msra.mxu0 0
        %1086 = vmatprep.subr.bf16.mxu0 0
        %1087 = vmatpush2.bf16.xpose.msra.mxu0 0
        %1088 = vmatprep.subr.bf16.mxu0 0
        %1089 = vmatpush2.bf16.xpose.msra.mxu0 0
        %1090 = vmatprep.subr.bf16.mxu0 0
        %1091 = vmatpush2.bf16.xpose.msra.mxu0 0
        %1092 = vmatprep.subr.bf16.mxu0 0
        %1093 = vmatpush2.bf16.xpose.msra.mxu0 0
        %1094 = vmatprep.subr.bf16.mxu0 0
        %1095 = vmatpush2.bf16.xpose.msra.mxu0 0
        %1096 = vmatprep.mubr.bf16.mxu0 0
        %1097 = vmatmul.mubr.bf16.gmra.mxu0 %v1059
        %v1098 = vpop.f32.mrf.mxu0
        %v1099 = vadd.f32 %v837, %v1098
        %v1100 = vpop.f32.mrf.mxu0
        %v1101 = vpop.f32.mrf.mxu0
        %v1102 = vpop.f32.mrf.mxu0
        %1103 = vdwg.mxu0
        %1105 = vrot.lane.b32.xlu0 %v951, 96
        %v1106 = vpop.permute.xlu0 %1105
        %v1108 = vsel %vm959, %v951, 0
        %v1111 = vsel %vm959, %v1106, 0
        %1113 = vmatprep.subr.bf16.mxu0 0
        %1114 = vmatpush1.bf16.xpose.msra.mxu0 0
        %1115 = vmatprep.subr.bf16.mxu0 0
        %1116 = vmatpush1.bf16.xpose.msra.mxu0 0
        %1117 = vmatprep.subr.bf16.mxu0 0
        %1118 = vmatpush1.bf16.xpose.msra.mxu0 0
        %1119 = vmatprep.subr.bf16.mxu0 0
        %1120 = vmatpush1.bf16.xpose.msra.mxu0 0
        %1121 = vmatprep.subr.bf16.mxu0 0
        %1122 = vmatpush1.bf16.xpose.msra.mxu0 0
        %1123 = vmatprep.subr.bf16.mxu0 0
        %1124 = vmatpush1.bf16.xpose.msra.mxu0 0
        %1125 = vmatprep.subr.bf16.mxu0 0
        %1126 = vmatpush1.bf16.xpose.msra.mxu0 0
        %1127 = vmatprep.subr.bf16.mxu0 0
        %1128 = vmatpush1.bf16.xpose.msra.mxu0 %v1111
        %1129 = vmatprep.subr.bf16.mxu0 0
        %1130 = vmatpush2.bf16.xpose.msra.mxu0 0
        %1131 = vmatprep.subr.bf16.mxu0 0
        %1132 = vmatpush2.bf16.xpose.msra.mxu0 0
        %1133 = vmatprep.subr.bf16.mxu0 0
        %1134 = vmatpush2.bf16.xpose.msra.mxu0 0
        %1135 = vmatprep.subr.bf16.mxu0 0
        %1136 = vmatpush2.bf16.xpose.msra.mxu0 0
        %1137 = vmatprep.subr.bf16.mxu0 0
        %1138 = vmatpush2.bf16.xpose.msra.mxu0 0
        %1139 = vmatprep.subr.bf16.mxu0 0
        %1140 = vmatpush2.bf16.xpose.msra.mxu0 0
        %1141 = vmatprep.subr.bf16.mxu0 0
        %1142 = vmatpush2.bf16.xpose.msra.mxu0 0
        %1143 = vmatprep.subr.bf16.mxu0 0
        %1144 = vmatpush2.bf16.xpose.msra.mxu0 0
        %1145 = vmatprep.mubr.bf16.mxu0 0
        %1146 = vmatmul.mubr.bf16.gmra.mxu0 %v1108
        %v1147 = vpop.f32.mrf.mxu0
        %v1148 = vadd.f32 %v838, %v1147
        %v1149 = vpop.f32.mrf.mxu0
        %v1150 = vpop.f32.mrf.mxu0
        %v1151 = vpop.f32.mrf.mxu0
        %1152 = vdwg.mxu0
        %1154 = vrot.lane.b32.xlu0 %v952, 96
        %v1155 = vpop.permute.xlu0 %1154
        %v1157 = vsel %vm959, %v952, 0
        %v1160 = vsel %vm959, %v1155, 0
        %1162 = vmatprep.subr.bf16.mxu0 0
        %1163 = vmatpush1.bf16.xpose.msra.mxu0 0
        %1164 = vmatprep.subr.bf16.mxu0 0
        %1165 = vmatpush1.bf16.xpose.msra.mxu0 0
        %1166 = vmatprep.subr.bf16.mxu0 0
        %1167 = vmatpush1.bf16.xpose.msra.mxu0 0
        %1168 = vmatprep.subr.bf16.mxu0 0
        %1169 = vmatpush1.bf16.xpose.msra.mxu0 0
        %1170 = vmatprep.subr.bf16.mxu0 0
        %1171 = vmatpush1.bf16.xpose.msra.mxu0 0
        %1172 = vmatprep.subr.bf16.mxu0 0
        %1173 = vmatpush1.bf16.xpose.msra.mxu0 0
        %1174 = vmatprep.subr.bf16.mxu0 0
        %1175 = vmatpush1.bf16.xpose.msra.mxu0 0
        %1176 = vmatprep.subr.bf16.mxu0 0
        %1177 = vmatpush1.bf16.xpose.msra.mxu0 %v1160
        %1178 = vmatprep.subr.bf16.mxu0 0
        %1179 = vmatpush2.bf16.xpose.msra.mxu0 0
        %1180 = vmatprep.subr.bf16.mxu0 0
        %1181 = vmatpush2.bf16.xpose.msra.mxu0 0
        %1182 = vmatprep.subr.bf16.mxu0 0
        %1183 = vmatpush2.bf16.xpose.msra.mxu0 0
        %1184 = vmatprep.subr.bf16.mxu0 0
        %1185 = vmatpush2.bf16.xpose.msra.mxu0 0
        %1186 = vmatprep.subr.bf16.mxu0 0
        %1187 = vmatpush2.bf16.xpose.msra.mxu0 0
        %1188 = vmatprep.subr.bf16.mxu0 0
        %1189 = vmatpush2.bf16.xpose.msra.mxu0 0
        %1190 = vmatprep.subr.bf16.mxu0 0
        %1191 = vmatpush2.bf16.xpose.msra.mxu0 0
        %1192 = vmatprep.subr.bf16.mxu0 0
        %1193 = vmatpush2.bf16.xpose.msra.mxu0 0
        %1194 = vmatprep.mubr.bf16.mxu0 0
        %1195 = vmatmul.mubr.bf16.gmra.mxu0 %v1157
        %v1196 = vpop.f32.mrf.mxu0
        %v1197 = vadd.f32 %v839, %v1196
        %v1198 = vpop.f32.mrf.mxu0
        %v1199 = vpop.f32.mrf.mxu0
        %v1200 = vpop.f32.mrf.mxu0
        %1201 = vdwg.mxu0
        %1203 = vrot.lane.b32.xlu0 %v953, 96
        %v1204 = vpop.permute.xlu0 %1203
        %v1206 = vsel %vm959, %v953, 0
        %v1209 = vsel %vm959, %v1204, 0
        %1211 = vmatprep.subr.bf16.mxu0 0
        %1212 = vmatpush1.bf16.xpose.msra.mxu0 0
        %1213 = vmatprep.subr.bf16.mxu0 0
        %1214 = vmatpush1.bf16.xpose.msra.mxu0 0
        %1215 = vmatprep.subr.bf16.mxu0 0
        %1216 = vmatpush1.bf16.xpose.msra.mxu0 0
        %1217 = vmatprep.subr.bf16.mxu0 0
        %1218 = vmatpush1.bf16.xpose.msra.mxu0 0
        %1219 = vmatprep.subr.bf16.mxu0 0
        %1220 = vmatpush1.bf16.xpose.msra.mxu0 0
        %1221 = vmatprep.subr.bf16.mxu0 0
        %1222 = vmatpush1.bf16.xpose.msra.mxu0 0
        %1223 = vmatprep.subr.bf16.mxu0 0
        %1224 = vmatpush1.bf16.xpose.msra.mxu0 0
        %1225 = vmatprep.subr.bf16.mxu0 0
        %1226 = vmatpush1.bf16.xpose.msra.mxu0 %v1209
        %1227 = vmatprep.subr.bf16.mxu0 0
        %1228 = vmatpush2.bf16.xpose.msra.mxu0 0
        %1229 = vmatprep.subr.bf16.mxu0 0
        %1230 = vmatpush2.bf16.xpose.msra.mxu0 0
        %1231 = vmatprep.subr.bf16.mxu0 0
        %1232 = vmatpush2.bf16.xpose.msra.mxu0 0
        %1233 = vmatprep.subr.bf16.mxu0 0
        %1234 = vmatpush2.bf16.xpose.msra.mxu0 0
        %1235 = vmatprep.subr.bf16.mxu0 0
        %1236 = vmatpush2.bf16.xpose.msra.mxu0 0
        %1237 = vmatprep.subr.bf16.mxu0 0
        %1238 = vmatpush2.bf16.xpose.msra.mxu0 0
        %1239 = vmatprep.subr.bf16.mxu0 0
        %1240 = vmatpush2.bf16.xpose.msra.mxu0 0
        %1241 = vmatprep.subr.bf16.mxu0 0
        %1242 = vmatpush2.bf16.xpose.msra.mxu0 0
        %1243 = vmatprep.mubr.bf16.mxu0 0
        %1244 = vmatmul.mubr.bf16.gmra.mxu0 %v1206
        %v1245 = vpop.f32.mrf.mxu0
        %v1246 = vadd.f32 %v840, %v1245
        %v1247 = vpop.f32.mrf.mxu0
        %v1248 = vpop.f32.mrf.mxu0
        %v1249 = vpop.f32.mrf.mxu0
        %1250 = vdwg.mxu0
        %1252 = vrot.lane.b32.xlu0 %v954, 96
        %v1253 = vpop.permute.xlu0 %1252
        %v1255 = vsel %vm959, %v954, 0
        %v1258 = vsel %vm959, %v1253, 0
        %1260 = vmatprep.subr.bf16.mxu0 0
        %1261 = vmatpush1.bf16.xpose.msra.mxu0 0
        %1262 = vmatprep.subr.bf16.mxu0 0
        %1263 = vmatpush1.bf16.xpose.msra.mxu0 0
        %1264 = vmatprep.subr.bf16.mxu0 0
        %1265 = vmatpush1.bf16.xpose.msra.mxu0 0
        %1266 = vmatprep.subr.bf16.mxu0 0
        %1267 = vmatpush1.bf16.xpose.msra.mxu0 0
        %1268 = vmatprep.subr.bf16.mxu0 0
        %1269 = vmatpush1.bf16.xpose.msra.mxu0 0
        %1270 = vmatprep.subr.bf16.mxu0 0
        %1271 = vmatpush1.bf16.xpose.msra.mxu0 0
        %1272 = vmatprep.subr.bf16.mxu0 0
        %1273 = vmatpush1.bf16.xpose.msra.mxu0 0
        %1274 = vmatprep.subr.bf16.mxu0 0
        %1275 = vmatpush1.bf16.xpose.msra.mxu0 %v1258
        %1276 = vmatprep.subr.bf16.mxu0 0
        %1277 = vmatpush2.bf16.xpose.msra.mxu0 0
        %1278 = vmatprep.subr.bf16.mxu0 0
        %1279 = vmatpush2.bf16.xpose.msra.mxu0 0
        %1280 = vmatprep.subr.bf16.mxu0 0
        %1281 = vmatpush2.bf16.xpose.msra.mxu0 0
        %1282 = vmatprep.subr.bf16.mxu0 0
        %1283 = vmatpush2.bf16.xpose.msra.mxu0 0
        %1284 = vmatprep.subr.bf16.mxu0 0
        %1285 = vmatpush2.bf16.xpose.msra.mxu0 0
        %1286 = vmatprep.subr.bf16.mxu0 0
        %1287 = vmatpush2.bf16.xpose.msra.mxu0 0
        %1288 = vmatprep.subr.bf16.mxu0 0
        %1289 = vmatpush2.bf16.xpose.msra.mxu0 0
        %1290 = vmatprep.subr.bf16.mxu0 0
        %1291 = vmatpush2.bf16.xpose.msra.mxu0 0
        %1292 = vmatprep.mubr.bf16.mxu0 0
        %1293 = vmatmul.mubr.bf16.gmra.mxu0 %v1255
        %v1294 = vpop.f32.mrf.mxu0
        %v1295 = vadd.f32 %v841, %v1294
        %v1296 = vpop.f32.mrf.mxu0
        %v1297 = vpop.f32.mrf.mxu0
        %v1298 = vpop.f32.mrf.mxu0
        %1299 = vdwg.mxu0
        %1301 = vrot.lane.b32.xlu0 %v955, 96
        %v1302 = vpop.permute.xlu0 %1301
        %v1304 = vsel %vm959, %v955, 0
        %v1307 = vsel %vm959, %v1302, 0
        %1309 = vmatprep.subr.bf16.mxu0 0
        %1310 = vmatpush1.bf16.xpose.msra.mxu0 0
        %1311 = vmatprep.subr.bf16.mxu0 0
        %1312 = vmatpush1.bf16.xpose.msra.mxu0 0
        %1313 = vmatprep.subr.bf16.mxu0 0
        %1314 = vmatpush1.bf16.xpose.msra.mxu0 0
        %1315 = vmatprep.subr.bf16.mxu0 0
        %1316 = vmatpush1.bf16.xpose.msra.mxu0 0
        %1317 = vmatprep.subr.bf16.mxu0 0
        %1318 = vmatpush1.bf16.xpose.msra.mxu0 0
        %1319 = vmatprep.subr.bf16.mxu0 0
        %1320 = vmatpush1.bf16.xpose.msra.mxu0 0
        %1321 = vmatprep.subr.bf16.mxu0 0
        %1322 = vmatpush1.bf16.xpose.msra.mxu0 0
        %1323 = vmatprep.subr.bf16.mxu0 0
        %1324 = vmatpush1.bf16.xpose.msra.mxu0 %v1307
        %1325 = vmatprep.subr.bf16.mxu0 0
        %1326 = vmatpush2.bf16.xpose.msra.mxu0 0
        %1327 = vmatprep.subr.bf16.mxu0 0
        %1328 = vmatpush2.bf16.xpose.msra.mxu0 0
        %1329 = vmatprep.subr.bf16.mxu0 0
        %1330 = vmatpush2.bf16.xpose.msra.mxu0 0
        %1331 = vmatprep.subr.bf16.mxu0 0
        %1332 = vmatpush2.bf16.xpose.msra.mxu0 0
        %1333 = vmatprep.subr.bf16.mxu0 0
        %1334 = vmatpush2.bf16.xpose.msra.mxu0 0
        %1335 = vmatprep.subr.bf16.mxu0 0
        %1336 = vmatpush2.bf16.xpose.msra.mxu0 0
        %1337 = vmatprep.subr.bf16.mxu0 0
        %1338 = vmatpush2.bf16.xpose.msra.mxu0 0
        %1339 = vmatprep.subr.bf16.mxu0 0
        %1340 = vmatpush2.bf16.xpose.msra.mxu0 0
        %1341 = vmatprep.mubr.bf16.mxu0 0
        %1342 = vmatmul.mubr.bf16.gmra.mxu0 %v1304
        %v1343 = vpop.f32.mrf.mxu0
        %v1344 = vadd.f32 %v842, %v1343
        %v1345 = vpop.f32.mrf.mxu0
        %v1346 = vpop.f32.mrf.mxu0
        %v1347 = vpop.f32.mrf.mxu0
        %1348 = vdwg.mxu0
        %v1349 = vsel %vm959, %v1001, -inf
        %1350 = vmax.xlane.f32.xlu0 %v1349
        %v1351 = vpop.xlane.xlu0 %1350
        %v1352 = vsel %vm959, %v1050, -inf
        %1353 = vmax.xlane.f32.xlu0 %v1352
        %v1354 = vpop.xlane.xlu0 %1353
        %v1355 = vsel %vm959, %v1099, -inf
        %1356 = vmax.xlane.f32.xlu0 %v1355
        %v1357 = vpop.xlane.xlu0 %1356
        %v1358 = vsel %vm959, %v1148, -inf
        %1359 = vmax.xlane.f32.xlu0 %v1358
        %v1360 = vpop.xlane.xlu0 %1359
        %v1361 = vsel %vm959, %v1197, -inf
        %1362 = vmax.xlane.f32.xlu0 %v1361
        %v1363 = vpop.xlane.xlu0 %1362
        %v1364 = vsel %vm959, %v1246, -inf
        %1365 = vmax.xlane.f32.xlu0 %v1364
        %v1366 = vpop.xlane.xlu0 %1365
        %v1367 = vsel %vm959, %v1295, -inf
        %1368 = vmax.xlane.f32.xlu0 %v1367
        %v1369 = vpop.xlane.xlu0 %1368
        %v1370 = vsel %vm959, %v1344, -inf
        %1371 = vmax.xlane.f32.xlu0 %v1370
        %v1372 = vpop.xlane.xlu0 %1371
        %v1373 = vsub.f32 %v1001, %v1351
        %v1374 = vsub.f32 %v1050, %v1354
        %v1375 = vsub.f32 %v1099, %v1357
        %v1376 = vsub.f32 %v1148, %v1360
        %v1377 = vsub.f32 %v1197, %v1363
        %v1378 = vsub.f32 %v1246, %v1366
        %v1379 = vsub.f32 %v1295, %v1369
        %v1380 = vsub.f32 %v1344, %v1372
        %v1381 = vmul.f32 %v1373, 1.442695
        %v1382 = vpow.pop %v1381
        %v1383 = vmul.f32 %v1374, 1.442695
        %v1384 = vpow.pop %v1383
        %v1385 = vmul.f32 %v1375, 1.442695
        %v1386 = vpow.pop %v1385
        %v1387 = vmul.f32 %v1376, 1.442695
        %v1388 = vpow.pop %v1387
        %v1389 = vmul.f32 %v1377, 1.442695
        %v1390 = vpow.pop %v1389
        %v1391 = vmul.f32 %v1378, 1.442695
        %v1392 = vpow.pop %v1391
        %v1393 = vmul.f32 %v1379, 1.442695
        %v1394 = vpow.pop %v1393
        %v1395 = vmul.f32 %v1380, 1.442695
        %v1396 = vpow.pop %v1395
        %v1397 = vsel %vm959, %v1382, 0.0
        %1398 = vadd.xlane.f32.xlu0 %v1397
        %v1399 = vpop.xlane.xlu0 %1398
        %v1400 = vsel %vm959, %v1384, 0.0
        %1401 = vadd.xlane.f32.xlu0 %v1400
        %v1402 = vpop.xlane.xlu0 %1401
        %v1403 = vsel %vm959, %v1386, 0.0
        %1404 = vadd.xlane.f32.xlu0 %v1403
        %v1405 = vpop.xlane.xlu0 %1404
        %v1406 = vsel %vm959, %v1388, 0.0
        %1407 = vadd.xlane.f32.xlu0 %v1406
        %v1408 = vpop.xlane.xlu0 %1407
        %v1409 = vsel %vm959, %v1390, 0.0
        %1410 = vadd.xlane.f32.xlu0 %v1409
        %v1411 = vpop.xlane.xlu0 %1410
        %v1412 = vsel %vm959, %v1392, 0.0
        %1413 = vadd.xlane.f32.xlu0 %v1412
        %v1414 = vpop.xlane.xlu0 %1413
        %v1415 = vsel %vm959, %v1394, 0.0
        %1416 = vadd.xlane.f32.xlu0 %v1415
        %v1417 = vpop.xlane.xlu0 %1416
        %v1418 = vsel %vm959, %v1396, 0.0
        %1419 = vadd.xlane.f32.xlu0 %v1418
        %v1420 = vpop.xlane.xlu0 %1419
        %v1421 = vrcp.pop %v1399
        %v1422 = vrcp.pop %v1402
        %v1423 = vrcp.pop %v1405
        %v1424 = vrcp.pop %v1408
        %v1425 = vrcp.pop %v1411
        %v1426 = vrcp.pop %v1414
        %v1427 = vrcp.pop %v1417
        %v1428 = vrcp.pop %v1420
        %v1429 = vmul.f32 %v1382, %v1421
        %v1430 = vmul.f32 %v1384, %v1422
        %v1431 = vmul.f32 %v1386, %v1423
        %v1432 = vmul.f32 %v1388, %v1424
        %v1433 = vmul.f32 %v1390, %v1425
        %v1434 = vmul.f32 %v1392, %v1426
        %v1435 = vmul.f32 %v1394, %v1427
        %v1436 = vmul.f32 %v1396, %v1428
        %v1437 = vpack.c.bf16 %v1429, %v1429
        %v1438 = vpack.c.bf16 %v1430, %v1430
        %v1439 = vpack.c.bf16 %v1431, %v1431
        %v1440 = vpack.c.bf16 %v1432, %v1432
        %v1441 = vpack.c.bf16 %v1433, %v1433
        %v1442 = vpack.c.bf16 %v1434, %v1434
        %v1443 = vpack.c.bf16 %v1435, %v1435
        %v1444 = vpack.c.bf16 %v1436, %v1436
        %1445 = vrot.lane.b32.xlu0 %v948, 64
        %v1446 = vpop.permute.xlu0 %1445
        %v1448 = vsel %vm959, %v1437, 0
        %vm1450 = vcmask 1043456
        %v1452 = vsel %vm1450, %v1446, 0
        %1454 = vmatprep.subr.bf16.mxu0 0
        %1455 = vmatpush1.bf16.msra.mxu0 0
        %1456 = vmatprep.subr.bf16.mxu0 0
        %1457 = vmatpush1.bf16.msra.mxu0 0
        %1458 = vmatprep.subr.bf16.mxu0 0
        %1459 = vmatpush1.bf16.msra.mxu0 0
        %1460 = vmatprep.subr.bf16.mxu0 0
        %1461 = vmatpush1.bf16.msra.mxu0 0
        %1462 = vmatprep.subr.bf16.mxu0 0
        %1463 = vmatpush1.bf16.msra.mxu0 0
        %1464 = vmatprep.subr.bf16.mxu0 0
        %1465 = vmatpush1.bf16.msra.mxu0 0
        %1466 = vmatprep.subr.bf16.mxu0 0
        %1467 = vmatpush1.bf16.msra.mxu0 0
        %1468 = vmatprep.subr.bf16.mxu0 0
        %1469 = vmatpush1.bf16.msra.mxu0 %v1452
        %1470 = vmatprep.subr.bf16.mxu0 0
        %1471 = vmatpush2.bf16.msra.mxu0 0
        %1472 = vmatprep.subr.bf16.mxu0 0
        %1473 = vmatpush2.bf16.msra.mxu0 0
        %1474 = vmatprep.subr.bf16.mxu0 0
        %1475 = vmatpush2.bf16.msra.mxu0 0
        %1476 = vmatprep.subr.bf16.mxu0 0
        %1477 = vmatpush2.bf16.msra.mxu0 0
        %1478 = vmatprep.subr.bf16.mxu0 0
        %1479 = vmatpush2.bf16.msra.mxu0 0
        %1480 = vmatprep.subr.bf16.mxu0 0
        %1481 = vmatpush2.bf16.msra.mxu0 0
        %1482 = vmatprep.subr.bf16.mxu0 0
        %1483 = vmatpush2.bf16.msra.mxu0 0
        %1484 = vmatprep.subr.bf16.mxu0 0
        %1485 = vmatpush2.bf16.msra.mxu0 0
        %1486 = vmatprep.mubr.bf16.mxu0 0
        %1487 = vmatmul.mubr.bf16.gmra.mxu0 %v1448
        %v1488 = vpop.f32.mrf.mxu0
        %v1489 = vadd.f32 0.0, %v1488
        %v1490 = vpop.f32.mrf.mxu0
        %v1491 = vpop.f32.mrf.mxu0
        %v1492 = vpop.f32.mrf.mxu0
        %1493 = vdwg.mxu0
        %1494 = vrot.lane.b32.xlu0 %v949, 64
        %v1495 = vpop.permute.xlu0 %1494
        %v1497 = vsel %vm959, %v1438, 0
        %v1500 = vsel %vm1450, %v1495, 0
        %1502 = vmatprep.subr.bf16.mxu0 0
        %1503 = vmatpush1.bf16.msra.mxu0 0
        %1504 = vmatprep.subr.bf16.mxu0 0
        %1505 = vmatpush1.bf16.msra.mxu0 0
        %1506 = vmatprep.subr.bf16.mxu0 0
        %1507 = vmatpush1.bf16.msra.mxu0 0
        %1508 = vmatprep.subr.bf16.mxu0 0
        %1509 = vmatpush1.bf16.msra.mxu0 0
        %1510 = vmatprep.subr.bf16.mxu0 0
        %1511 = vmatpush1.bf16.msra.mxu0 0
        %1512 = vmatprep.subr.bf16.mxu0 0
        %1513 = vmatpush1.bf16.msra.mxu0 0
        %1514 = vmatprep.subr.bf16.mxu0 0
        %1515 = vmatpush1.bf16.msra.mxu0 0
        %1516 = vmatprep.subr.bf16.mxu0 0
        %1517 = vmatpush1.bf16.msra.mxu0 %v1500
        %1518 = vmatprep.subr.bf16.mxu0 0
        %1519 = vmatpush2.bf16.msra.mxu0 0
        %1520 = vmatprep.subr.bf16.mxu0 0
        %1521 = vmatpush2.bf16.msra.mxu0 0
        %1522 = vmatprep.subr.bf16.mxu0 0
        %1523 = vmatpush2.bf16.msra.mxu0 0
        %1524 = vmatprep.subr.bf16.mxu0 0
        %1525 = vmatpush2.bf16.msra.mxu0 0
        %1526 = vmatprep.subr.bf16.mxu0 0
        %1527 = vmatpush2.bf16.msra.mxu0 0
        %1528 = vmatprep.subr.bf16.mxu0 0
        %1529 = vmatpush2.bf16.msra.mxu0 0
        %1530 = vmatprep.subr.bf16.mxu0 0
        %1531 = vmatpush2.bf16.msra.mxu0 0
        %1532 = vmatprep.subr.bf16.mxu0 0
        %1533 = vmatpush2.bf16.msra.mxu0 0
        %1534 = vmatprep.mubr.bf16.mxu0 0
        %1535 = vmatmul.mubr.bf16.gmra.mxu0 %v1497
        %v1536 = vpop.f32.mrf.mxu0
        %v1537 = vadd.f32 0.0, %v1536
        %v1538 = vpop.f32.mrf.mxu0
        %v1539 = vpop.f32.mrf.mxu0
        %v1540 = vpop.f32.mrf.mxu0
        %1541 = vdwg.mxu0
        %1542 = vrot.lane.b32.xlu0 %v950, 64
        %v1543 = vpop.permute.xlu0 %1542
        %v1545 = vsel %vm959, %v1439, 0
        %v1548 = vsel %vm1450, %v1543, 0
        %1550 = vmatprep.subr.bf16.mxu0 0
        %1551 = vmatpush1.bf16.msra.mxu0 0
        %1552 = vmatprep.subr.bf16.mxu0 0
        %1553 = vmatpush1.bf16.msra.mxu0 0
        %1554 = vmatprep.subr.bf16.mxu0 0
        %1555 = vmatpush1.bf16.msra.mxu0 0
        %1556 = vmatprep.subr.bf16.mxu0 0
        %1557 = vmatpush1.bf16.msra.mxu0 0
        %1558 = vmatprep.subr.bf16.mxu0 0
        %1559 = vmatpush1.bf16.msra.mxu0 0
        %1560 = vmatprep.subr.bf16.mxu0 0
        %1561 = vmatpush1.bf16.msra.mxu0 0
        %1562 = vmatprep.subr.bf16.mxu0 0
        %1563 = vmatpush1.bf16.msra.mxu0 0
        %1564 = vmatprep.subr.bf16.mxu0 0
        %1565 = vmatpush1.bf16.msra.mxu0 %v1548
        %1566 = vmatprep.subr.bf16.mxu0 0
        %1567 = vmatpush2.bf16.msra.mxu0 0
        %1568 = vmatprep.subr.bf16.mxu0 0
        %1569 = vmatpush2.bf16.msra.mxu0 0
        %1570 = vmatprep.subr.bf16.mxu0 0
        %1571 = vmatpush2.bf16.msra.mxu0 0
        %1572 = vmatprep.subr.bf16.mxu0 0
        %1573 = vmatpush2.bf16.msra.mxu0 0
        %1574 = vmatprep.subr.bf16.mxu0 0
        %1575 = vmatpush2.bf16.msra.mxu0 0
        %1576 = vmatprep.subr.bf16.mxu0 0
        %1577 = vmatpush2.bf16.msra.mxu0 0
        %1578 = vmatprep.subr.bf16.mxu0 0
        %1579 = vmatpush2.bf16.msra.mxu0 0
        %1580 = vmatprep.subr.bf16.mxu0 0
        %1581 = vmatpush2.bf16.msra.mxu0 0
        %1582 = vmatprep.mubr.bf16.mxu0 0
        %1583 = vmatmul.mubr.bf16.gmra.mxu0 %v1545
        %v1584 = vpop.f32.mrf.mxu0
        %v1585 = vadd.f32 0.0, %v1584
        %v1586 = vpop.f32.mrf.mxu0
        %v1587 = vpop.f32.mrf.mxu0
        %v1588 = vpop.f32.mrf.mxu0
        %1589 = vdwg.mxu0
        %1590 = vrot.lane.b32.xlu0 %v951, 64
        %v1591 = vpop.permute.xlu0 %1590
        %v1593 = vsel %vm959, %v1440, 0
        %v1596 = vsel %vm1450, %v1591, 0
        %1598 = vmatprep.subr.bf16.mxu0 0
        %1599 = vmatpush1.bf16.msra.mxu0 0
        %1600 = vmatprep.subr.bf16.mxu0 0
        %1601 = vmatpush1.bf16.msra.mxu0 0
        %1602 = vmatprep.subr.bf16.mxu0 0
        %1603 = vmatpush1.bf16.msra.mxu0 0
        %1604 = vmatprep.subr.bf16.mxu0 0
        %1605 = vmatpush1.bf16.msra.mxu0 0
        %1606 = vmatprep.subr.bf16.mxu0 0
        %1607 = vmatpush1.bf16.msra.mxu0 0
        %1608 = vmatprep.subr.bf16.mxu0 0
        %1609 = vmatpush1.bf16.msra.mxu0 0
        %1610 = vmatprep.subr.bf16.mxu0 0
        %1611 = vmatpush1.bf16.msra.mxu0 0
        %1612 = vmatprep.subr.bf16.mxu0 0
        %1613 = vmatpush1.bf16.msra.mxu0 %v1596
        %1614 = vmatprep.subr.bf16.mxu0 0
        %1615 = vmatpush2.bf16.msra.mxu0 0
        %1616 = vmatprep.subr.bf16.mxu0 0
        %1617 = vmatpush2.bf16.msra.mxu0 0
        %1618 = vmatprep.subr.bf16.mxu0 0
        %1619 = vmatpush2.bf16.msra.mxu0 0
        %1620 = vmatprep.subr.bf16.mxu0 0
        %1621 = vmatpush2.bf16.msra.mxu0 0
        %1622 = vmatprep.subr.bf16.mxu0 0
        %1623 = vmatpush2.bf16.msra.mxu0 0
        %1624 = vmatprep.subr.bf16.mxu0 0
        %1625 = vmatpush2.bf16.msra.mxu0 0
        %1626 = vmatprep.subr.bf16.mxu0 0
        %1627 = vmatpush2.bf16.msra.mxu0 0
        %1628 = vmatprep.subr.bf16.mxu0 0
        %1629 = vmatpush2.bf16.msra.mxu0 0
        %1630 = vmatprep.mubr.bf16.mxu0 0
        %1631 = vmatmul.mubr.bf16.gmra.mxu0 %v1593
        %v1632 = vpop.f32.mrf.mxu0
        %v1633 = vadd.f32 0.0, %v1632
        %v1634 = vpop.f32.mrf.mxu0
        %v1635 = vpop.f32.mrf.mxu0
        %v1636 = vpop.f32.mrf.mxu0
        %1637 = vdwg.mxu0
        %1638 = vrot.lane.b32.xlu0 %v952, 64
        %v1639 = vpop.permute.xlu0 %1638
        %v1641 = vsel %vm959, %v1441, 0
        %v1644 = vsel %vm1450, %v1639, 0
        %1646 = vmatprep.subr.bf16.mxu0 0
        %1647 = vmatpush1.bf16.msra.mxu0 0
        %1648 = vmatprep.subr.bf16.mxu0 0
        %1649 = vmatpush1.bf16.msra.mxu0 0
        %1650 = vmatprep.subr.bf16.mxu0 0
        %1651 = vmatpush1.bf16.msra.mxu0 0
        %1652 = vmatprep.subr.bf16.mxu0 0
        %1653 = vmatpush1.bf16.msra.mxu0 0
        %1654 = vmatprep.subr.bf16.mxu0 0
        %1655 = vmatpush1.bf16.msra.mxu0 0
        %1656 = vmatprep.subr.bf16.mxu0 0
        %1657 = vmatpush1.bf16.msra.mxu0 0
        %1658 = vmatprep.subr.bf16.mxu0 0
        %1659 = vmatpush1.bf16.msra.mxu0 0
        %1660 = vmatprep.subr.bf16.mxu0 0
        %1661 = vmatpush1.bf16.msra.mxu0 %v1644
        %1662 = vmatprep.subr.bf16.mxu0 0
        %1663 = vmatpush2.bf16.msra.mxu0 0
        %1664 = vmatprep.subr.bf16.mxu0 0
        %1665 = vmatpush2.bf16.msra.mxu0 0
        %1666 = vmatprep.subr.bf16.mxu0 0
        %1667 = vmatpush2.bf16.msra.mxu0 0
        %1668 = vmatprep.subr.bf16.mxu0 0
        %1669 = vmatpush2.bf16.msra.mxu0 0
        %1670 = vmatprep.subr.bf16.mxu0 0
        %1671 = vmatpush2.bf16.msra.mxu0 0
        %1672 = vmatprep.subr.bf16.mxu0 0
        %1673 = vmatpush2.bf16.msra.mxu0 0
        %1674 = vmatprep.subr.bf16.mxu0 0
        %1675 = vmatpush2.bf16.msra.mxu0 0
        %1676 = vmatprep.subr.bf16.mxu0 0
        %1677 = vmatpush2.bf16.msra.mxu0 0
        %1678 = vmatprep.mubr.bf16.mxu0 0
        %1679 = vmatmul.mubr.bf16.gmra.mxu0 %v1641
        %v1680 = vpop.f32.mrf.mxu0
        %v1681 = vadd.f32 0.0, %v1680
        %v1682 = vpop.f32.mrf.mxu0
        %v1683 = vpop.f32.mrf.mxu0
        %v1684 = vpop.f32.mrf.mxu0
        %1685 = vdwg.mxu0
        %1686 = vrot.lane.b32.xlu0 %v953, 64
        %v1687 = vpop.permute.xlu0 %1686
        %v1689 = vsel %vm959, %v1442, 0
        %v1692 = vsel %vm1450, %v1687, 0
        %1694 = vmatprep.subr.bf16.mxu0 0
        %1695 = vmatpush1.bf16.msra.mxu0 0
        %1696 = vmatprep.subr.bf16.mxu0 0
        %1697 = vmatpush1.bf16.msra.mxu0 0
        %1698 = vmatprep.subr.bf16.mxu0 0
        %1699 = vmatpush1.bf16.msra.mxu0 0
        %1700 = vmatprep.subr.bf16.mxu0 0
        %1701 = vmatpush1.bf16.msra.mxu0 0
        %1702 = vmatprep.subr.bf16.mxu0 0
        %1703 = vmatpush1.bf16.msra.mxu0 0
        %1704 = vmatprep.subr.bf16.mxu0 0
        %1705 = vmatpush1.bf16.msra.mxu0 0
        %1706 = vmatprep.subr.bf16.mxu0 0
        %1707 = vmatpush1.bf16.msra.mxu0 0
        %1708 = vmatprep.subr.bf16.mxu0 0
        %1709 = vmatpush1.bf16.msra.mxu0 %v1692
        %1710 = vmatprep.subr.bf16.mxu0 0
        %1711 = vmatpush2.bf16.msra.mxu0 0
        %1712 = vmatprep.subr.bf16.mxu0 0
        %1713 = vmatpush2.bf16.msra.mxu0 0
        %1714 = vmatprep.subr.bf16.mxu0 0
        %1715 = vmatpush2.bf16.msra.mxu0 0
        %1716 = vmatprep.subr.bf16.mxu0 0
        %1717 = vmatpush2.bf16.msra.mxu0 0
        %1718 = vmatprep.subr.bf16.mxu0 0
        %1719 = vmatpush2.bf16.msra.mxu0 0
        %1720 = vmatprep.subr.bf16.mxu0 0
        %1721 = vmatpush2.bf16.msra.mxu0 0
        %1722 = vmatprep.subr.bf16.mxu0 0
        %1723 = vmatpush2.bf16.msra.mxu0 0
        %1724 = vmatprep.subr.bf16.mxu0 0
        %1725 = vmatpush2.bf16.msra.mxu0 0
        %1726 = vmatprep.mubr.bf16.mxu0 0
        %1727 = vmatmul.mubr.bf16.gmra.mxu0 %v1689
        %v1728 = vpop.f32.mrf.mxu0
        %v1729 = vadd.f32 0.0, %v1728
        %v1730 = vpop.f32.mrf.mxu0
        %v1731 = vpop.f32.mrf.mxu0
        %v1732 = vpop.f32.mrf.mxu0
        %1733 = vdwg.mxu0
        %1734 = vrot.lane.b32.xlu0 %v954, 64
        %v1735 = vpop.permute.xlu0 %1734
        %v1737 = vsel %vm959, %v1443, 0
        %v1740 = vsel %vm1450, %v1735, 0
        %1742 = vmatprep.subr.bf16.mxu0 0
        %1743 = vmatpush1.bf16.msra.mxu0 0
        %1744 = vmatprep.subr.bf16.mxu0 0
        %1745 = vmatpush1.bf16.msra.mxu0 0
        %1746 = vmatprep.subr.bf16.mxu0 0
        %1747 = vmatpush1.bf16.msra.mxu0 0
        %1748 = vmatprep.subr.bf16.mxu0 0
        %1749 = vmatpush1.bf16.msra.mxu0 0
        %1750 = vmatprep.subr.bf16.mxu0 0
        %1751 = vmatpush1.bf16.msra.mxu0 0
        %1752 = vmatprep.subr.bf16.mxu0 0
        %1753 = vmatpush1.bf16.msra.mxu0 0
        %1754 = vmatprep.subr.bf16.mxu0 0
        %1755 = vmatpush1.bf16.msra.mxu0 0
        %1756 = vmatprep.subr.bf16.mxu0 0
        %1757 = vmatpush1.bf16.msra.mxu0 %v1740
        %1758 = vmatprep.subr.bf16.mxu0 0
        %1759 = vmatpush2.bf16.msra.mxu0 0
        %1760 = vmatprep.subr.bf16.mxu0 0
        %1761 = vmatpush2.bf16.msra.mxu0 0
        %1762 = vmatprep.subr.bf16.mxu0 0
        %1763 = vmatpush2.bf16.msra.mxu0 0
        %1764 = vmatprep.subr.bf16.mxu0 0
        %1765 = vmatpush2.bf16.msra.mxu0 0
        %1766 = vmatprep.subr.bf16.mxu0 0
        %1767 = vmatpush2.bf16.msra.mxu0 0
        %1768 = vmatprep.subr.bf16.mxu0 0
        %1769 = vmatpush2.bf16.msra.mxu0 0
        %1770 = vmatprep.subr.bf16.mxu0 0
        %1771 = vmatpush2.bf16.msra.mxu0 0
        %1772 = vmatprep.subr.bf16.mxu0 0
        %1773 = vmatpush2.bf16.msra.mxu0 0
        %1774 = vmatprep.mubr.bf16.mxu0 0
        %1775 = vmatmul.mubr.bf16.gmra.mxu0 %v1737
        %v1776 = vpop.f32.mrf.mxu0
        %v1777 = vadd.f32 0.0, %v1776
        %v1778 = vpop.f32.mrf.mxu0
        %v1779 = vpop.f32.mrf.mxu0
        %v1780 = vpop.f32.mrf.mxu0
        %1781 = vdwg.mxu0
        %1782 = vrot.lane.b32.xlu0 %v955, 64
        %v1783 = vpop.permute.xlu0 %1782
        %v1785 = vsel %vm959, %v1444, 0
        %v1788 = vsel %vm1450, %v1783, 0
        %1790 = vmatprep.subr.bf16.mxu0 0
        %1791 = vmatpush1.bf16.msra.mxu0 0
        %1792 = vmatprep.subr.bf16.mxu0 0
        %1793 = vmatpush1.bf16.msra.mxu0 0
        %1794 = vmatprep.subr.bf16.mxu0 0
        %1795 = vmatpush1.bf16.msra.mxu0 0
        %1796 = vmatprep.subr.bf16.mxu0 0
        %1797 = vmatpush1.bf16.msra.mxu0 0
        %1798 = vmatprep.subr.bf16.mxu0 0
        %1799 = vmatpush1.bf16.msra.mxu0 0
        %1800 = vmatprep.subr.bf16.mxu0 0
        %1801 = vmatpush1.bf16.msra.mxu0 0
        %1802 = vmatprep.subr.bf16.mxu0 0
        %1803 = vmatpush1.bf16.msra.mxu0 0
        %1804 = vmatprep.subr.bf16.mxu0 0
        %1805 = vmatpush1.bf16.msra.mxu0 %v1788
        %1806 = vmatprep.subr.bf16.mxu0 0
        %1807 = vmatpush2.bf16.msra.mxu0 0
        %1808 = vmatprep.subr.bf16.mxu0 0
        %1809 = vmatpush2.bf16.msra.mxu0 0
        %1810 = vmatprep.subr.bf16.mxu0 0
        %1811 = vmatpush2.bf16.msra.mxu0 0
        %1812 = vmatprep.subr.bf16.mxu0 0
        %1813 = vmatpush2.bf16.msra.mxu0 0
        %1814 = vmatprep.subr.bf16.mxu0 0
        %1815 = vmatpush2.bf16.msra.mxu0 0
        %1816 = vmatprep.subr.bf16.mxu0 0
        %1817 = vmatpush2.bf16.msra.mxu0 0
        %1818 = vmatprep.subr.bf16.mxu0 0
        %1819 = vmatpush2.bf16.msra.mxu0 0
        %1820 = vmatprep.subr.bf16.mxu0 0
        %1821 = vmatpush2.bf16.msra.mxu0 0
        %1822 = vmatprep.mubr.bf16.mxu0 0
        %1823 = vmatmul.mubr.bf16.gmra.mxu0 %v1785
        %v1824 = vpop.f32.mrf.mxu0
        %v1825 = vadd.f32 0.0, %v1824
        %v1826 = vpop.f32.mrf.mxu0
        %v1827 = vpop.f32.mrf.mxu0
        %v1828 = vpop.f32.mrf.mxu0
        %1829 = vdwg.mxu0
        %1830 = vrot.lane.b32.xlu0 %v948, 120
        %v1831 = vpop.permute.xlu0 %1830
        %1832 = vrot.lane.b32.xlu0 %v948, 88
        %v1833 = vpop.permute.xlu0 %1832
        %v1835 = vsel %vm959, %v1831, 0
        %v1838 = vsel %vm959, %v1833, 0
        %1840 = vmatprep.subr.bf16.mxu0 0
        %1841 = vmatpush1.bf16.xpose.msra.mxu0 0
        %1842 = vmatprep.subr.bf16.mxu0 0
        %1843 = vmatpush1.bf16.xpose.msra.mxu0 0
        %1844 = vmatprep.subr.bf16.mxu0 0
        %1845 = vmatpush1.bf16.xpose.msra.mxu0 0
        %1846 = vmatprep.subr.bf16.mxu0 0
        %1847 = vmatpush1.bf16.xpose.msra.mxu0 0
        %1848 = vmatprep.subr.bf16.mxu0 0
        %1849 = vmatpush1.bf16.xpose.msra.mxu0 0
        %1850 = vmatprep.subr.bf16.mxu0 0
        %1851 = vmatpush1.bf16.xpose.msra.mxu0 0
        %1852 = vmatprep.subr.bf16.mxu0 0
        %1853 = vmatpush1.bf16.xpose.msra.mxu0 0
        %1854 = vmatprep.subr.bf16.mxu0 0
        %1855 = vmatpush1.bf16.xpose.msra.mxu0 %v1838
        %1856 = vmatprep.subr.bf16.mxu0 0
        %1857 = vmatpush2.bf16.xpose.msra.mxu0 0
        %1858 = vmatprep.subr.bf16.mxu0 0
        %1859 = vmatpush2.bf16.xpose.msra.mxu0 0
        %1860 = vmatprep.subr.bf16.mxu0 0
        %1861 = vmatpush2.bf16.xpose.msra.mxu0 0
        %1862 = vmatprep.subr.bf16.mxu0 0
        %1863 = vmatpush2.bf16.xpose.msra.mxu0 0
        %1864 = vmatprep.subr.bf16.mxu0 0
        %1865 = vmatpush2.bf16.xpose.msra.mxu0 0
        %1866 = vmatprep.subr.bf16.mxu0 0
        %1867 = vmatpush2.bf16.xpose.msra.mxu0 0
        %1868 = vmatprep.subr.bf16.mxu0 0
        %1869 = vmatpush2.bf16.xpose.msra.mxu0 0
        %1870 = vmatprep.subr.bf16.mxu0 0
        %1871 = vmatpush2.bf16.xpose.msra.mxu0 0
        %1872 = vmatprep.mubr.bf16.mxu0 0
        %1873 = vmatmul.mubr.bf16.gmra.mxu0 %v1835
        %v1874 = vpop.f32.mrf.mxu0
        %v1875 = vadd.f32 %v835, %v1874
        %v1876 = vpop.f32.mrf.mxu0
        %v1877 = vpop.f32.mrf.mxu0
        %v1878 = vpop.f32.mrf.mxu0
        %1879 = vdwg.mxu0
        %1880 = vrot.lane.b32.xlu0 %v949, 120
        %v1881 = vpop.permute.xlu0 %1880
        %1882 = vrot.lane.b32.xlu0 %v949, 88
        %v1883 = vpop.permute.xlu0 %1882
        %v1885 = vsel %vm959, %v1881, 0
        %v1888 = vsel %vm959, %v1883, 0
        %1890 = vmatprep.subr.bf16.mxu0 0
        %1891 = vmatpush1.bf16.xpose.msra.mxu0 0
        %1892 = vmatprep.subr.bf16.mxu0 0
        %1893 = vmatpush1.bf16.xpose.msra.mxu0 0
        %1894 = vmatprep.subr.bf16.mxu0 0
        %1895 = vmatpush1.bf16.xpose.msra.mxu0 0
        %1896 = vmatprep.subr.bf16.mxu0 0
        %1897 = vmatpush1.bf16.xpose.msra.mxu0 0
        %1898 = vmatprep.subr.bf16.mxu0 0
        %1899 = vmatpush1.bf16.xpose.msra.mxu0 0
        %1900 = vmatprep.subr.bf16.mxu0 0
        %1901 = vmatpush1.bf16.xpose.msra.mxu0 0
        %1902 = vmatprep.subr.bf16.mxu0 0
        %1903 = vmatpush1.bf16.xpose.msra.mxu0 0
        %1904 = vmatprep.subr.bf16.mxu0 0
        %1905 = vmatpush1.bf16.xpose.msra.mxu0 %v1888
        %1906 = vmatprep.subr.bf16.mxu0 0
        %1907 = vmatpush2.bf16.xpose.msra.mxu0 0
        %1908 = vmatprep.subr.bf16.mxu0 0
        %1909 = vmatpush2.bf16.xpose.msra.mxu0 0
        %1910 = vmatprep.subr.bf16.mxu0 0
        %1911 = vmatpush2.bf16.xpose.msra.mxu0 0
        %1912 = vmatprep.subr.bf16.mxu0 0
        %1913 = vmatpush2.bf16.xpose.msra.mxu0 0
        %1914 = vmatprep.subr.bf16.mxu0 0
        %1915 = vmatpush2.bf16.xpose.msra.mxu0 0
        %1916 = vmatprep.subr.bf16.mxu0 0
        %1917 = vmatpush2.bf16.xpose.msra.mxu0 0
        %1918 = vmatprep.subr.bf16.mxu0 0
        %1919 = vmatpush2.bf16.xpose.msra.mxu0 0
        %1920 = vmatprep.subr.bf16.mxu0 0
        %1921 = vmatpush2.bf16.xpose.msra.mxu0 0
        %1922 = vmatprep.mubr.bf16.mxu0 0
        %1923 = vmatmul.mubr.bf16.gmra.mxu0 %v1885
        %v1924 = vpop.f32.mrf.mxu0
        %v1925 = vadd.f32 %v836, %v1924
        %v1926 = vpop.f32.mrf.mxu0
        %v1927 = vpop.f32.mrf.mxu0
        %v1928 = vpop.f32.mrf.mxu0
        %1929 = vdwg.mxu0
        %1930 = vrot.lane.b32.xlu0 %v950, 120
        %v1931 = vpop.permute.xlu0 %1930
        %1932 = vrot.lane.b32.xlu0 %v950, 88
        %v1933 = vpop.permute.xlu0 %1932
        %v1935 = vsel %vm959, %v1931, 0
        %v1938 = vsel %vm959, %v1933, 0
        %1940 = vmatprep.subr.bf16.mxu0 0
        %1941 = vmatpush1.bf16.xpose.msra.mxu0 0
        %1942 = vmatprep.subr.bf16.mxu0 0
        %1943 = vmatpush1.bf16.xpose.msra.mxu0 0
        %1944 = vmatprep.subr.bf16.mxu0 0
        %1945 = vmatpush1.bf16.xpose.msra.mxu0 0
        %1946 = vmatprep.subr.bf16.mxu0 0
        %1947 = vmatpush1.bf16.xpose.msra.mxu0 0
        %1948 = vmatprep.subr.bf16.mxu0 0
        %1949 = vmatpush1.bf16.xpose.msra.mxu0 0
        %1950 = vmatprep.subr.bf16.mxu0 0
        %1951 = vmatpush1.bf16.xpose.msra.mxu0 0
        %1952 = vmatprep.subr.bf16.mxu0 0
        %1953 = vmatpush1.bf16.xpose.msra.mxu0 0
        %1954 = vmatprep.subr.bf16.mxu0 0
        %1955 = vmatpush1.bf16.xpose.msra.mxu0 %v1938
        %1956 = vmatprep.subr.bf16.mxu0 0
        %1957 = vmatpush2.bf16.xpose.msra.mxu0 0
        %1958 = vmatprep.subr.bf16.mxu0 0
        %1959 = vmatpush2.bf16.xpose.msra.mxu0 0
        %1960 = vmatprep.subr.bf16.mxu0 0
        %1961 = vmatpush2.bf16.xpose.msra.mxu0 0
        %1962 = vmatprep.subr.bf16.mxu0 0
        %1963 = vmatpush2.bf16.xpose.msra.mxu0 0
        %1964 = vmatprep.subr.bf16.mxu0 0
        %1965 = vmatpush2.bf16.xpose.msra.mxu0 0
        %1966 = vmatprep.subr.bf16.mxu0 0
        %1967 = vmatpush2.bf16.xpose.msra.mxu0 0
        %1968 = vmatprep.subr.bf16.mxu0 0
        %1969 = vmatpush2.bf16.xpose.msra.mxu0 0
        %1970 = vmatprep.subr.bf16.mxu0 0
        %1971 = vmatpush2.bf16.xpose.msra.mxu0 0
        %1972 = vmatprep.mubr.bf16.mxu0 0
        %1973 = vmatmul.mubr.bf16.gmra.mxu0 %v1935
        %v1974 = vpop.f32.mrf.mxu0
        %v1975 = vadd.f32 %v837, %v1974
        %v1976 = vpop.f32.mrf.mxu0
        %v1977 = vpop.f32.mrf.mxu0
        %v1978 = vpop.f32.mrf.mxu0
        %1979 = vdwg.mxu0
        %1980 = vrot.lane.b32.xlu0 %v951, 120
        %v1981 = vpop.permute.xlu0 %1980
        %1982 = vrot.lane.b32.xlu0 %v951, 88
        %v1983 = vpop.permute.xlu0 %1982
        %v1985 = vsel %vm959, %v1981, 0
        %v1988 = vsel %vm959, %v1983, 0
        %1990 = vmatprep.subr.bf16.mxu0 0
        %1991 = vmatpush1.bf16.xpose.msra.mxu0 0
        %1992 = vmatprep.subr.bf16.mxu0 0
        %1993 = vmatpush1.bf16.xpose.msra.mxu0 0
        %1994 = vmatprep.subr.bf16.mxu0 0
        %1995 = vmatpush1.bf16.xpose.msra.mxu0 0
        %1996 = vmatprep.subr.bf16.mxu0 0
        %1997 = vmatpush1.bf16.xpose.msra.mxu0 0
        %1998 = vmatprep.subr.bf16.mxu0 0
        %1999 = vmatpush1.bf16.xpose.msra.mxu0 0
        %2000 = vmatprep.subr.bf16.mxu0 0
        %2001 = vmatpush1.bf16.xpose.msra.mxu0 0
        %2002 = vmatprep.subr.bf16.mxu0 0
        %2003 = vmatpush1.bf16.xpose.msra.mxu0 0
        %2004 = vmatprep.subr.bf16.mxu0 0
        %2005 = vmatpush1.bf16.xpose.msra.mxu0 %v1988
        %2006 = vmatprep.subr.bf16.mxu0 0
        %2007 = vmatpush2.bf16.xpose.msra.mxu0 0
        %2008 = vmatprep.subr.bf16.mxu0 0
        %2009 = vmatpush2.bf16.xpose.msra.mxu0 0
        %2010 = vmatprep.subr.bf16.mxu0 0
        %2011 = vmatpush2.bf16.xpose.msra.mxu0 0
        %2012 = vmatprep.subr.bf16.mxu0 0
        %2013 = vmatpush2.bf16.xpose.msra.mxu0 0
        %2014 = vmatprep.subr.bf16.mxu0 0
        %2015 = vmatpush2.bf16.xpose.msra.mxu0 0
        %2016 = vmatprep.subr.bf16.mxu0 0
        %2017 = vmatpush2.bf16.xpose.msra.mxu0 0
        %2018 = vmatprep.subr.bf16.mxu0 0
        %2019 = vmatpush2.bf16.xpose.msra.mxu0 0
        %2020 = vmatprep.subr.bf16.mxu0 0
        %2021 = vmatpush2.bf16.xpose.msra.mxu0 0
        %2022 = vmatprep.mubr.bf16.mxu0 0
        %2023 = vmatmul.mubr.bf16.gmra.mxu0 %v1985
        %v2024 = vpop.f32.mrf.mxu0
        %v2025 = vadd.f32 %v838, %v2024
        %v2026 = vpop.f32.mrf.mxu0
        %v2027 = vpop.f32.mrf.mxu0
        %v2028 = vpop.f32.mrf.mxu0
        %2029 = vdwg.mxu0
        %2030 = vrot.lane.b32.xlu0 %v952, 120
        %v2031 = vpop.permute.xlu0 %2030
        %2032 = vrot.lane.b32.xlu0 %v952, 88
        %v2033 = vpop.permute.xlu0 %2032
        %v2035 = vsel %vm959, %v2031, 0
        %v2038 = vsel %vm959, %v2033, 0
        %2040 = vmatprep.subr.bf16.mxu0 0
        %2041 = vmatpush1.bf16.xpose.msra.mxu0 0
        %2042 = vmatprep.subr.bf16.mxu0 0
        %2043 = vmatpush1.bf16.xpose.msra.mxu0 0
        %2044 = vmatprep.subr.bf16.mxu0 0
        %2045 = vmatpush1.bf16.xpose.msra.mxu0 0
        %2046 = vmatprep.subr.bf16.mxu0 0
        %2047 = vmatpush1.bf16.xpose.msra.mxu0 0
        %2048 = vmatprep.subr.bf16.mxu0 0
        %2049 = vmatpush1.bf16.xpose.msra.mxu0 0
        %2050 = vmatprep.subr.bf16.mxu0 0
        %2051 = vmatpush1.bf16.xpose.msra.mxu0 0
        %2052 = vmatprep.subr.bf16.mxu0 0
        %2053 = vmatpush1.bf16.xpose.msra.mxu0 0
        %2054 = vmatprep.subr.bf16.mxu0 0
        %2055 = vmatpush1.bf16.xpose.msra.mxu0 %v2038
        %2056 = vmatprep.subr.bf16.mxu0 0
        %2057 = vmatpush2.bf16.xpose.msra.mxu0 0
        %2058 = vmatprep.subr.bf16.mxu0 0
        %2059 = vmatpush2.bf16.xpose.msra.mxu0 0
        %2060 = vmatprep.subr.bf16.mxu0 0
        %2061 = vmatpush2.bf16.xpose.msra.mxu0 0
        %2062 = vmatprep.subr.bf16.mxu0 0
        %2063 = vmatpush2.bf16.xpose.msra.mxu0 0
        %2064 = vmatprep.subr.bf16.mxu0 0
        %2065 = vmatpush2.bf16.xpose.msra.mxu0 0
        %2066 = vmatprep.subr.bf16.mxu0 0
        %2067 = vmatpush2.bf16.xpose.msra.mxu0 0
        %2068 = vmatprep.subr.bf16.mxu0 0
        %2069 = vmatpush2.bf16.xpose.msra.mxu0 0
        %2070 = vmatprep.subr.bf16.mxu0 0
        %2071 = vmatpush2.bf16.xpose.msra.mxu0 0
        %2072 = vmatprep.mubr.bf16.mxu0 0
        %2073 = vmatmul.mubr.bf16.gmra.mxu0 %v2035
        %v2074 = vpop.f32.mrf.mxu0
        %v2075 = vadd.f32 %v839, %v2074
        %v2076 = vpop.f32.mrf.mxu0
        %v2077 = vpop.f32.mrf.mxu0
        %v2078 = vpop.f32.mrf.mxu0
        %2079 = vdwg.mxu0
        %2080 = vrot.lane.b32.xlu0 %v953, 120
        %v2081 = vpop.permute.xlu0 %2080
        %2082 = vrot.lane.b32.xlu0 %v953, 88
        %v2083 = vpop.permute.xlu0 %2082
        %v2085 = vsel %vm959, %v2081, 0
        %v2088 = vsel %vm959, %v2083, 0
        %2090 = vmatprep.subr.bf16.mxu0 0
        %2091 = vmatpush1.bf16.xpose.msra.mxu0 0
        %2092 = vmatprep.subr.bf16.mxu0 0
        %2093 = vmatpush1.bf16.xpose.msra.mxu0 0
        %2094 = vmatprep.subr.bf16.mxu0 0
        %2095 = vmatpush1.bf16.xpose.msra.mxu0 0
        %2096 = vmatprep.subr.bf16.mxu0 0
        %2097 = vmatpush1.bf16.xpose.msra.mxu0 0
        %2098 = vmatprep.subr.bf16.mxu0 0
        %2099 = vmatpush1.bf16.xpose.msra.mxu0 0
        %2100 = vmatprep.subr.bf16.mxu0 0
        %2101 = vmatpush1.bf16.xpose.msra.mxu0 0
        %2102 = vmatprep.subr.bf16.mxu0 0
        %2103 = vmatpush1.bf16.xpose.msra.mxu0 0
        %2104 = vmatprep.subr.bf16.mxu0 0
        %2105 = vmatpush1.bf16.xpose.msra.mxu0 %v2088
        %2106 = vmatprep.subr.bf16.mxu0 0
        %2107 = vmatpush2.bf16.xpose.msra.mxu0 0
        %2108 = vmatprep.subr.bf16.mxu0 0
        %2109 = vmatpush2.bf16.xpose.msra.mxu0 0
        %2110 = vmatprep.subr.bf16.mxu0 0
        %2111 = vmatpush2.bf16.xpose.msra.mxu0 0
        %2112 = vmatprep.subr.bf16.mxu0 0
        %2113 = vmatpush2.bf16.xpose.msra.mxu0 0
        %2114 = vmatprep.subr.bf16.mxu0 0
        %2115 = vmatpush2.bf16.xpose.msra.mxu0 0
        %2116 = vmatprep.subr.bf16.mxu0 0
        %2117 = vmatpush2.bf16.xpose.msra.mxu0 0
        %2118 = vmatprep.subr.bf16.mxu0 0
        %2119 = vmatpush2.bf16.xpose.msra.mxu0 0
        %2120 = vmatprep.subr.bf16.mxu0 0
        %2121 = vmatpush2.bf16.xpose.msra.mxu0 0
        %2122 = vmatprep.mubr.bf16.mxu0 0
        %2123 = vmatmul.mubr.bf16.gmra.mxu0 %v2085
        %v2124 = vpop.f32.mrf.mxu0
        %v2125 = vadd.f32 %v840, %v2124
        %v2126 = vpop.f32.mrf.mxu0
        %v2127 = vpop.f32.mrf.mxu0
        %v2128 = vpop.f32.mrf.mxu0
        %2129 = vdwg.mxu0
        %2130 = vrot.lane.b32.xlu0 %v954, 120
        %v2131 = vpop.permute.xlu0 %2130
        %2132 = vrot.lane.b32.xlu0 %v954, 88
        %v2133 = vpop.permute.xlu0 %2132
        %v2135 = vsel %vm959, %v2131, 0
        %v2138 = vsel %vm959, %v2133, 0
        %2140 = vmatprep.subr.bf16.mxu0 0
        %2141 = vmatpush1.bf16.xpose.msra.mxu0 0
        %2142 = vmatprep.subr.bf16.mxu0 0
        %2143 = vmatpush1.bf16.xpose.msra.mxu0 0
        %2144 = vmatprep.subr.bf16.mxu0 0
        %2145 = vmatpush1.bf16.xpose.msra.mxu0 0
        %2146 = vmatprep.subr.bf16.mxu0 0
        %2147 = vmatpush1.bf16.xpose.msra.mxu0 0
        %2148 = vmatprep.subr.bf16.mxu0 0
        %2149 = vmatpush1.bf16.xpose.msra.mxu0 0
        %2150 = vmatprep.subr.bf16.mxu0 0
        %2151 = vmatpush1.bf16.xpose.msra.mxu0 0
        %2152 = vmatprep.subr.bf16.mxu0 0
        %2153 = vmatpush1.bf16.xpose.msra.mxu0 0
        %2154 = vmatprep.subr.bf16.mxu0 0
        %2155 = vmatpush1.bf16.xpose.msra.mxu0 %v2138
        %2156 = vmatprep.subr.bf16.mxu0 0
        %2157 = vmatpush2.bf16.xpose.msra.mxu0 0
        %2158 = vmatprep.subr.bf16.mxu0 0
        %2159 = vmatpush2.bf16.xpose.msra.mxu0 0
        %2160 = vmatprep.subr.bf16.mxu0 0
        %2161 = vmatpush2.bf16.xpose.msra.mxu0 0
        %2162 = vmatprep.subr.bf16.mxu0 0
        %2163 = vmatpush2.bf16.xpose.msra.mxu0 0
        %2164 = vmatprep.subr.bf16.mxu0 0
        %2165 = vmatpush2.bf16.xpose.msra.mxu0 0
        %2166 = vmatprep.subr.bf16.mxu0 0
        %2167 = vmatpush2.bf16.xpose.msra.mxu0 0
        %2168 = vmatprep.subr.bf16.mxu0 0
        %2169 = vmatpush2.bf16.xpose.msra.mxu0 0
        %2170 = vmatprep.subr.bf16.mxu0 0
        %2171 = vmatpush2.bf16.xpose.msra.mxu0 0
        %2172 = vmatprep.mubr.bf16.mxu0 0
        %2173 = vmatmul.mubr.bf16.gmra.mxu0 %v2135
        %v2174 = vpop.f32.mrf.mxu0
        %v2175 = vadd.f32 %v841, %v2174
        %v2176 = vpop.f32.mrf.mxu0
        %v2177 = vpop.f32.mrf.mxu0
        %v2178 = vpop.f32.mrf.mxu0
        %2179 = vdwg.mxu0
        %2180 = vrot.lane.b32.xlu0 %v955, 120
        %v2181 = vpop.permute.xlu0 %2180
        %2182 = vrot.lane.b32.xlu0 %v955, 88
        %v2183 = vpop.permute.xlu0 %2182
        %v2185 = vsel %vm959, %v2181, 0
        %v2188 = vsel %vm959, %v2183, 0
        %2190 = vmatprep.subr.bf16.mxu0 0
        %2191 = vmatpush1.bf16.xpose.msra.mxu0 0
        %2192 = vmatprep.subr.bf16.mxu0 0
        %2193 = vmatpush1.bf16.xpose.msra.mxu0 0
        %2194 = vmatprep.subr.bf16.mxu0 0
        %2195 = vmatpush1.bf16.xpose.msra.mxu0 0
        %2196 = vmatprep.subr.bf16.mxu0 0
        %2197 = vmatpush1.bf16.xpose.msra.mxu0 0
        %2198 = vmatprep.subr.bf16.mxu0 0
        %2199 = vmatpush1.bf16.xpose.msra.mxu0 0
        %2200 = vmatprep.subr.bf16.mxu0 0
        %2201 = vmatpush1.bf16.xpose.msra.mxu0 0
        %2202 = vmatprep.subr.bf16.mxu0 0
        %2203 = vmatpush1.bf16.xpose.msra.mxu0 0
        %2204 = vmatprep.subr.bf16.mxu0 0
        %2205 = vmatpush1.bf16.xpose.msra.mxu0 %v2188
        %2206 = vmatprep.subr.bf16.mxu0 0
        %2207 = vmatpush2.bf16.xpose.msra.mxu0 0
        %2208 = vmatprep.subr.bf16.mxu0 0
        %2209 = vmatpush2.bf16.xpose.msra.mxu0 0
        %2210 = vmatprep.subr.bf16.mxu0 0
        %2211 = vmatpush2.bf16.xpose.msra.mxu0 0
        %2212 = vmatprep.subr.bf16.mxu0 0
        %2213 = vmatpush2.bf16.xpose.msra.mxu0 0
        %2214 = vmatprep.subr.bf16.mxu0 0
        %2215 = vmatpush2.bf16.xpose.msra.mxu0 0
        %2216 = vmatprep.subr.bf16.mxu0 0
        %2217 = vmatpush2.bf16.xpose.msra.mxu0 0
        %2218 = vmatprep.subr.bf16.mxu0 0
        %2219 = vmatpush2.bf16.xpose.msra.mxu0 0
        %2220 = vmatprep.subr.bf16.mxu0 0
        %2221 = vmatpush2.bf16.xpose.msra.mxu0 0
        %2222 = vmatprep.mubr.bf16.mxu0 0
        %2223 = vmatmul.mubr.bf16.gmra.mxu0 %v2185
        %v2224 = vpop.f32.mrf.mxu0
        %v2225 = vadd.f32 %v842, %v2224
        %v2226 = vpop.f32.mrf.mxu0
        %v2227 = vpop.f32.mrf.mxu0
        %v2228 = vpop.f32.mrf.mxu0
        %2229 = vdwg.mxu0
        %v2230 = vsel %vm959, %v1875, -inf
        %2231 = vmax.xlane.f32.xlu0 %v2230
        %v2232 = vpop.xlane.xlu0 %2231
        %v2233 = vsel %vm959, %v1925, -inf
        %2234 = vmax.xlane.f32.xlu0 %v2233
        %v2235 = vpop.xlane.xlu0 %2234
        %v2236 = vsel %vm959, %v1975, -inf
        %2237 = vmax.xlane.f32.xlu0 %v2236
        %v2238 = vpop.xlane.xlu0 %2237
        %v2239 = vsel %vm959, %v2025, -inf
        %2240 = vmax.xlane.f32.xlu0 %v2239
        %v2241 = vpop.xlane.xlu0 %2240
        %v2242 = vsel %vm959, %v2075, -inf
        %2243 = vmax.xlane.f32.xlu0 %v2242
        %v2244 = vpop.xlane.xlu0 %2243
        %v2245 = vsel %vm959, %v2125, -inf
        %2246 = vmax.xlane.f32.xlu0 %v2245
        %v2247 = vpop.xlane.xlu0 %2246
        %v2248 = vsel %vm959, %v2175, -inf
        %2249 = vmax.xlane.f32.xlu0 %v2248
        %v2250 = vpop.xlane.xlu0 %2249
        %v2251 = vsel %vm959, %v2225, -inf
        %2252 = vmax.xlane.f32.xlu0 %v2251
        %v2253 = vpop.xlane.xlu0 %2252
        %v2254 = vsub.f32 %v1875, %v2232
        %v2255 = vsub.f32 %v1925, %v2235
        %v2256 = vsub.f32 %v1975, %v2238
        %v2257 = vsub.f32 %v2025, %v2241
        %v2258 = vsub.f32 %v2075, %v2244
        %v2259 = vsub.f32 %v2125, %v2247
        %v2260 = vsub.f32 %v2175, %v2250
        %v2261 = vsub.f32 %v2225, %v2253
        %v2262 = vmul.f32 %v2254, 1.442695
        %v2263 = vpow.pop %v2262
        %v2264 = vmul.f32 %v2255, 1.442695
        %v2265 = vpow.pop %v2264
        %v2266 = vmul.f32 %v2256, 1.442695
        %v2267 = vpow.pop %v2266
        %v2268 = vmul.f32 %v2257, 1.442695
        %v2269 = vpow.pop %v2268
        %v2270 = vmul.f32 %v2258, 1.442695
        %v2271 = vpow.pop %v2270
        %v2272 = vmul.f32 %v2259, 1.442695
        %v2273 = vpow.pop %v2272
        %v2274 = vmul.f32 %v2260, 1.442695
        %v2275 = vpow.pop %v2274
        %v2276 = vmul.f32 %v2261, 1.442695
        %v2277 = vpow.pop %v2276
        %v2278 = vsel %vm959, %v2263, 0.0
        %2279 = vadd.xlane.f32.xlu0 %v2278
        %v2280 = vpop.xlane.xlu0 %2279
        %v2281 = vsel %vm959, %v2265, 0.0
        %2282 = vadd.xlane.f32.xlu0 %v2281
        %v2283 = vpop.xlane.xlu0 %2282
        %v2284 = vsel %vm959, %v2267, 0.0
        %2285 = vadd.xlane.f32.xlu0 %v2284
        %v2286 = vpop.xlane.xlu0 %2285
        %v2287 = vsel %vm959, %v2269, 0.0
        %2288 = vadd.xlane.f32.xlu0 %v2287
        %v2289 = vpop.xlane.xlu0 %2288
        %v2290 = vsel %vm959, %v2271, 0.0
        %2291 = vadd.xlane.f32.xlu0 %v2290
        %v2292 = vpop.xlane.xlu0 %2291
        %v2293 = vsel %vm959, %v2273, 0.0
        %2294 = vadd.xlane.f32.xlu0 %v2293
        %v2295 = vpop.xlane.xlu0 %2294
        %v2296 = vsel %vm959, %v2275, 0.0
        %2297 = vadd.xlane.f32.xlu0 %v2296
        %v2298 = vpop.xlane.xlu0 %2297
        %v2299 = vsel %vm959, %v2277, 0.0
        %2300 = vadd.xlane.f32.xlu0 %v2299
        %v2301 = vpop.xlane.xlu0 %2300
        %v2302 = vrcp.pop %v2280
        %v2303 = vrcp.pop %v2283
        %v2304 = vrcp.pop %v2286
        %v2305 = vrcp.pop %v2289
        %v2306 = vrcp.pop %v2292
        %v2307 = vrcp.pop %v2295
        %v2308 = vrcp.pop %v2298
        %v2309 = vrcp.pop %v2301
        %v2310 = vmul.f32 %v2263, %v2302
        %v2311 = vmul.f32 %v2265, %v2303
        %v2312 = vmul.f32 %v2267, %v2304
        %v2313 = vmul.f32 %v2269, %v2305
        %v2314 = vmul.f32 %v2271, %v2306
        %v2315 = vmul.f32 %v2273, %v2307
        %v2316 = vmul.f32 %v2275, %v2308
        %v2317 = vmul.f32 %v2277, %v2309
        %v2318 = vpack.c.bf16 %v2310, %v2310
        %v2319 = vpack.c.bf16 %v2311, %v2311
        %v2320 = vpack.c.bf16 %v2312, %v2312
        %v2321 = vpack.c.bf16 %v2313, %v2313
        %v2322 = vpack.c.bf16 %v2314, %v2314
        %v2323 = vpack.c.bf16 %v2315, %v2315
        %v2324 = vpack.c.bf16 %v2316, %v2316
        %v2325 = vpack.c.bf16 %v2317, %v2317
        %2326 = vrot.lane.b32.xlu0 %v948, 56
        %v2327 = vpop.permute.xlu0 %2326
        %v2329 = vsel %vm959, %v2318, 0
        %v2332 = vsel %vm1450, %v2327, 0
        %2334 = vmatprep.subr.bf16.mxu0 0
        %2335 = vmatpush1.bf16.msra.mxu0 0
        %2336 = vmatprep.subr.bf16.mxu0 0
        %2337 = vmatpush1.bf16.msra.mxu0 0
        %2338 = vmatprep.subr.bf16.mxu0 0
        %2339 = vmatpush1.bf16.msra.mxu0 0
        %2340 = vmatprep.subr.bf16.mxu0 0
        %2341 = vmatpush1.bf16.msra.mxu0 0
        %2342 = vmatprep.subr.bf16.mxu0 0
        %2343 = vmatpush1.bf16.msra.mxu0 0
        %2344 = vmatprep.subr.bf16.mxu0 0
        %2345 = vmatpush1.bf16.msra.mxu0 0
        %2346 = vmatprep.subr.bf16.mxu0 0
        %2347 = vmatpush1.bf16.msra.mxu0 0
        %2348 = vmatprep.subr.bf16.mxu0 0
        %2349 = vmatpush1.bf16.msra.mxu0 %v2332
        %2350 = vmatprep.subr.bf16.mxu0 0
        %2351 = vmatpush2.bf16.msra.mxu0 0
        %2352 = vmatprep.subr.bf16.mxu0 0
        %2353 = vmatpush2.bf16.msra.mxu0 0
        %2354 = vmatprep.subr.bf16.mxu0 0
        %2355 = vmatpush2.bf16.msra.mxu0 0
        %2356 = vmatprep.subr.bf16.mxu0 0
        %2357 = vmatpush2.bf16.msra.mxu0 0
        %2358 = vmatprep.subr.bf16.mxu0 0
        %2359 = vmatpush2.bf16.msra.mxu0 0
        %2360 = vmatprep.subr.bf16.mxu0 0
        %2361 = vmatpush2.bf16.msra.mxu0 0
        %2362 = vmatprep.subr.bf16.mxu0 0
        %2363 = vmatpush2.bf16.msra.mxu0 0
        %2364 = vmatprep.subr.bf16.mxu0 0
        %2365 = vmatpush2.bf16.msra.mxu0 0
        %2366 = vmatprep.mubr.bf16.mxu0 0
        %2367 = vmatmul.mubr.bf16.gmra.mxu0 %v2329
        %v2368 = vpop.f32.mrf.mxu0
        %v2369 = vadd.f32 0.0, %v2368
        %v2370 = vpop.f32.mrf.mxu0
        %v2371 = vpop.f32.mrf.mxu0
        %v2372 = vpop.f32.mrf.mxu0
        %2373 = vdwg.mxu0
        %2374 = vrot.lane.b32.xlu0 %v949, 56
        %v2375 = vpop.permute.xlu0 %2374
        %v2377 = vsel %vm959, %v2319, 0
        %v2380 = vsel %vm1450, %v2375, 0
        %2382 = vmatprep.subr.bf16.mxu0 0
        %2383 = vmatpush1.bf16.msra.mxu0 0
        %2384 = vmatprep.subr.bf16.mxu0 0
        %2385 = vmatpush1.bf16.msra.mxu0 0
        %2386 = vmatprep.subr.bf16.mxu0 0
        %2387 = vmatpush1.bf16.msra.mxu0 0
        %2388 = vmatprep.subr.bf16.mxu0 0
        %2389 = vmatpush1.bf16.msra.mxu0 0
        %2390 = vmatprep.subr.bf16.mxu0 0
        %2391 = vmatpush1.bf16.msra.mxu0 0
        %2392 = vmatprep.subr.bf16.mxu0 0
        %2393 = vmatpush1.bf16.msra.mxu0 0
        %2394 = vmatprep.subr.bf16.mxu0 0
        %2395 = vmatpush1.bf16.msra.mxu0 0
        %2396 = vmatprep.subr.bf16.mxu0 0
        %2397 = vmatpush1.bf16.msra.mxu0 %v2380
        %2398 = vmatprep.subr.bf16.mxu0 0
        %2399 = vmatpush2.bf16.msra.mxu0 0
        %2400 = vmatprep.subr.bf16.mxu0 0
        %2401 = vmatpush2.bf16.msra.mxu0 0
        %2402 = vmatprep.subr.bf16.mxu0 0
        %2403 = vmatpush2.bf16.msra.mxu0 0
        %2404 = vmatprep.subr.bf16.mxu0 0
        %2405 = vmatpush2.bf16.msra.mxu0 0
        %2406 = vmatprep.subr.bf16.mxu0 0
        %2407 = vmatpush2.bf16.msra.mxu0 0
        %2408 = vmatprep.subr.bf16.mxu0 0
        %2409 = vmatpush2.bf16.msra.mxu0 0
        %2410 = vmatprep.subr.bf16.mxu0 0
        %2411 = vmatpush2.bf16.msra.mxu0 0
        %2412 = vmatprep.subr.bf16.mxu0 0
        %2413 = vmatpush2.bf16.msra.mxu0 0
        %2414 = vmatprep.mubr.bf16.mxu0 0
        %2415 = vmatmul.mubr.bf16.gmra.mxu0 %v2377
        %v2416 = vpop.f32.mrf.mxu0
        %v2417 = vadd.f32 0.0, %v2416
        %v2418 = vpop.f32.mrf.mxu0
        %v2419 = vpop.f32.mrf.mxu0
        %v2420 = vpop.f32.mrf.mxu0
        %2421 = vdwg.mxu0
        %2422 = vrot.lane.b32.xlu0 %v950, 56
        %v2423 = vpop.permute.xlu0 %2422
        %v2425 = vsel %vm959, %v2320, 0
        %v2428 = vsel %vm1450, %v2423, 0
        %2430 = vmatprep.subr.bf16.mxu0 0
        %2431 = vmatpush1.bf16.msra.mxu0 0
        %2432 = vmatprep.subr.bf16.mxu0 0
        %2433 = vmatpush1.bf16.msra.mxu0 0
        %2434 = vmatprep.subr.bf16.mxu0 0
        %2435 = vmatpush1.bf16.msra.mxu0 0
        %2436 = vmatprep.subr.bf16.mxu0 0
        %2437 = vmatpush1.bf16.msra.mxu0 0
        %2438 = vmatprep.subr.bf16.mxu0 0
        %2439 = vmatpush1.bf16.msra.mxu0 0
        %2440 = vmatprep.subr.bf16.mxu0 0
        %2441 = vmatpush1.bf16.msra.mxu0 0
        %2442 = vmatprep.subr.bf16.mxu0 0
        %2443 = vmatpush1.bf16.msra.mxu0 0
        %2444 = vmatprep.subr.bf16.mxu0 0
        %2445 = vmatpush1.bf16.msra.mxu0 %v2428
        %2446 = vmatprep.subr.bf16.mxu0 0
        %2447 = vmatpush2.bf16.msra.mxu0 0
        %2448 = vmatprep.subr.bf16.mxu0 0
        %2449 = vmatpush2.bf16.msra.mxu0 0
        %2450 = vmatprep.subr.bf16.mxu0 0
        %2451 = vmatpush2.bf16.msra.mxu0 0
        %2452 = vmatprep.subr.bf16.mxu0 0
        %2453 = vmatpush2.bf16.msra.mxu0 0
        %2454 = vmatprep.subr.bf16.mxu0 0
        %2455 = vmatpush2.bf16.msra.mxu0 0
        %2456 = vmatprep.subr.bf16.mxu0 0
        %2457 = vmatpush2.bf16.msra.mxu0 0
        %2458 = vmatprep.subr.bf16.mxu0 0
        %2459 = vmatpush2.bf16.msra.mxu0 0
        %2460 = vmatprep.subr.bf16.mxu0 0
        %2461 = vmatpush2.bf16.msra.mxu0 0
        %2462 = vmatprep.mubr.bf16.mxu0 0
        %2463 = vmatmul.mubr.bf16.gmra.mxu0 %v2425
        %v2464 = vpop.f32.mrf.mxu0
        %v2465 = vadd.f32 0.0, %v2464
        %v2466 = vpop.f32.mrf.mxu0
        %v2467 = vpop.f32.mrf.mxu0
        %v2468 = vpop.f32.mrf.mxu0
        %2469 = vdwg.mxu0
        %2470 = vrot.lane.b32.xlu0 %v951, 56
        %v2471 = vpop.permute.xlu0 %2470
        %v2473 = vsel %vm959, %v2321, 0
        %v2476 = vsel %vm1450, %v2471, 0
        %2478 = vmatprep.subr.bf16.mxu0 0
        %2479 = vmatpush1.bf16.msra.mxu0 0
        %2480 = vmatprep.subr.bf16.mxu0 0
        %2481 = vmatpush1.bf16.msra.mxu0 0
        %2482 = vmatprep.subr.bf16.mxu0 0
        %2483 = vmatpush1.bf16.msra.mxu0 0
        %2484 = vmatprep.subr.bf16.mxu0 0
        %2485 = vmatpush1.bf16.msra.mxu0 0
        %2486 = vmatprep.subr.bf16.mxu0 0
        %2487 = vmatpush1.bf16.msra.mxu0 0
        %2488 = vmatprep.subr.bf16.mxu0 0
        %2489 = vmatpush1.bf16.msra.mxu0 0
        %2490 = vmatprep.subr.bf16.mxu0 0
        %2491 = vmatpush1.bf16.msra.mxu0 0
        %2492 = vmatprep.subr.bf16.mxu0 0
        %2493 = vmatpush1.bf16.msra.mxu0 %v2476
        %2494 = vmatprep.subr.bf16.mxu0 0
        %2495 = vmatpush2.bf16.msra.mxu0 0
        %2496 = vmatprep.subr.bf16.mxu0 0
        %2497 = vmatpush2.bf16.msra.mxu0 0
        %2498 = vmatprep.subr.bf16.mxu0 0
        %2499 = vmatpush2.bf16.msra.mxu0 0
        %2500 = vmatprep.subr.bf16.mxu0 0
        %2501 = vmatpush2.bf16.msra.mxu0 0
        %2502 = vmatprep.subr.bf16.mxu0 0
        %2503 = vmatpush2.bf16.msra.mxu0 0
        %2504 = vmatprep.subr.bf16.mxu0 0
        %2505 = vmatpush2.bf16.msra.mxu0 0
        %2506 = vmatprep.subr.bf16.mxu0 0
        %2507 = vmatpush2.bf16.msra.mxu0 0
        %2508 = vmatprep.subr.bf16.mxu0 0
        %2509 = vmatpush2.bf16.msra.mxu0 0
        %2510 = vmatprep.mubr.bf16.mxu0 0
        %2511 = vmatmul.mubr.bf16.gmra.mxu0 %v2473
        %v2512 = vpop.f32.mrf.mxu0
        %v2513 = vadd.f32 0.0, %v2512
        %v2514 = vpop.f32.mrf.mxu0
        %v2515 = vpop.f32.mrf.mxu0
        %v2516 = vpop.f32.mrf.mxu0
        %2517 = vdwg.mxu0
        %2518 = vrot.lane.b32.xlu0 %v952, 56
        %v2519 = vpop.permute.xlu0 %2518
        %v2521 = vsel %vm959, %v2322, 0
        %v2524 = vsel %vm1450, %v2519, 0
        %2526 = vmatprep.subr.bf16.mxu0 0
        %2527 = vmatpush1.bf16.msra.mxu0 0
        %2528 = vmatprep.subr.bf16.mxu0 0
        %2529 = vmatpush1.bf16.msra.mxu0 0
        %2530 = vmatprep.subr.bf16.mxu0 0
        %2531 = vmatpush1.bf16.msra.mxu0 0
        %2532 = vmatprep.subr.bf16.mxu0 0
        %2533 = vmatpush1.bf16.msra.mxu0 0
        %2534 = vmatprep.subr.bf16.mxu0 0
        %2535 = vmatpush1.bf16.msra.mxu0 0
        %2536 = vmatprep.subr.bf16.mxu0 0
        %2537 = vmatpush1.bf16.msra.mxu0 0
        %2538 = vmatprep.subr.bf16.mxu0 0
        %2539 = vmatpush1.bf16.msra.mxu0 0
        %2540 = vmatprep.subr.bf16.mxu0 0
        %2541 = vmatpush1.bf16.msra.mxu0 %v2524
        %2542 = vmatprep.subr.bf16.mxu0 0
        %2543 = vmatpush2.bf16.msra.mxu0 0
        %2544 = vmatprep.subr.bf16.mxu0 0
        %2545 = vmatpush2.bf16.msra.mxu0 0
        %2546 = vmatprep.subr.bf16.mxu0 0
        %2547 = vmatpush2.bf16.msra.mxu0 0
        %2548 = vmatprep.subr.bf16.mxu0 0
        %2549 = vmatpush2.bf16.msra.mxu0 0
        %2550 = vmatprep.subr.bf16.mxu0 0
        %2551 = vmatpush2.bf16.msra.mxu0 0
        %2552 = vmatprep.subr.bf16.mxu0 0
        %2553 = vmatpush2.bf16.msra.mxu0 0
        %2554 = vmatprep.subr.bf16.mxu0 0
        %2555 = vmatpush2.bf16.msra.mxu0 0
        %2556 = vmatprep.subr.bf16.mxu0 0
        %2557 = vmatpush2.bf16.msra.mxu0 0
        %2558 = vmatprep.mubr.bf16.mxu0 0
        %2559 = vmatmul.mubr.bf16.gmra.mxu0 %v2521
        %v2560 = vpop.f32.mrf.mxu0
        %v2561 = vadd.f32 0.0, %v2560
        %v2562 = vpop.f32.mrf.mxu0
        %v2563 = vpop.f32.mrf.mxu0
        %v2564 = vpop.f32.mrf.mxu0
        %2565 = vdwg.mxu0
        %2566 = vrot.lane.b32.xlu0 %v953, 56
        %v2567 = vpop.permute.xlu0 %2566
        %v2569 = vsel %vm959, %v2323, 0
        %v2572 = vsel %vm1450, %v2567, 0
        %2574 = vmatprep.subr.bf16.mxu0 0
        %2575 = vmatpush1.bf16.msra.mxu0 0
        %2576 = vmatprep.subr.bf16.mxu0 0
        %2577 = vmatpush1.bf16.msra.mxu0 0
        %2578 = vmatprep.subr.bf16.mxu0 0
        %2579 = vmatpush1.bf16.msra.mxu0 0
        %2580 = vmatprep.subr.bf16.mxu0 0
        %2581 = vmatpush1.bf16.msra.mxu0 0
        %2582 = vmatprep.subr.bf16.mxu0 0
        %2583 = vmatpush1.bf16.msra.mxu0 0
        %2584 = vmatprep.subr.bf16.mxu0 0
        %2585 = vmatpush1.bf16.msra.mxu0 0
        %2586 = vmatprep.subr.bf16.mxu0 0
        %2587 = vmatpush1.bf16.msra.mxu0 0
        %2588 = vmatprep.subr.bf16.mxu0 0
        %2589 = vmatpush1.bf16.msra.mxu0 %v2572
        %2590 = vmatprep.subr.bf16.mxu0 0
        %2591 = vmatpush2.bf16.msra.mxu0 0
        %2592 = vmatprep.subr.bf16.mxu0 0
        %2593 = vmatpush2.bf16.msra.mxu0 0
        %2594 = vmatprep.subr.bf16.mxu0 0
        %2595 = vmatpush2.bf16.msra.mxu0 0
        %2596 = vmatprep.subr.bf16.mxu0 0
        %2597 = vmatpush2.bf16.msra.mxu0 0
        %2598 = vmatprep.subr.bf16.mxu0 0
        %2599 = vmatpush2.bf16.msra.mxu0 0
        %2600 = vmatprep.subr.bf16.mxu0 0
        %2601 = vmatpush2.bf16.msra.mxu0 0
        %2602 = vmatprep.subr.bf16.mxu0 0
        %2603 = vmatpush2.bf16.msra.mxu0 0
        %2604 = vmatprep.subr.bf16.mxu0 0
        %2605 = vmatpush2.bf16.msra.mxu0 0
        %2606 = vmatprep.mubr.bf16.mxu0 0
        %2607 = vmatmul.mubr.bf16.gmra.mxu0 %v2569
        %v2608 = vpop.f32.mrf.mxu0
        %v2609 = vadd.f32 0.0, %v2608
        %v2610 = vpop.f32.mrf.mxu0
        %v2611 = vpop.f32.mrf.mxu0
        %v2612 = vpop.f32.mrf.mxu0
        %2613 = vdwg.mxu0
        %2614 = vrot.lane.b32.xlu0 %v954, 56
        %v2615 = vpop.permute.xlu0 %2614
        %v2617 = vsel %vm959, %v2324, 0
        %v2620 = vsel %vm1450, %v2615, 0
        %2622 = vmatprep.subr.bf16.mxu0 0
        %2623 = vmatpush1.bf16.msra.mxu0 0
        %2624 = vmatprep.subr.bf16.mxu0 0
        %2625 = vmatpush1.bf16.msra.mxu0 0
        %2626 = vmatprep.subr.bf16.mxu0 0
        %2627 = vmatpush1.bf16.msra.mxu0 0
        %2628 = vmatprep.subr.bf16.mxu0 0
        %2629 = vmatpush1.bf16.msra.mxu0 0
        %2630 = vmatprep.subr.bf16.mxu0 0
        %2631 = vmatpush1.bf16.msra.mxu0 0
        %2632 = vmatprep.subr.bf16.mxu0 0
        %2633 = vmatpush1.bf16.msra.mxu0 0
        %2634 = vmatprep.subr.bf16.mxu0 0
        %2635 = vmatpush1.bf16.msra.mxu0 0
        %2636 = vmatprep.subr.bf16.mxu0 0
        %2637 = vmatpush1.bf16.msra.mxu0 %v2620
        %2638 = vmatprep.subr.bf16.mxu0 0
        %2639 = vmatpush2.bf16.msra.mxu0 0
        %2640 = vmatprep.subr.bf16.mxu0 0
        %2641 = vmatpush2.bf16.msra.mxu0 0
        %2642 = vmatprep.subr.bf16.mxu0 0
        %2643 = vmatpush2.bf16.msra.mxu0 0
        %2644 = vmatprep.subr.bf16.mxu0 0
        %2645 = vmatpush2.bf16.msra.mxu0 0
        %2646 = vmatprep.subr.bf16.mxu0 0
        %2647 = vmatpush2.bf16.msra.mxu0 0
        %2648 = vmatprep.subr.bf16.mxu0 0
        %2649 = vmatpush2.bf16.msra.mxu0 0
        %2650 = vmatprep.subr.bf16.mxu0 0
        %2651 = vmatpush2.bf16.msra.mxu0 0
        %2652 = vmatprep.subr.bf16.mxu0 0
        %2653 = vmatpush2.bf16.msra.mxu0 0
        %2654 = vmatprep.mubr.bf16.mxu0 0
        %2655 = vmatmul.mubr.bf16.gmra.mxu0 %v2617
        %v2656 = vpop.f32.mrf.mxu0
        %v2657 = vadd.f32 0.0, %v2656
        %v2658 = vpop.f32.mrf.mxu0
        %v2659 = vpop.f32.mrf.mxu0
        %v2660 = vpop.f32.mrf.mxu0
        %2661 = vdwg.mxu0
        %2662 = vrot.lane.b32.xlu0 %v955, 56
        %v2663 = vpop.permute.xlu0 %2662
        %v2665 = vsel %vm959, %v2325, 0
        %v2668 = vsel %vm1450, %v2663, 0
        %2670 = vmatprep.subr.bf16.mxu0 0
        %2671 = vmatpush1.bf16.msra.mxu0 0
        %2672 = vmatprep.subr.bf16.mxu0 0
        %2673 = vmatpush1.bf16.msra.mxu0 0
        %2674 = vmatprep.subr.bf16.mxu0 0
        %2675 = vmatpush1.bf16.msra.mxu0 0
        %2676 = vmatprep.subr.bf16.mxu0 0
        %2677 = vmatpush1.bf16.msra.mxu0 0
        %2678 = vmatprep.subr.bf16.mxu0 0
        %2679 = vmatpush1.bf16.msra.mxu0 0
        %2680 = vmatprep.subr.bf16.mxu0 0
        %2681 = vmatpush1.bf16.msra.mxu0 0
        %2682 = vmatprep.subr.bf16.mxu0 0
        %2683 = vmatpush1.bf16.msra.mxu0 0
        %2684 = vmatprep.subr.bf16.mxu0 0
        %2685 = vmatpush1.bf16.msra.mxu0 %v2668
        %2686 = vmatprep.subr.bf16.mxu0 0
        %2687 = vmatpush2.bf16.msra.mxu0 0
        %2688 = vmatprep.subr.bf16.mxu0 0
        %2689 = vmatpush2.bf16.msra.mxu0 0
        %2690 = vmatprep.subr.bf16.mxu0 0
        %2691 = vmatpush2.bf16.msra.mxu0 0
        %2692 = vmatprep.subr.bf16.mxu0 0
        %2693 = vmatpush2.bf16.msra.mxu0 0
        %2694 = vmatprep.subr.bf16.mxu0 0
        %2695 = vmatpush2.bf16.msra.mxu0 0
        %2696 = vmatprep.subr.bf16.mxu0 0
        %2697 = vmatpush2.bf16.msra.mxu0 0
        %2698 = vmatprep.subr.bf16.mxu0 0
        %2699 = vmatpush2.bf16.msra.mxu0 0
        %2700 = vmatprep.subr.bf16.mxu0 0
        %2701 = vmatpush2.bf16.msra.mxu0 0
        %2702 = vmatprep.mubr.bf16.mxu0 0
        %2703 = vmatmul.mubr.bf16.gmra.mxu0 %v2665
        %v2704 = vpop.f32.mrf.mxu0
        %v2705 = vadd.f32 0.0, %v2704
        %v2706 = vpop.f32.mrf.mxu0
        %v2707 = vpop.f32.mrf.mxu0
        %v2708 = vpop.f32.mrf.mxu0
        %2709 = vdwg.mxu0
        %2710 = vrot.lane.b32.xlu0 %v948, 112
        %v2711 = vpop.permute.xlu0 %2710
        %2712 = vrot.lane.b32.xlu0 %v948, 80
        %v2713 = vpop.permute.xlu0 %2712
        %v2715 = vsel %vm959, %v2711, 0
        %v2718 = vsel %vm959, %v2713, 0
        %2720 = vmatprep.subr.bf16.mxu0 0
        %2721 = vmatpush1.bf16.xpose.msra.mxu0 0
        %2722 = vmatprep.subr.bf16.mxu0 0
        %2723 = vmatpush1.bf16.xpose.msra.mxu0 0
        %2724 = vmatprep.subr.bf16.mxu0 0
        %2725 = vmatpush1.bf16.xpose.msra.mxu0 0
        %2726 = vmatprep.subr.bf16.mxu0 0
        %2727 = vmatpush1.bf16.xpose.msra.mxu0 0
        %2728 = vmatprep.subr.bf16.mxu0 0
        %2729 = vmatpush1.bf16.xpose.msra.mxu0 0
        %2730 = vmatprep.subr.bf16.mxu0 0
        %2731 = vmatpush1.bf16.xpose.msra.mxu0 0
        %2732 = vmatprep.subr.bf16.mxu0 0
        %2733 = vmatpush1.bf16.xpose.msra.mxu0 0
        %2734 = vmatprep.subr.bf16.mxu0 0
        %2735 = vmatpush1.bf16.xpose.msra.mxu0 %v2718
        %2736 = vmatprep.subr.bf16.mxu0 0
        %2737 = vmatpush2.bf16.xpose.msra.mxu0 0
        %2738 = vmatprep.subr.bf16.mxu0 0
        %2739 = vmatpush2.bf16.xpose.msra.mxu0 0
        %2740 = vmatprep.subr.bf16.mxu0 0
        %2741 = vmatpush2.bf16.xpose.msra.mxu0 0
        %2742 = vmatprep.subr.bf16.mxu0 0
        %2743 = vmatpush2.bf16.xpose.msra.mxu0 0
        %2744 = vmatprep.subr.bf16.mxu0 0
        %2745 = vmatpush2.bf16.xpose.msra.mxu0 0
        %2746 = vmatprep.subr.bf16.mxu0 0
        %2747 = vmatpush2.bf16.xpose.msra.mxu0 0
        %2748 = vmatprep.subr.bf16.mxu0 0
        %2749 = vmatpush2.bf16.xpose.msra.mxu0 0
        %2750 = vmatprep.subr.bf16.mxu0 0
        %2751 = vmatpush2.bf16.xpose.msra.mxu0 0
        %2752 = vmatprep.mubr.bf16.mxu0 0
        %2753 = vmatmul.mubr.bf16.gmra.mxu0 %v2715
        %v2754 = vpop.f32.mrf.mxu0
        %v2755 = vadd.f32 %v835, %v2754
        %v2756 = vpop.f32.mrf.mxu0
        %v2757 = vpop.f32.mrf.mxu0
        %v2758 = vpop.f32.mrf.mxu0
        %2759 = vdwg.mxu0
        %2760 = vrot.lane.b32.xlu0 %v949, 112
        %v2761 = vpop.permute.xlu0 %2760
        %2762 = vrot.lane.b32.xlu0 %v949, 80
        %v2763 = vpop.permute.xlu0 %2762
        %v2765 = vsel %vm959, %v2761, 0
        %v2768 = vsel %vm959, %v2763, 0
        %2770 = vmatprep.subr.bf16.mxu0 0
        %2771 = vmatpush1.bf16.xpose.msra.mxu0 0
        %2772 = vmatprep.subr.bf16.mxu0 0
        %2773 = vmatpush1.bf16.xpose.msra.mxu0 0
        %2774 = vmatprep.subr.bf16.mxu0 0
        %2775 = vmatpush1.bf16.xpose.msra.mxu0 0
        %2776 = vmatprep.subr.bf16.mxu0 0
        %2777 = vmatpush1.bf16.xpose.msra.mxu0 0
        %2778 = vmatprep.subr.bf16.mxu0 0
        %2779 = vmatpush1.bf16.xpose.msra.mxu0 0
        %2780 = vmatprep.subr.bf16.mxu0 0
        %2781 = vmatpush1.bf16.xpose.msra.mxu0 0
        %2782 = vmatprep.subr.bf16.mxu0 0
        %2783 = vmatpush1.bf16.xpose.msra.mxu0 0
        %2784 = vmatprep.subr.bf16.mxu0 0
        %2785 = vmatpush1.bf16.xpose.msra.mxu0 %v2768
        %2786 = vmatprep.subr.bf16.mxu0 0
        %2787 = vmatpush2.bf16.xpose.msra.mxu0 0
        %2788 = vmatprep.subr.bf16.mxu0 0
        %2789 = vmatpush2.bf16.xpose.msra.mxu0 0
        %2790 = vmatprep.subr.bf16.mxu0 0
        %2791 = vmatpush2.bf16.xpose.msra.mxu0 0
        %2792 = vmatprep.subr.bf16.mxu0 0
        %2793 = vmatpush2.bf16.xpose.msra.mxu0 0
        %2794 = vmatprep.subr.bf16.mxu0 0
        %2795 = vmatpush2.bf16.xpose.msra.mxu0 0
        %2796 = vmatprep.subr.bf16.mxu0 0
        %2797 = vmatpush2.bf16.xpose.msra.mxu0 0
        %2798 = vmatprep.subr.bf16.mxu0 0
        %2799 = vmatpush2.bf16.xpose.msra.mxu0 0
        %2800 = vmatprep.subr.bf16.mxu0 0
        %2801 = vmatpush2.bf16.xpose.msra.mxu0 0
        %2802 = vmatprep.mubr.bf16.mxu0 0
        %2803 = vmatmul.mubr.bf16.gmra.mxu0 %v2765
        %v2804 = vpop.f32.mrf.mxu0
        %v2805 = vadd.f32 %v836, %v2804
        %v2806 = vpop.f32.mrf.mxu0
        %v2807 = vpop.f32.mrf.mxu0
        %v2808 = vpop.f32.mrf.mxu0
        %2809 = vdwg.mxu0
        %2810 = vrot.lane.b32.xlu0 %v950, 112
        %v2811 = vpop.permute.xlu0 %2810
        %2812 = vrot.lane.b32.xlu0 %v950, 80
        %v2813 = vpop.permute.xlu0 %2812
        %v2815 = vsel %vm959, %v2811, 0
        %v2818 = vsel %vm959, %v2813, 0
        %2820 = vmatprep.subr.bf16.mxu0 0
        %2821 = vmatpush1.bf16.xpose.msra.mxu0 0
        %2822 = vmatprep.subr.bf16.mxu0 0
        %2823 = vmatpush1.bf16.xpose.msra.mxu0 0
        %2824 = vmatprep.subr.bf16.mxu0 0
        %2825 = vmatpush1.bf16.xpose.msra.mxu0 0
        %2826 = vmatprep.subr.bf16.mxu0 0
        %2827 = vmatpush1.bf16.xpose.msra.mxu0 0
        %2828 = vmatprep.subr.bf16.mxu0 0
        %2829 = vmatpush1.bf16.xpose.msra.mxu0 0
        %2830 = vmatprep.subr.bf16.mxu0 0
        %2831 = vmatpush1.bf16.xpose.msra.mxu0 0
        %2832 = vmatprep.subr.bf16.mxu0 0
        %2833 = vmatpush1.bf16.xpose.msra.mxu0 0
        %2834 = vmatprep.subr.bf16.mxu0 0
        %2835 = vmatpush1.bf16.xpose.msra.mxu0 %v2818
        %2836 = vmatprep.subr.bf16.mxu0 0
        %2837 = vmatpush2.bf16.xpose.msra.mxu0 0
        %2838 = vmatprep.subr.bf16.mxu0 0
        %2839 = vmatpush2.bf16.xpose.msra.mxu0 0
        %2840 = vmatprep.subr.bf16.mxu0 0
        %2841 = vmatpush2.bf16.xpose.msra.mxu0 0
        %2842 = vmatprep.subr.bf16.mxu0 0
        %2843 = vmatpush2.bf16.xpose.msra.mxu0 0
        %2844 = vmatprep.subr.bf16.mxu0 0
        %2845 = vmatpush2.bf16.xpose.msra.mxu0 0
        %2846 = vmatprep.subr.bf16.mxu0 0
        %2847 = vmatpush2.bf16.xpose.msra.mxu0 0
        %2848 = vmatprep.subr.bf16.mxu0 0
        %2849 = vmatpush2.bf16.xpose.msra.mxu0 0
        %2850 = vmatprep.subr.bf16.mxu0 0
        %2851 = vmatpush2.bf16.xpose.msra.mxu0 0
        %2852 = vmatprep.mubr.bf16.mxu0 0
        %2853 = vmatmul.mubr.bf16.gmra.mxu0 %v2815
        %v2854 = vpop.f32.mrf.mxu0
        %v2855 = vadd.f32 %v837, %v2854
        %v2856 = vpop.f32.mrf.mxu0
        %v2857 = vpop.f32.mrf.mxu0
        %v2858 = vpop.f32.mrf.mxu0
        %2859 = vdwg.mxu0
        %2860 = vrot.lane.b32.xlu0 %v951, 112
        %v2861 = vpop.permute.xlu0 %2860
        %2862 = vrot.lane.b32.xlu0 %v951, 80
        %v2863 = vpop.permute.xlu0 %2862
        %v2865 = vsel %vm959, %v2861, 0
        %v2868 = vsel %vm959, %v2863, 0
        %2870 = vmatprep.subr.bf16.mxu0 0
        %2871 = vmatpush1.bf16.xpose.msra.mxu0 0
        %2872 = vmatprep.subr.bf16.mxu0 0
        %2873 = vmatpush1.bf16.xpose.msra.mxu0 0
        %2874 = vmatprep.subr.bf16.mxu0 0
        %2875 = vmatpush1.bf16.xpose.msra.mxu0 0
        %2876 = vmatprep.subr.bf16.mxu0 0
        %2877 = vmatpush1.bf16.xpose.msra.mxu0 0
        %2878 = vmatprep.subr.bf16.mxu0 0
        %2879 = vmatpush1.bf16.xpose.msra.mxu0 0
        %2880 = vmatprep.subr.bf16.mxu0 0
        %2881 = vmatpush1.bf16.xpose.msra.mxu0 0
        %2882 = vmatprep.subr.bf16.mxu0 0
        %2883 = vmatpush1.bf16.xpose.msra.mxu0 0
        %2884 = vmatprep.subr.bf16.mxu0 0
        %2885 = vmatpush1.bf16.xpose.msra.mxu0 %v2868
        %2886 = vmatprep.subr.bf16.mxu0 0
        %2887 = vmatpush2.bf16.xpose.msra.mxu0 0
        %2888 = vmatprep.subr.bf16.mxu0 0
        %2889 = vmatpush2.bf16.xpose.msra.mxu0 0
        %2890 = vmatprep.subr.bf16.mxu0 0
        %2891 = vmatpush2.bf16.xpose.msra.mxu0 0
        %2892 = vmatprep.subr.bf16.mxu0 0
        %2893 = vmatpush2.bf16.xpose.msra.mxu0 0
        %2894 = vmatprep.subr.bf16.mxu0 0
        %2895 = vmatpush2.bf16.xpose.msra.mxu0 0
        %2896 = vmatprep.subr.bf16.mxu0 0
        %2897 = vmatpush2.bf16.xpose.msra.mxu0 0
        %2898 = vmatprep.subr.bf16.mxu0 0
        %2899 = vmatpush2.bf16.xpose.msra.mxu0 0
        %2900 = vmatprep.subr.bf16.mxu0 0
        %2901 = vmatpush2.bf16.xpose.msra.mxu0 0
        %2902 = vmatprep.mubr.bf16.mxu0 0
        %2903 = vmatmul.mubr.bf16.gmra.mxu0 %v2865
        %v2904 = vpop.f32.mrf.mxu0
        %v2905 = vadd.f32 %v838, %v2904
        %v2906 = vpop.f32.mrf.mxu0
        %v2907 = vpop.f32.mrf.mxu0
        %v2908 = vpop.f32.mrf.mxu0
        %2909 = vdwg.mxu0
        %2910 = vrot.lane.b32.xlu0 %v952, 112
        %v2911 = vpop.permute.xlu0 %2910
        %2912 = vrot.lane.b32.xlu0 %v952, 80
        %v2913 = vpop.permute.xlu0 %2912
        %v2915 = vsel %vm959, %v2911, 0
        %v2918 = vsel %vm959, %v2913, 0
        %2920 = vmatprep.subr.bf16.mxu0 0
        %2921 = vmatpush1.bf16.xpose.msra.mxu0 0
        %2922 = vmatprep.subr.bf16.mxu0 0
        %2923 = vmatpush1.bf16.xpose.msra.mxu0 0
        %2924 = vmatprep.subr.bf16.mxu0 0
        %2925 = vmatpush1.bf16.xpose.msra.mxu0 0
        %2926 = vmatprep.subr.bf16.mxu0 0
        %2927 = vmatpush1.bf16.xpose.msra.mxu0 0
        %2928 = vmatprep.subr.bf16.mxu0 0
        %2929 = vmatpush1.bf16.xpose.msra.mxu0 0
        %2930 = vmatprep.subr.bf16.mxu0 0
        %2931 = vmatpush1.bf16.xpose.msra.mxu0 0
        %2932 = vmatprep.subr.bf16.mxu0 0
        %2933 = vmatpush1.bf16.xpose.msra.mxu0 0
        %2934 = vmatprep.subr.bf16.mxu0 0
        %2935 = vmatpush1.bf16.xpose.msra.mxu0 %v2918
        %2936 = vmatprep.subr.bf16.mxu0 0
        %2937 = vmatpush2.bf16.xpose.msra.mxu0 0
        %2938 = vmatprep.subr.bf16.mxu0 0
        %2939 = vmatpush2.bf16.xpose.msra.mxu0 0
        %2940 = vmatprep.subr.bf16.mxu0 0
        %2941 = vmatpush2.bf16.xpose.msra.mxu0 0
        %2942 = vmatprep.subr.bf16.mxu0 0
        %2943 = vmatpush2.bf16.xpose.msra.mxu0 0
        %2944 = vmatprep.subr.bf16.mxu0 0
        %2945 = vmatpush2.bf16.xpose.msra.mxu0 0
        %2946 = vmatprep.subr.bf16.mxu0 0
        %2947 = vmatpush2.bf16.xpose.msra.mxu0 0
        %2948 = vmatprep.subr.bf16.mxu0 0
        %2949 = vmatpush2.bf16.xpose.msra.mxu0 0
        %2950 = vmatprep.subr.bf16.mxu0 0
        %2951 = vmatpush2.bf16.xpose.msra.mxu0 0
        %2952 = vmatprep.mubr.bf16.mxu0 0
        %2953 = vmatmul.mubr.bf16.gmra.mxu0 %v2915
        %v2954 = vpop.f32.mrf.mxu0
        %v2955 = vadd.f32 %v839, %v2954
        %v2956 = vpop.f32.mrf.mxu0
        %v2957 = vpop.f32.mrf.mxu0
        %v2958 = vpop.f32.mrf.mxu0
        %2959 = vdwg.mxu0
        %2960 = vrot.lane.b32.xlu0 %v953, 112
        %v2961 = vpop.permute.xlu0 %2960
        %2962 = vrot.lane.b32.xlu0 %v953, 80
        %v2963 = vpop.permute.xlu0 %2962
        %v2965 = vsel %vm959, %v2961, 0
        %v2968 = vsel %vm959, %v2963, 0
        %2970 = vmatprep.subr.bf16.mxu0 0
        %2971 = vmatpush1.bf16.xpose.msra.mxu0 0
        %2972 = vmatprep.subr.bf16.mxu0 0
        %2973 = vmatpush1.bf16.xpose.msra.mxu0 0
        %2974 = vmatprep.subr.bf16.mxu0 0
        %2975 = vmatpush1.bf16.xpose.msra.mxu0 0
        %2976 = vmatprep.subr.bf16.mxu0 0
        %2977 = vmatpush1.bf16.xpose.msra.mxu0 0
        %2978 = vmatprep.subr.bf16.mxu0 0
        %2979 = vmatpush1.bf16.xpose.msra.mxu0 0
        %2980 = vmatprep.subr.bf16.mxu0 0
        %2981 = vmatpush1.bf16.xpose.msra.mxu0 0
        %2982 = vmatprep.subr.bf16.mxu0 0
        %2983 = vmatpush1.bf16.xpose.msra.mxu0 0
        %2984 = vmatprep.subr.bf16.mxu0 0
        %2985 = vmatpush1.bf16.xpose.msra.mxu0 %v2968
        %2986 = vmatprep.subr.bf16.mxu0 0
        %2987 = vmatpush2.bf16.xpose.msra.mxu0 0
        %2988 = vmatprep.subr.bf16.mxu0 0
        %2989 = vmatpush2.bf16.xpose.msra.mxu0 0
        %2990 = vmatprep.subr.bf16.mxu0 0
        %2991 = vmatpush2.bf16.xpose.msra.mxu0 0
        %2992 = vmatprep.subr.bf16.mxu0 0
        %2993 = vmatpush2.bf16.xpose.msra.mxu0 0
        %2994 = vmatprep.subr.bf16.mxu0 0
        %2995 = vmatpush2.bf16.xpose.msra.mxu0 0
        %2996 = vmatprep.subr.bf16.mxu0 0
        %2997 = vmatpush2.bf16.xpose.msra.mxu0 0
        %2998 = vmatprep.subr.bf16.mxu0 0
        %2999 = vmatpush2.bf16.xpose.msra.mxu0 0
        %3000 = vmatprep.subr.bf16.mxu0 0
        %3001 = vmatpush2.bf16.xpose.msra.mxu0 0
        %3002 = vmatprep.mubr.bf16.mxu0 0
        %3003 = vmatmul.mubr.bf16.gmra.mxu0 %v2965
        %v3004 = vpop.f32.mrf.mxu0
        %v3005 = vadd.f32 %v840, %v3004
        %v3006 = vpop.f32.mrf.mxu0
        %v3007 = vpop.f32.mrf.mxu0
        %v3008 = vpop.f32.mrf.mxu0
        %3009 = vdwg.mxu0
        %3010 = vrot.lane.b32.xlu0 %v954, 112
        %v3011 = vpop.permute.xlu0 %3010
        %3012 = vrot.lane.b32.xlu0 %v954, 80
        %v3013 = vpop.permute.xlu0 %3012
        %v3015 = vsel %vm959, %v3011, 0
        %v3018 = vsel %vm959, %v3013, 0
        %3020 = vmatprep.subr.bf16.mxu0 0
        %3021 = vmatpush1.bf16.xpose.msra.mxu0 0
        %3022 = vmatprep.subr.bf16.mxu0 0
        %3023 = vmatpush1.bf16.xpose.msra.mxu0 0
        %3024 = vmatprep.subr.bf16.mxu0 0
        %3025 = vmatpush1.bf16.xpose.msra.mxu0 0
        %3026 = vmatprep.subr.bf16.mxu0 0
        %3027 = vmatpush1.bf16.xpose.msra.mxu0 0
        %3028 = vmatprep.subr.bf16.mxu0 0
        %3029 = vmatpush1.bf16.xpose.msra.mxu0 0
        %3030 = vmatprep.subr.bf16.mxu0 0
        %3031 = vmatpush1.bf16.xpose.msra.mxu0 0
        %3032 = vmatprep.subr.bf16.mxu0 0
        %3033 = vmatpush1.bf16.xpose.msra.mxu0 0
        %3034 = vmatprep.subr.bf16.mxu0 0
        %3035 = vmatpush1.bf16.xpose.msra.mxu0 %v3018
        %3036 = vmatprep.subr.bf16.mxu0 0
        %3037 = vmatpush2.bf16.xpose.msra.mxu0 0
        %3038 = vmatprep.subr.bf16.mxu0 0
        %3039 = vmatpush2.bf16.xpose.msra.mxu0 0
        %3040 = vmatprep.subr.bf16.mxu0 0
        %3041 = vmatpush2.bf16.xpose.msra.mxu0 0
        %3042 = vmatprep.subr.bf16.mxu0 0
        %3043 = vmatpush2.bf16.xpose.msra.mxu0 0
        %3044 = vmatprep.subr.bf16.mxu0 0
        %3045 = vmatpush2.bf16.xpose.msra.mxu0 0
        %3046 = vmatprep.subr.bf16.mxu0 0
        %3047 = vmatpush2.bf16.xpose.msra.mxu0 0
        %3048 = vmatprep.subr.bf16.mxu0 0
        %3049 = vmatpush2.bf16.xpose.msra.mxu0 0
        %3050 = vmatprep.subr.bf16.mxu0 0
        %3051 = vmatpush2.bf16.xpose.msra.mxu0 0
        %3052 = vmatprep.mubr.bf16.mxu0 0
        %3053 = vmatmul.mubr.bf16.gmra.mxu0 %v3015
        %v3054 = vpop.f32.mrf.mxu0
        %v3055 = vadd.f32 %v841, %v3054
        %v3056 = vpop.f32.mrf.mxu0
        %v3057 = vpop.f32.mrf.mxu0
        %v3058 = vpop.f32.mrf.mxu0
        %3059 = vdwg.mxu0
        %3060 = vrot.lane.b32.xlu0 %v955, 112
        %v3061 = vpop.permute.xlu0 %3060
        %3062 = vrot.lane.b32.xlu0 %v955, 80
        %v3063 = vpop.permute.xlu0 %3062
        %v3065 = vsel %vm959, %v3061, 0
        %v3068 = vsel %vm959, %v3063, 0
        %3070 = vmatprep.subr.bf16.mxu0 0
        %3071 = vmatpush1.bf16.xpose.msra.mxu0 0
        %3072 = vmatprep.subr.bf16.mxu0 0
        %3073 = vmatpush1.bf16.xpose.msra.mxu0 0
        %3074 = vmatprep.subr.bf16.mxu0 0
        %3075 = vmatpush1.bf16.xpose.msra.mxu0 0
        %3076 = vmatprep.subr.bf16.mxu0 0
        %3077 = vmatpush1.bf16.xpose.msra.mxu0 0
        %3078 = vmatprep.subr.bf16.mxu0 0
        %3079 = vmatpush1.bf16.xpose.msra.mxu0 0
        %3080 = vmatprep.subr.bf16.mxu0 0
        %3081 = vmatpush1.bf16.xpose.msra.mxu0 0
        %3082 = vmatprep.subr.bf16.mxu0 0
        %3083 = vmatpush1.bf16.xpose.msra.mxu0 0
        %3084 = vmatprep.subr.bf16.mxu0 0
        %3085 = vmatpush1.bf16.xpose.msra.mxu0 %v3068
        %3086 = vmatprep.subr.bf16.mxu0 0
        %3087 = vmatpush2.bf16.xpose.msra.mxu0 0
        %3088 = vmatprep.subr.bf16.mxu0 0
        %3089 = vmatpush2.bf16.xpose.msra.mxu0 0
        %3090 = vmatprep.subr.bf16.mxu0 0
        %3091 = vmatpush2.bf16.xpose.msra.mxu0 0
        %3092 = vmatprep.subr.bf16.mxu0 0
        %3093 = vmatpush2.bf16.xpose.msra.mxu0 0
        %3094 = vmatprep.subr.bf16.mxu0 0
        %3095 = vmatpush2.bf16.xpose.msra.mxu0 0
        %3096 = vmatprep.subr.bf16.mxu0 0
        %3097 = vmatpush2.bf16.xpose.msra.mxu0 0
        %3098 = vmatprep.subr.bf16.mxu0 0
        %3099 = vmatpush2.bf16.xpose.msra.mxu0 0
        %3100 = vmatprep.subr.bf16.mxu0 0
        %3101 = vmatpush2.bf16.xpose.msra.mxu0 0
        %3102 = vmatprep.mubr.bf16.mxu0 0
        %3103 = vmatmul.mubr.bf16.gmra.mxu0 %v3065
        %v3104 = vpop.f32.mrf.mxu0
        %v3105 = vadd.f32 %v842, %v3104
        %v3106 = vpop.f32.mrf.mxu0
        %v3107 = vpop.f32.mrf.mxu0
        %v3108 = vpop.f32.mrf.mxu0
        %3109 = vdwg.mxu0
        %v3110 = vsel %vm959, %v2755, -inf
        %3111 = vmax.xlane.f32.xlu0 %v3110
        %v3112 = vpop.xlane.xlu0 %3111
        %v3113 = vsel %vm959, %v2805, -inf
        %3114 = vmax.xlane.f32.xlu0 %v3113
        %v3115 = vpop.xlane.xlu0 %3114
        %v3116 = vsel %vm959, %v2855, -inf
        %3117 = vmax.xlane.f32.xlu0 %v3116
        %v3118 = vpop.xlane.xlu0 %3117
        %v3119 = vsel %vm959, %v2905, -inf
        %3120 = vmax.xlane.f32.xlu0 %v3119
        %v3121 = vpop.xlane.xlu0 %3120
        %v3122 = vsel %vm959, %v2955, -inf
        %3123 = vmax.xlane.f32.xlu0 %v3122
        %v3124 = vpop.xlane.xlu0 %3123
        %v3125 = vsel %vm959, %v3005, -inf
        %3126 = vmax.xlane.f32.xlu0 %v3125
        %v3127 = vpop.xlane.xlu0 %3126
        %v3128 = vsel %vm959, %v3055, -inf
        %3129 = vmax.xlane.f32.xlu0 %v3128
        %v3130 = vpop.xlane.xlu0 %3129
        %v3131 = vsel %vm959, %v3105, -inf
        %3132 = vmax.xlane.f32.xlu0 %v3131
        %v3133 = vpop.xlane.xlu0 %3132
        %v3134 = vsub.f32 %v2755, %v3112
        %v3135 = vsub.f32 %v2805, %v3115
        %v3136 = vsub.f32 %v2855, %v3118
        %v3137 = vsub.f32 %v2905, %v3121
        %v3138 = vsub.f32 %v2955, %v3124
        %v3139 = vsub.f32 %v3005, %v3127
        %v3140 = vsub.f32 %v3055, %v3130
        %v3141 = vsub.f32 %v3105, %v3133
        %v3142 = vmul.f32 %v3134, 1.442695
        %v3143 = vpow.pop %v3142
        %v3144 = vmul.f32 %v3135, 1.442695
        %v3145 = vpow.pop %v3144
        %v3146 = vmul.f32 %v3136, 1.442695
        %v3147 = vpow.pop %v3146
        %v3148 = vmul.f32 %v3137, 1.442695
        %v3149 = vpow.pop %v3148
        %v3150 = vmul.f32 %v3138, 1.442695
        %v3151 = vpow.pop %v3150
        %v3152 = vmul.f32 %v3139, 1.442695
        %v3153 = vpow.pop %v3152
        %v3154 = vmul.f32 %v3140, 1.442695
        %v3155 = vpow.pop %v3154
        %v3156 = vmul.f32 %v3141, 1.442695
        %v3157 = vpow.pop %v3156
        %v3158 = vsel %vm959, %v3143, 0.0
        %3159 = vadd.xlane.f32.xlu0 %v3158
        %v3160 = vpop.xlane.xlu0 %3159
        %v3161 = vsel %vm959, %v3145, 0.0
        %3162 = vadd.xlane.f32.xlu0 %v3161
        %v3163 = vpop.xlane.xlu0 %3162
        %v3164 = vsel %vm959, %v3147, 0.0
        %3165 = vadd.xlane.f32.xlu0 %v3164
        %v3166 = vpop.xlane.xlu0 %3165
        %v3167 = vsel %vm959, %v3149, 0.0
        %3168 = vadd.xlane.f32.xlu0 %v3167
        %v3169 = vpop.xlane.xlu0 %3168
        %v3170 = vsel %vm959, %v3151, 0.0
        %3171 = vadd.xlane.f32.xlu0 %v3170
        %v3172 = vpop.xlane.xlu0 %3171
        %v3173 = vsel %vm959, %v3153, 0.0
        %3174 = vadd.xlane.f32.xlu0 %v3173
        %v3175 = vpop.xlane.xlu0 %3174
        %v3176 = vsel %vm959, %v3155, 0.0
        %3177 = vadd.xlane.f32.xlu0 %v3176
        %v3178 = vpop.xlane.xlu0 %3177
        %v3179 = vsel %vm959, %v3157, 0.0
        %3180 = vadd.xlane.f32.xlu0 %v3179
        %v3181 = vpop.xlane.xlu0 %3180
        %v3182 = vrcp.pop %v3160
        %v3183 = vrcp.pop %v3163
        %v3184 = vrcp.pop %v3166
        %v3185 = vrcp.pop %v3169
        %v3186 = vrcp.pop %v3172
        %v3187 = vrcp.pop %v3175
        %v3188 = vrcp.pop %v3178
        %v3189 = vrcp.pop %v3181
        %v3190 = vmul.f32 %v3143, %v3182
        %v3191 = vmul.f32 %v3145, %v3183
        %v3192 = vmul.f32 %v3147, %v3184
        %v3193 = vmul.f32 %v3149, %v3185
        %v3194 = vmul.f32 %v3151, %v3186
        %v3195 = vmul.f32 %v3153, %v3187
        %v3196 = vmul.f32 %v3155, %v3188
        %v3197 = vmul.f32 %v3157, %v3189
        %v3198 = vpack.c.bf16 %v3190, %v3190
        %v3199 = vpack.c.bf16 %v3191, %v3191
        %v3200 = vpack.c.bf16 %v3192, %v3192
        %v3201 = vpack.c.bf16 %v3193, %v3193
        %v3202 = vpack.c.bf16 %v3194, %v3194
        %v3203 = vpack.c.bf16 %v3195, %v3195
        %v3204 = vpack.c.bf16 %v3196, %v3196
        %v3205 = vpack.c.bf16 %v3197, %v3197
        %3206 = vrot.lane.b32.xlu0 %v948, 48
        %v3207 = vpop.permute.xlu0 %3206
        %v3209 = vsel %vm959, %v3198, 0
        %v3212 = vsel %vm1450, %v3207, 0
        %3214 = vmatprep.subr.bf16.mxu0 0
        %3215 = vmatpush1.bf16.msra.mxu0 0
        %3216 = vmatprep.subr.bf16.mxu0 0
        %3217 = vmatpush1.bf16.msra.mxu0 0
        %3218 = vmatprep.subr.bf16.mxu0 0
        %3219 = vmatpush1.bf16.msra.mxu0 0
        %3220 = vmatprep.subr.bf16.mxu0 0
        %3221 = vmatpush1.bf16.msra.mxu0 0
        %3222 = vmatprep.subr.bf16.mxu0 0
        %3223 = vmatpush1.bf16.msra.mxu0 0
        %3224 = vmatprep.subr.bf16.mxu0 0
        %3225 = vmatpush1.bf16.msra.mxu0 0
        %3226 = vmatprep.subr.bf16.mxu0 0
        %3227 = vmatpush1.bf16.msra.mxu0 0
        %3228 = vmatprep.subr.bf16.mxu0 0
        %3229 = vmatpush1.bf16.msra.mxu0 %v3212
        %3230 = vmatprep.subr.bf16.mxu0 0
        %3231 = vmatpush2.bf16.msra.mxu0 0
        %3232 = vmatprep.subr.bf16.mxu0 0
        %3233 = vmatpush2.bf16.msra.mxu0 0
        %3234 = vmatprep.subr.bf16.mxu0 0
        %3235 = vmatpush2.bf16.msra.mxu0 0
        %3236 = vmatprep.subr.bf16.mxu0 0
        %3237 = vmatpush2.bf16.msra.mxu0 0
        %3238 = vmatprep.subr.bf16.mxu0 0
        %3239 = vmatpush2.bf16.msra.mxu0 0
        %3240 = vmatprep.subr.bf16.mxu0 0
        %3241 = vmatpush2.bf16.msra.mxu0 0
        %3242 = vmatprep.subr.bf16.mxu0 0
        %3243 = vmatpush2.bf16.msra.mxu0 0
        %3244 = vmatprep.subr.bf16.mxu0 0
        %3245 = vmatpush2.bf16.msra.mxu0 0
        %3246 = vmatprep.mubr.bf16.mxu0 0
        %3247 = vmatmul.mubr.bf16.gmra.mxu0 %v3209
        %v3248 = vpop.f32.mrf.mxu0
        %v3249 = vadd.f32 0.0, %v3248
        %v3250 = vpop.f32.mrf.mxu0
        %v3251 = vpop.f32.mrf.mxu0
        %v3252 = vpop.f32.mrf.mxu0
        %3253 = vdwg.mxu0
        %3254 = vrot.lane.b32.xlu0 %v949, 48
        %v3255 = vpop.permute.xlu0 %3254
        %v3257 = vsel %vm959, %v3199, 0
        %v3260 = vsel %vm1450, %v3255, 0
        %3262 = vmatprep.subr.bf16.mxu0 0
        %3263 = vmatpush1.bf16.msra.mxu0 0
        %3264 = vmatprep.subr.bf16.mxu0 0
        %3265 = vmatpush1.bf16.msra.mxu0 0
        %3266 = vmatprep.subr.bf16.mxu0 0
        %3267 = vmatpush1.bf16.msra.mxu0 0
        %3268 = vmatprep.subr.bf16.mxu0 0
        %3269 = vmatpush1.bf16.msra.mxu0 0
        %3270 = vmatprep.subr.bf16.mxu0 0
        %3271 = vmatpush1.bf16.msra.mxu0 0
        %3272 = vmatprep.subr.bf16.mxu0 0
        %3273 = vmatpush1.bf16.msra.mxu0 0
        %3274 = vmatprep.subr.bf16.mxu0 0
        %3275 = vmatpush1.bf16.msra.mxu0 0
        %3276 = vmatprep.subr.bf16.mxu0 0
        %3277 = vmatpush1.bf16.msra.mxu0 %v3260
        %3278 = vmatprep.subr.bf16.mxu0 0
        %3279 = vmatpush2.bf16.msra.mxu0 0
        %3280 = vmatprep.subr.bf16.mxu0 0
        %3281 = vmatpush2.bf16.msra.mxu0 0
        %3282 = vmatprep.subr.bf16.mxu0 0
        %3283 = vmatpush2.bf16.msra.mxu0 0
        %3284 = vmatprep.subr.bf16.mxu0 0
        %3285 = vmatpush2.bf16.msra.mxu0 0
        %3286 = vmatprep.subr.bf16.mxu0 0
        %3287 = vmatpush2.bf16.msra.mxu0 0
        %3288 = vmatprep.subr.bf16.mxu0 0
        %3289 = vmatpush2.bf16.msra.mxu0 0
        %3290 = vmatprep.subr.bf16.mxu0 0
        %3291 = vmatpush2.bf16.msra.mxu0 0
        %3292 = vmatprep.subr.bf16.mxu0 0
        %3293 = vmatpush2.bf16.msra.mxu0 0
        %3294 = vmatprep.mubr.bf16.mxu0 0
        %3295 = vmatmul.mubr.bf16.gmra.mxu0 %v3257
        %v3296 = vpop.f32.mrf.mxu0
        %v3297 = vadd.f32 0.0, %v3296
        %v3298 = vpop.f32.mrf.mxu0
        %v3299 = vpop.f32.mrf.mxu0
        %v3300 = vpop.f32.mrf.mxu0
        %3301 = vdwg.mxu0
        %3302 = vrot.lane.b32.xlu0 %v950, 48
        %v3303 = vpop.permute.xlu0 %3302
        %v3305 = vsel %vm959, %v3200, 0
        %v3308 = vsel %vm1450, %v3303, 0
        %3310 = vmatprep.subr.bf16.mxu0 0
        %3311 = vmatpush1.bf16.msra.mxu0 0
        %3312 = vmatprep.subr.bf16.mxu0 0
        %3313 = vmatpush1.bf16.msra.mxu0 0
        %3314 = vmatprep.subr.bf16.mxu0 0
        %3315 = vmatpush1.bf16.msra.mxu0 0
        %3316 = vmatprep.subr.bf16.mxu0 0
        %3317 = vmatpush1.bf16.msra.mxu0 0
        %3318 = vmatprep.subr.bf16.mxu0 0
        %3319 = vmatpush1.bf16.msra.mxu0 0
        %3320 = vmatprep.subr.bf16.mxu0 0
        %3321 = vmatpush1.bf16.msra.mxu0 0
        %3322 = vmatprep.subr.bf16.mxu0 0
        %3323 = vmatpush1.bf16.msra.mxu0 0
        %3324 = vmatprep.subr.bf16.mxu0 0
        %3325 = vmatpush1.bf16.msra.mxu0 %v3308
        %3326 = vmatprep.subr.bf16.mxu0 0
        %3327 = vmatpush2.bf16.msra.mxu0 0
        %3328 = vmatprep.subr.bf16.mxu0 0
        %3329 = vmatpush2.bf16.msra.mxu0 0
        %3330 = vmatprep.subr.bf16.mxu0 0
        %3331 = vmatpush2.bf16.msra.mxu0 0
        %3332 = vmatprep.subr.bf16.mxu0 0
        %3333 = vmatpush2.bf16.msra.mxu0 0
        %3334 = vmatprep.subr.bf16.mxu0 0
        %3335 = vmatpush2.bf16.msra.mxu0 0
        %3336 = vmatprep.subr.bf16.mxu0 0
        %3337 = vmatpush2.bf16.msra.mxu0 0
        %3338 = vmatprep.subr.bf16.mxu0 0
        %3339 = vmatpush2.bf16.msra.mxu0 0
        %3340 = vmatprep.subr.bf16.mxu0 0
        %3341 = vmatpush2.bf16.msra.mxu0 0
        %3342 = vmatprep.mubr.bf16.mxu0 0
        %3343 = vmatmul.mubr.bf16.gmra.mxu0 %v3305
        %v3344 = vpop.f32.mrf.mxu0
        %v3345 = vadd.f32 0.0, %v3344
        %v3346 = vpop.f32.mrf.mxu0
        %v3347 = vpop.f32.mrf.mxu0
        %v3348 = vpop.f32.mrf.mxu0
        %3349 = vdwg.mxu0
        %3350 = vrot.lane.b32.xlu0 %v951, 48
        %v3351 = vpop.permute.xlu0 %3350
        %v3353 = vsel %vm959, %v3201, 0
        %v3356 = vsel %vm1450, %v3351, 0
        %3358 = vmatprep.subr.bf16.mxu0 0
        %3359 = vmatpush1.bf16.msra.mxu0 0
        %3360 = vmatprep.subr.bf16.mxu0 0
        %3361 = vmatpush1.bf16.msra.mxu0 0
        %3362 = vmatprep.subr.bf16.mxu0 0
        %3363 = vmatpush1.bf16.msra.mxu0 0
        %3364 = vmatprep.subr.bf16.mxu0 0
        %3365 = vmatpush1.bf16.msra.mxu0 0
        %3366 = vmatprep.subr.bf16.mxu0 0
        %3367 = vmatpush1.bf16.msra.mxu0 0
        %3368 = vmatprep.subr.bf16.mxu0 0
        %3369 = vmatpush1.bf16.msra.mxu0 0
        %3370 = vmatprep.subr.bf16.mxu0 0
        %3371 = vmatpush1.bf16.msra.mxu0 0
        %3372 = vmatprep.subr.bf16.mxu0 0
        %3373 = vmatpush1.bf16.msra.mxu0 %v3356
        %3374 = vmatprep.subr.bf16.mxu0 0
        %3375 = vmatpush2.bf16.msra.mxu0 0
        %3376 = vmatprep.subr.bf16.mxu0 0
        %3377 = vmatpush2.bf16.msra.mxu0 0
        %3378 = vmatprep.subr.bf16.mxu0 0
        %3379 = vmatpush2.bf16.msra.mxu0 0
        %3380 = vmatprep.subr.bf16.mxu0 0
        %3381 = vmatpush2.bf16.msra.mxu0 0
        %3382 = vmatprep.subr.bf16.mxu0 0
        %3383 = vmatpush2.bf16.msra.mxu0 0
        %3384 = vmatprep.subr.bf16.mxu0 0
        %3385 = vmatpush2.bf16.msra.mxu0 0
        %3386 = vmatprep.subr.bf16.mxu0 0
        %3387 = vmatpush2.bf16.msra.mxu0 0
        %3388 = vmatprep.subr.bf16.mxu0 0
        %3389 = vmatpush2.bf16.msra.mxu0 0
        %3390 = vmatprep.mubr.bf16.mxu0 0
        %3391 = vmatmul.mubr.bf16.gmra.mxu0 %v3353
        %v3392 = vpop.f32.mrf.mxu0
        %v3393 = vadd.f32 0.0, %v3392
        %v3394 = vpop.f32.mrf.mxu0
        %v3395 = vpop.f32.mrf.mxu0
        %v3396 = vpop.f32.mrf.mxu0
        %3397 = vdwg.mxu0
        %3398 = vrot.lane.b32.xlu0 %v952, 48
        %v3399 = vpop.permute.xlu0 %3398
        %v3401 = vsel %vm959, %v3202, 0
        %v3404 = vsel %vm1450, %v3399, 0
        %3406 = vmatprep.subr.bf16.mxu0 0
        %3407 = vmatpush1.bf16.msra.mxu0 0
        %3408 = vmatprep.subr.bf16.mxu0 0
        %3409 = vmatpush1.bf16.msra.mxu0 0
        %3410 = vmatprep.subr.bf16.mxu0 0
        %3411 = vmatpush1.bf16.msra.mxu0 0
        %3412 = vmatprep.subr.bf16.mxu0 0
        %3413 = vmatpush1.bf16.msra.mxu0 0
        %3414 = vmatprep.subr.bf16.mxu0 0
        %3415 = vmatpush1.bf16.msra.mxu0 0
        %3416 = vmatprep.subr.bf16.mxu0 0
        %3417 = vmatpush1.bf16.msra.mxu0 0
        %3418 = vmatprep.subr.bf16.mxu0 0
        %3419 = vmatpush1.bf16.msra.mxu0 0
        %3420 = vmatprep.subr.bf16.mxu0 0
        %3421 = vmatpush1.bf16.msra.mxu0 %v3404
        %3422 = vmatprep.subr.bf16.mxu0 0
        %3423 = vmatpush2.bf16.msra.mxu0 0
        %3424 = vmatprep.subr.bf16.mxu0 0
        %3425 = vmatpush2.bf16.msra.mxu0 0
        %3426 = vmatprep.subr.bf16.mxu0 0
        %3427 = vmatpush2.bf16.msra.mxu0 0
        %3428 = vmatprep.subr.bf16.mxu0 0
        %3429 = vmatpush2.bf16.msra.mxu0 0
        %3430 = vmatprep.subr.bf16.mxu0 0
        %3431 = vmatpush2.bf16.msra.mxu0 0
        %3432 = vmatprep.subr.bf16.mxu0 0
        %3433 = vmatpush2.bf16.msra.mxu0 0
        %3434 = vmatprep.subr.bf16.mxu0 0
        %3435 = vmatpush2.bf16.msra.mxu0 0
        %3436 = vmatprep.subr.bf16.mxu0 0
        %3437 = vmatpush2.bf16.msra.mxu0 0
        %3438 = vmatprep.mubr.bf16.mxu0 0
        %3439 = vmatmul.mubr.bf16.gmra.mxu0 %v3401
        %v3440 = vpop.f32.mrf.mxu0
        %v3441 = vadd.f32 0.0, %v3440
        %v3442 = vpop.f32.mrf.mxu0
        %v3443 = vpop.f32.mrf.mxu0
        %v3444 = vpop.f32.mrf.mxu0
        %3445 = vdwg.mxu0
        %3446 = vrot.lane.b32.xlu0 %v953, 48
        %v3447 = vpop.permute.xlu0 %3446
        %v3449 = vsel %vm959, %v3203, 0
        %v3452 = vsel %vm1450, %v3447, 0
        %3454 = vmatprep.subr.bf16.mxu0 0
        %3455 = vmatpush1.bf16.msra.mxu0 0
        %3456 = vmatprep.subr.bf16.mxu0 0
        %3457 = vmatpush1.bf16.msra.mxu0 0
        %3458 = vmatprep.subr.bf16.mxu0 0
        %3459 = vmatpush1.bf16.msra.mxu0 0
        %3460 = vmatprep.subr.bf16.mxu0 0
        %3461 = vmatpush1.bf16.msra.mxu0 0
        %3462 = vmatprep.subr.bf16.mxu0 0
        %3463 = vmatpush1.bf16.msra.mxu0 0
        %3464 = vmatprep.subr.bf16.mxu0 0
        %3465 = vmatpush1.bf16.msra.mxu0 0
        %3466 = vmatprep.subr.bf16.mxu0 0
        %3467 = vmatpush1.bf16.msra.mxu0 0
        %3468 = vmatprep.subr.bf16.mxu0 0
        %3469 = vmatpush1.bf16.msra.mxu0 %v3452
        %3470 = vmatprep.subr.bf16.mxu0 0
        %3471 = vmatpush2.bf16.msra.mxu0 0
        %3472 = vmatprep.subr.bf16.mxu0 0
        %3473 = vmatpush2.bf16.msra.mxu0 0
        %3474 = vmatprep.subr.bf16.mxu0 0
        %3475 = vmatpush2.bf16.msra.mxu0 0
        %3476 = vmatprep.subr.bf16.mxu0 0
        %3477 = vmatpush2.bf16.msra.mxu0 0
        %3478 = vmatprep.subr.bf16.mxu0 0
        %3479 = vmatpush2.bf16.msra.mxu0 0
        %3480 = vmatprep.subr.bf16.mxu0 0
        %3481 = vmatpush2.bf16.msra.mxu0 0
        %3482 = vmatprep.subr.bf16.mxu0 0
        %3483 = vmatpush2.bf16.msra.mxu0 0
        %3484 = vmatprep.subr.bf16.mxu0 0
        %3485 = vmatpush2.bf16.msra.mxu0 0
        %3486 = vmatprep.mubr.bf16.mxu0 0
        %3487 = vmatmul.mubr.bf16.gmra.mxu0 %v3449
        %v3488 = vpop.f32.mrf.mxu0
        %v3489 = vadd.f32 0.0, %v3488
        %v3490 = vpop.f32.mrf.mxu0
        %v3491 = vpop.f32.mrf.mxu0
        %v3492 = vpop.f32.mrf.mxu0
        %3493 = vdwg.mxu0
        %3494 = vrot.lane.b32.xlu0 %v954, 48
        %v3495 = vpop.permute.xlu0 %3494
        %v3497 = vsel %vm959, %v3204, 0
        %v3500 = vsel %vm1450, %v3495, 0
        %3502 = vmatprep.subr.bf16.mxu0 0
        %3503 = vmatpush1.bf16.msra.mxu0 0
        %3504 = vmatprep.subr.bf16.mxu0 0
        %3505 = vmatpush1.bf16.msra.mxu0 0
        %3506 = vmatprep.subr.bf16.mxu0 0
        %3507 = vmatpush1.bf16.msra.mxu0 0
        %3508 = vmatprep.subr.bf16.mxu0 0
        %3509 = vmatpush1.bf16.msra.mxu0 0
        %3510 = vmatprep.subr.bf16.mxu0 0
        %3511 = vmatpush1.bf16.msra.mxu0 0
        %3512 = vmatprep.subr.bf16.mxu0 0
        %3513 = vmatpush1.bf16.msra.mxu0 0
        %3514 = vmatprep.subr.bf16.mxu0 0
        %3515 = vmatpush1.bf16.msra.mxu0 0
        %3516 = vmatprep.subr.bf16.mxu0 0
        %3517 = vmatpush1.bf16.msra.mxu0 %v3500
        %3518 = vmatprep.subr.bf16.mxu0 0
        %3519 = vmatpush2.bf16.msra.mxu0 0
        %3520 = vmatprep.subr.bf16.mxu0 0
        %3521 = vmatpush2.bf16.msra.mxu0 0
        %3522 = vmatprep.subr.bf16.mxu0 0
        %3523 = vmatpush2.bf16.msra.mxu0 0
        %3524 = vmatprep.subr.bf16.mxu0 0
        %3525 = vmatpush2.bf16.msra.mxu0 0
        %3526 = vmatprep.subr.bf16.mxu0 0
        %3527 = vmatpush2.bf16.msra.mxu0 0
        %3528 = vmatprep.subr.bf16.mxu0 0
        %3529 = vmatpush2.bf16.msra.mxu0 0
        %3530 = vmatprep.subr.bf16.mxu0 0
        %3531 = vmatpush2.bf16.msra.mxu0 0
        %3532 = vmatprep.subr.bf16.mxu0 0
        %3533 = vmatpush2.bf16.msra.mxu0 0
        %3534 = vmatprep.mubr.bf16.mxu0 0
        %3535 = vmatmul.mubr.bf16.gmra.mxu0 %v3497
        %v3536 = vpop.f32.mrf.mxu0
        %v3537 = vadd.f32 0.0, %v3536
        %v3538 = vpop.f32.mrf.mxu0
        %v3539 = vpop.f32.mrf.mxu0
        %v3540 = vpop.f32.mrf.mxu0
        %3541 = vdwg.mxu0
        %3542 = vrot.lane.b32.xlu0 %v955, 48
        %v3543 = vpop.permute.xlu0 %3542
        %v3545 = vsel %vm959, %v3205, 0
        %v3548 = vsel %vm1450, %v3543, 0
        %3550 = vmatprep.subr.bf16.mxu0 0
        %3551 = vmatpush1.bf16.msra.mxu0 0
        %3552 = vmatprep.subr.bf16.mxu0 0
        %3553 = vmatpush1.bf16.msra.mxu0 0
        %3554 = vmatprep.subr.bf16.mxu0 0
        %3555 = vmatpush1.bf16.msra.mxu0 0
        %3556 = vmatprep.subr.bf16.mxu0 0
        %3557 = vmatpush1.bf16.msra.mxu0 0
        %3558 = vmatprep.subr.bf16.mxu0 0
        %3559 = vmatpush1.bf16.msra.mxu0 0
        %3560 = vmatprep.subr.bf16.mxu0 0
        %3561 = vmatpush1.bf16.msra.mxu0 0
        %3562 = vmatprep.subr.bf16.mxu0 0
        %3563 = vmatpush1.bf16.msra.mxu0 0
        %3564 = vmatprep.subr.bf16.mxu0 0
        %3565 = vmatpush1.bf16.msra.mxu0 %v3548
        %3566 = vmatprep.subr.bf16.mxu0 0
        %3567 = vmatpush2.bf16.msra.mxu0 0
        %3568 = vmatprep.subr.bf16.mxu0 0
        %3569 = vmatpush2.bf16.msra.mxu0 0
        %3570 = vmatprep.subr.bf16.mxu0 0
        %3571 = vmatpush2.bf16.msra.mxu0 0
        %3572 = vmatprep.subr.bf16.mxu0 0
        %3573 = vmatpush2.bf16.msra.mxu0 0
        %3574 = vmatprep.subr.bf16.mxu0 0
        %3575 = vmatpush2.bf16.msra.mxu0 0
        %3576 = vmatprep.subr.bf16.mxu0 0
        %3577 = vmatpush2.bf16.msra.mxu0 0
        %3578 = vmatprep.subr.bf16.mxu0 0
        %3579 = vmatpush2.bf16.msra.mxu0 0
        %3580 = vmatprep.subr.bf16.mxu0 0
        %3581 = vmatpush2.bf16.msra.mxu0 0
        %3582 = vmatprep.mubr.bf16.mxu0 0
        %3583 = vmatmul.mubr.bf16.gmra.mxu0 %v3545
        %v3584 = vpop.f32.mrf.mxu0
        %v3585 = vadd.f32 0.0, %v3584
        %v3586 = vpop.f32.mrf.mxu0
        %v3587 = vpop.f32.mrf.mxu0
        %v3588 = vpop.f32.mrf.mxu0
        %3589 = vdwg.mxu0
        %3590 = vrot.lane.b32.xlu0 %v948, 104
        %v3591 = vpop.permute.xlu0 %3590
        %3592 = vrot.lane.b32.xlu0 %v948, 72
        %v3593 = vpop.permute.xlu0 %3592
        %v3595 = vsel %vm959, %v3591, 0
        %v3598 = vsel %vm959, %v3593, 0
        %3600 = vmatprep.subr.bf16.mxu0 0
        %3601 = vmatpush1.bf16.xpose.msra.mxu0 0
        %3602 = vmatprep.subr.bf16.mxu0 0
        %3603 = vmatpush1.bf16.xpose.msra.mxu0 0
        %3604 = vmatprep.subr.bf16.mxu0 0
        %3605 = vmatpush1.bf16.xpose.msra.mxu0 0
        %3606 = vmatprep.subr.bf16.mxu0 0
        %3607 = vmatpush1.bf16.xpose.msra.mxu0 0
        %3608 = vmatprep.subr.bf16.mxu0 0
        %3609 = vmatpush1.bf16.xpose.msra.mxu0 0
        %3610 = vmatprep.subr.bf16.mxu0 0
        %3611 = vmatpush1.bf16.xpose.msra.mxu0 0
        %3612 = vmatprep.subr.bf16.mxu0 0
        %3613 = vmatpush1.bf16.xpose.msra.mxu0 0
        %3614 = vmatprep.subr.bf16.mxu0 0
        %3615 = vmatpush1.bf16.xpose.msra.mxu0 %v3598
        %3616 = vmatprep.subr.bf16.mxu0 0
        %3617 = vmatpush2.bf16.xpose.msra.mxu0 0
        %3618 = vmatprep.subr.bf16.mxu0 0
        %3619 = vmatpush2.bf16.xpose.msra.mxu0 0
        %3620 = vmatprep.subr.bf16.mxu0 0
        %3621 = vmatpush2.bf16.xpose.msra.mxu0 0
        %3622 = vmatprep.subr.bf16.mxu0 0
        %3623 = vmatpush2.bf16.xpose.msra.mxu0 0
        %3624 = vmatprep.subr.bf16.mxu0 0
        %3625 = vmatpush2.bf16.xpose.msra.mxu0 0
        %3626 = vmatprep.subr.bf16.mxu0 0
        %3627 = vmatpush2.bf16.xpose.msra.mxu0 0
        %3628 = vmatprep.subr.bf16.mxu0 0
        %3629 = vmatpush2.bf16.xpose.msra.mxu0 0
        %3630 = vmatprep.subr.bf16.mxu0 0
        %3631 = vmatpush2.bf16.xpose.msra.mxu0 0
        %3632 = vmatprep.mubr.bf16.mxu0 0
        %3633 = vmatmul.mubr.bf16.gmra.mxu0 %v3595
        %v3634 = vpop.f32.mrf.mxu0
        %v3635 = vadd.f32 %v835, %v3634
        %v3636 = vpop.f32.mrf.mxu0
        %v3637 = vpop.f32.mrf.mxu0
        %v3638 = vpop.f32.mrf.mxu0
        %3639 = vdwg.mxu0
        %3640 = vrot.lane.b32.xlu0 %v949, 104
        %v3641 = vpop.permute.xlu0 %3640
        %3642 = vrot.lane.b32.xlu0 %v949, 72
        %v3643 = vpop.permute.xlu0 %3642
        %v3645 = vsel %vm959, %v3641, 0
        %v3648 = vsel %vm959, %v3643, 0
        %3650 = vmatprep.subr.bf16.mxu0 0
        %3651 = vmatpush1.bf16.xpose.msra.mxu0 0
        %3652 = vmatprep.subr.bf16.mxu0 0
        %3653 = vmatpush1.bf16.xpose.msra.mxu0 0
        %3654 = vmatprep.subr.bf16.mxu0 0
        %3655 = vmatpush1.bf16.xpose.msra.mxu0 0
        %3656 = vmatprep.subr.bf16.mxu0 0
        %3657 = vmatpush1.bf16.xpose.msra.mxu0 0
        %3658 = vmatprep.subr.bf16.mxu0 0
        %3659 = vmatpush1.bf16.xpose.msra.mxu0 0
        %3660 = vmatprep.subr.bf16.mxu0 0
        %3661 = vmatpush1.bf16.xpose.msra.mxu0 0
        %3662 = vmatprep.subr.bf16.mxu0 0
        %3663 = vmatpush1.bf16.xpose.msra.mxu0 0
        %3664 = vmatprep.subr.bf16.mxu0 0
        %3665 = vmatpush1.bf16.xpose.msra.mxu0 %v3648
        %3666 = vmatprep.subr.bf16.mxu0 0
        %3667 = vmatpush2.bf16.xpose.msra.mxu0 0
        %3668 = vmatprep.subr.bf16.mxu0 0
        %3669 = vmatpush2.bf16.xpose.msra.mxu0 0
        %3670 = vmatprep.subr.bf16.mxu0 0
        %3671 = vmatpush2.bf16.xpose.msra.mxu0 0
        %3672 = vmatprep.subr.bf16.mxu0 0
        %3673 = vmatpush2.bf16.xpose.msra.mxu0 0
        %3674 = vmatprep.subr.bf16.mxu0 0
        %3675 = vmatpush2.bf16.xpose.msra.mxu0 0
        %3676 = vmatprep.subr.bf16.mxu0 0
        %3677 = vmatpush2.bf16.xpose.msra.mxu0 0
        %3678 = vmatprep.subr.bf16.mxu0 0
        %3679 = vmatpush2.bf16.xpose.msra.mxu0 0
        %3680 = vmatprep.subr.bf16.mxu0 0
        %3681 = vmatpush2.bf16.xpose.msra.mxu0 0
        %3682 = vmatprep.mubr.bf16.mxu0 0
        %3683 = vmatmul.mubr.bf16.gmra.mxu0 %v3645
        %v3684 = vpop.f32.mrf.mxu0
        %v3685 = vadd.f32 %v836, %v3684
        %v3686 = vpop.f32.mrf.mxu0
        %v3687 = vpop.f32.mrf.mxu0
        %v3688 = vpop.f32.mrf.mxu0
        %3689 = vdwg.mxu0
        %3690 = vrot.lane.b32.xlu0 %v950, 104
        %v3691 = vpop.permute.xlu0 %3690
        %3692 = vrot.lane.b32.xlu0 %v950, 72
        %v3693 = vpop.permute.xlu0 %3692
        %v3695 = vsel %vm959, %v3691, 0
        %v3698 = vsel %vm959, %v3693, 0
        %3700 = vmatprep.subr.bf16.mxu0 0
        %3701 = vmatpush1.bf16.xpose.msra.mxu0 0
        %3702 = vmatprep.subr.bf16.mxu0 0
        %3703 = vmatpush1.bf16.xpose.msra.mxu0 0
        %3704 = vmatprep.subr.bf16.mxu0 0
        %3705 = vmatpush1.bf16.xpose.msra.mxu0 0
        %3706 = vmatprep.subr.bf16.mxu0 0
        %3707 = vmatpush1.bf16.xpose.msra.mxu0 0
        %3708 = vmatprep.subr.bf16.mxu0 0
        %3709 = vmatpush1.bf16.xpose.msra.mxu0 0
        %3710 = vmatprep.subr.bf16.mxu0 0
        %3711 = vmatpush1.bf16.xpose.msra.mxu0 0
        %3712 = vmatprep.subr.bf16.mxu0 0
        %3713 = vmatpush1.bf16.xpose.msra.mxu0 0
        %3714 = vmatprep.subr.bf16.mxu0 0
        %3715 = vmatpush1.bf16.xpose.msra.mxu0 %v3698
        %3716 = vmatprep.subr.bf16.mxu0 0
        %3717 = vmatpush2.bf16.xpose.msra.mxu0 0
        %3718 = vmatprep.subr.bf16.mxu0 0
        %3719 = vmatpush2.bf16.xpose.msra.mxu0 0
        %3720 = vmatprep.subr.bf16.mxu0 0
        %3721 = vmatpush2.bf16.xpose.msra.mxu0 0
        %3722 = vmatprep.subr.bf16.mxu0 0
        %3723 = vmatpush2.bf16.xpose.msra.mxu0 0
        %3724 = vmatprep.subr.bf16.mxu0 0
        %3725 = vmatpush2.bf16.xpose.msra.mxu0 0
        %3726 = vmatprep.subr.bf16.mxu0 0
        %3727 = vmatpush2.bf16.xpose.msra.mxu0 0
        %3728 = vmatprep.subr.bf16.mxu0 0
        %3729 = vmatpush2.bf16.xpose.msra.mxu0 0
        %3730 = vmatprep.subr.bf16.mxu0 0
        %3731 = vmatpush2.bf16.xpose.msra.mxu0 0
        %3732 = vmatprep.mubr.bf16.mxu0 0
        %3733 = vmatmul.mubr.bf16.gmra.mxu0 %v3695
        %v3734 = vpop.f32.mrf.mxu0
        %v3735 = vadd.f32 %v837, %v3734
        %v3736 = vpop.f32.mrf.mxu0
        %v3737 = vpop.f32.mrf.mxu0
        %v3738 = vpop.f32.mrf.mxu0
        %3739 = vdwg.mxu0
        %3740 = vrot.lane.b32.xlu0 %v951, 104
        %v3741 = vpop.permute.xlu0 %3740
        %3742 = vrot.lane.b32.xlu0 %v951, 72
        %v3743 = vpop.permute.xlu0 %3742
        %v3745 = vsel %vm959, %v3741, 0
        %v3748 = vsel %vm959, %v3743, 0
        %3750 = vmatprep.subr.bf16.mxu0 0
        %3751 = vmatpush1.bf16.xpose.msra.mxu0 0
        %3752 = vmatprep.subr.bf16.mxu0 0
        %3753 = vmatpush1.bf16.xpose.msra.mxu0 0
        %3754 = vmatprep.subr.bf16.mxu0 0
        %3755 = vmatpush1.bf16.xpose.msra.mxu0 0
        %3756 = vmatprep.subr.bf16.mxu0 0
        %3757 = vmatpush1.bf16.xpose.msra.mxu0 0
        %3758 = vmatprep.subr.bf16.mxu0 0
        %3759 = vmatpush1.bf16.xpose.msra.mxu0 0
        %3760 = vmatprep.subr.bf16.mxu0 0
        %3761 = vmatpush1.bf16.xpose.msra.mxu0 0
        %3762 = vmatprep.subr.bf16.mxu0 0
        %3763 = vmatpush1.bf16.xpose.msra.mxu0 0
        %3764 = vmatprep.subr.bf16.mxu0 0
        %3765 = vmatpush1.bf16.xpose.msra.mxu0 %v3748
        %3766 = vmatprep.subr.bf16.mxu0 0
        %3767 = vmatpush2.bf16.xpose.msra.mxu0 0
        %3768 = vmatprep.subr.bf16.mxu0 0
        %3769 = vmatpush2.bf16.xpose.msra.mxu0 0
        %3770 = vmatprep.subr.bf16.mxu0 0
        %3771 = vmatpush2.bf16.xpose.msra.mxu0 0
        %3772 = vmatprep.subr.bf16.mxu0 0
        %3773 = vmatpush2.bf16.xpose.msra.mxu0 0
        %3774 = vmatprep.subr.bf16.mxu0 0
        %3775 = vmatpush2.bf16.xpose.msra.mxu0 0
        %3776 = vmatprep.subr.bf16.mxu0 0
        %3777 = vmatpush2.bf16.xpose.msra.mxu0 0
        %3778 = vmatprep.subr.bf16.mxu0 0
        %3779 = vmatpush2.bf16.xpose.msra.mxu0 0
        %3780 = vmatprep.subr.bf16.mxu0 0
        %3781 = vmatpush2.bf16.xpose.msra.mxu0 0
        %3782 = vmatprep.mubr.bf16.mxu0 0
        %3783 = vmatmul.mubr.bf16.gmra.mxu0 %v3745
        %v3784 = vpop.f32.mrf.mxu0
        %v3785 = vadd.f32 %v838, %v3784
        %v3786 = vpop.f32.mrf.mxu0
        %v3787 = vpop.f32.mrf.mxu0
        %v3788 = vpop.f32.mrf.mxu0
        %3789 = vdwg.mxu0
        %3790 = vrot.lane.b32.xlu0 %v952, 104
        %v3791 = vpop.permute.xlu0 %3790
        %3792 = vrot.lane.b32.xlu0 %v952, 72
        %v3793 = vpop.permute.xlu0 %3792
        %v3795 = vsel %vm959, %v3791, 0
        %v3798 = vsel %vm959, %v3793, 0
        %3800 = vmatprep.subr.bf16.mxu0 0
        %3801 = vmatpush1.bf16.xpose.msra.mxu0 0
        %3802 = vmatprep.subr.bf16.mxu0 0
        %3803 = vmatpush1.bf16.xpose.msra.mxu0 0
        %3804 = vmatprep.subr.bf16.mxu0 0
        %3805 = vmatpush1.bf16.xpose.msra.mxu0 0
        %3806 = vmatprep.subr.bf16.mxu0 0
        %3807 = vmatpush1.bf16.xpose.msra.mxu0 0
        %3808 = vmatprep.subr.bf16.mxu0 0
        %3809 = vmatpush1.bf16.xpose.msra.mxu0 0
        %3810 = vmatprep.subr.bf16.mxu0 0
        %3811 = vmatpush1.bf16.xpose.msra.mxu0 0
        %3812 = vmatprep.subr.bf16.mxu0 0
        %3813 = vmatpush1.bf16.xpose.msra.mxu0 0
        %3814 = vmatprep.subr.bf16.mxu0 0
        %3815 = vmatpush1.bf16.xpose.msra.mxu0 %v3798
        %3816 = vmatprep.subr.bf16.mxu0 0
        %3817 = vmatpush2.bf16.xpose.msra.mxu0 0
        %3818 = vmatprep.subr.bf16.mxu0 0
        %3819 = vmatpush2.bf16.xpose.msra.mxu0 0
        %3820 = vmatprep.subr.bf16.mxu0 0
        %3821 = vmatpush2.bf16.xpose.msra.mxu0 0
        %3822 = vmatprep.subr.bf16.mxu0 0
        %3823 = vmatpush2.bf16.xpose.msra.mxu0 0
        %3824 = vmatprep.subr.bf16.mxu0 0
        %3825 = vmatpush2.bf16.xpose.msra.mxu0 0
        %3826 = vmatprep.subr.bf16.mxu0 0
        %3827 = vmatpush2.bf16.xpose.msra.mxu0 0
        %3828 = vmatprep.subr.bf16.mxu0 0
        %3829 = vmatpush2.bf16.xpose.msra.mxu0 0
        %3830 = vmatprep.subr.bf16.mxu0 0
        %3831 = vmatpush2.bf16.xpose.msra.mxu0 0
        %3832 = vmatprep.mubr.bf16.mxu0 0
        %3833 = vmatmul.mubr.bf16.gmra.mxu0 %v3795
        %v3834 = vpop.f32.mrf.mxu0
        %v3835 = vadd.f32 %v839, %v3834
        %v3836 = vpop.f32.mrf.mxu0
        %v3837 = vpop.f32.mrf.mxu0
        %v3838 = vpop.f32.mrf.mxu0
        %3839 = vdwg.mxu0
        %3840 = vrot.lane.b32.xlu0 %v953, 104
        %v3841 = vpop.permute.xlu0 %3840
        %3842 = vrot.lane.b32.xlu0 %v953, 72
        %v3843 = vpop.permute.xlu0 %3842
        %v3845 = vsel %vm959, %v3841, 0
        %v3848 = vsel %vm959, %v3843, 0
        %3850 = vmatprep.subr.bf16.mxu0 0
        %3851 = vmatpush1.bf16.xpose.msra.mxu0 0
        %3852 = vmatprep.subr.bf16.mxu0 0
        %3853 = vmatpush1.bf16.xpose.msra.mxu0 0
        %3854 = vmatprep.subr.bf16.mxu0 0
        %3855 = vmatpush1.bf16.xpose.msra.mxu0 0
        %3856 = vmatprep.subr.bf16.mxu0 0
        %3857 = vmatpush1.bf16.xpose.msra.mxu0 0
        %3858 = vmatprep.subr.bf16.mxu0 0
        %3859 = vmatpush1.bf16.xpose.msra.mxu0 0
        %3860 = vmatprep.subr.bf16.mxu0 0
        %3861 = vmatpush1.bf16.xpose.msra.mxu0 0
        %3862 = vmatprep.subr.bf16.mxu0 0
        %3863 = vmatpush1.bf16.xpose.msra.mxu0 0
        %3864 = vmatprep.subr.bf16.mxu0 0
        %3865 = vmatpush1.bf16.xpose.msra.mxu0 %v3848
        %3866 = vmatprep.subr.bf16.mxu0 0
        %3867 = vmatpush2.bf16.xpose.msra.mxu0 0
        %3868 = vmatprep.subr.bf16.mxu0 0
        %3869 = vmatpush2.bf16.xpose.msra.mxu0 0
        %3870 = vmatprep.subr.bf16.mxu0 0
        %3871 = vmatpush2.bf16.xpose.msra.mxu0 0
        %3872 = vmatprep.subr.bf16.mxu0 0
        %3873 = vmatpush2.bf16.xpose.msra.mxu0 0
        %3874 = vmatprep.subr.bf16.mxu0 0
        %3875 = vmatpush2.bf16.xpose.msra.mxu0 0
        %3876 = vmatprep.subr.bf16.mxu0 0
        %3877 = vmatpush2.bf16.xpose.msra.mxu0 0
        %3878 = vmatprep.subr.bf16.mxu0 0
        %3879 = vmatpush2.bf16.xpose.msra.mxu0 0
        %3880 = vmatprep.subr.bf16.mxu0 0
        %3881 = vmatpush2.bf16.xpose.msra.mxu0 0
        %3882 = vmatprep.mubr.bf16.mxu0 0
        %3883 = vmatmul.mubr.bf16.gmra.mxu0 %v3845
        %v3884 = vpop.f32.mrf.mxu0
        %v3885 = vadd.f32 %v840, %v3884
        %v3886 = vpop.f32.mrf.mxu0
        %v3887 = vpop.f32.mrf.mxu0
        %v3888 = vpop.f32.mrf.mxu0
        %3889 = vdwg.mxu0
        %3890 = vrot.lane.b32.xlu0 %v954, 104
        %v3891 = vpop.permute.xlu0 %3890
        %3892 = vrot.lane.b32.xlu0 %v954, 72
        %v3893 = vpop.permute.xlu0 %3892
        %v3895 = vsel %vm959, %v3891, 0
        %v3898 = vsel %vm959, %v3893, 0
        %3900 = vmatprep.subr.bf16.mxu0 0
        %3901 = vmatpush1.bf16.xpose.msra.mxu0 0
        %3902 = vmatprep.subr.bf16.mxu0 0
        %3903 = vmatpush1.bf16.xpose.msra.mxu0 0
        %3904 = vmatprep.subr.bf16.mxu0 0
        %3905 = vmatpush1.bf16.xpose.msra.mxu0 0
        %3906 = vmatprep.subr.bf16.mxu0 0
        %3907 = vmatpush1.bf16.xpose.msra.mxu0 0
        %3908 = vmatprep.subr.bf16.mxu0 0
        %3909 = vmatpush1.bf16.xpose.msra.mxu0 0
        %3910 = vmatprep.subr.bf16.mxu0 0
        %3911 = vmatpush1.bf16.xpose.msra.mxu0 0
        %3912 = vmatprep.subr.bf16.mxu0 0
        %3913 = vmatpush1.bf16.xpose.msra.mxu0 0
        %3914 = vmatprep.subr.bf16.mxu0 0
        %3915 = vmatpush1.bf16.xpose.msra.mxu0 %v3898
        %3916 = vmatprep.subr.bf16.mxu0 0
        %3917 = vmatpush2.bf16.xpose.msra.mxu0 0
        %3918 = vmatprep.subr.bf16.mxu0 0
        %3919 = vmatpush2.bf16.xpose.msra.mxu0 0
        %3920 = vmatprep.subr.bf16.mxu0 0
        %3921 = vmatpush2.bf16.xpose.msra.mxu0 0
        %3922 = vmatprep.subr.bf16.mxu0 0
        %3923 = vmatpush2.bf16.xpose.msra.mxu0 0
        %3924 = vmatprep.subr.bf16.mxu0 0
        %3925 = vmatpush2.bf16.xpose.msra.mxu0 0
        %3926 = vmatprep.subr.bf16.mxu0 0
        %3927 = vmatpush2.bf16.xpose.msra.mxu0 0
        %3928 = vmatprep.subr.bf16.mxu0 0
        %3929 = vmatpush2.bf16.xpose.msra.mxu0 0
        %3930 = vmatprep.subr.bf16.mxu0 0
        %3931 = vmatpush2.bf16.xpose.msra.mxu0 0
        %3932 = vmatprep.mubr.bf16.mxu0 0
        %3933 = vmatmul.mubr.bf16.gmra.mxu0 %v3895
        %v3934 = vpop.f32.mrf.mxu0
        %v3935 = vadd.f32 %v841, %v3934
        %v3936 = vpop.f32.mrf.mxu0
        %v3937 = vpop.f32.mrf.mxu0
        %v3938 = vpop.f32.mrf.mxu0
        %3939 = vdwg.mxu0
        %3940 = vrot.lane.b32.xlu0 %v955, 104
        %v3941 = vpop.permute.xlu0 %3940
        %3942 = vrot.lane.b32.xlu0 %v955, 72
        %v3943 = vpop.permute.xlu0 %3942
        %v3945 = vsel %vm959, %v3941, 0
        %v3948 = vsel %vm959, %v3943, 0
        %3950 = vmatprep.subr.bf16.mxu0 0
        %3951 = vmatpush1.bf16.xpose.msra.mxu0 0
        %3952 = vmatprep.subr.bf16.mxu0 0
        %3953 = vmatpush1.bf16.xpose.msra.mxu0 0
        %3954 = vmatprep.subr.bf16.mxu0 0
        %3955 = vmatpush1.bf16.xpose.msra.mxu0 0
        %3956 = vmatprep.subr.bf16.mxu0 0
        %3957 = vmatpush1.bf16.xpose.msra.mxu0 0
        %3958 = vmatprep.subr.bf16.mxu0 0
        %3959 = vmatpush1.bf16.xpose.msra.mxu0 0
        %3960 = vmatprep.subr.bf16.mxu0 0
        %3961 = vmatpush1.bf16.xpose.msra.mxu0 0
        %3962 = vmatprep.subr.bf16.mxu0 0
        %3963 = vmatpush1.bf16.xpose.msra.mxu0 0
        %3964 = vmatprep.subr.bf16.mxu0 0
        %3965 = vmatpush1.bf16.xpose.msra.mxu0 %v3948
        %3966 = vmatprep.subr.bf16.mxu0 0
        %3967 = vmatpush2.bf16.xpose.msra.mxu0 0
        %3968 = vmatprep.subr.bf16.mxu0 0
        %3969 = vmatpush2.bf16.xpose.msra.mxu0 0
        %3970 = vmatprep.subr.bf16.mxu0 0
        %3971 = vmatpush2.bf16.xpose.msra.mxu0 0
        %3972 = vmatprep.subr.bf16.mxu0 0
        %3973 = vmatpush2.bf16.xpose.msra.mxu0 0
        %3974 = vmatprep.subr.bf16.mxu0 0
        %3975 = vmatpush2.bf16.xpose.msra.mxu0 0
        %3976 = vmatprep.subr.bf16.mxu0 0
        %3977 = vmatpush2.bf16.xpose.msra.mxu0 0
        %3978 = vmatprep.subr.bf16.mxu0 0
        %3979 = vmatpush2.bf16.xpose.msra.mxu0 0
        %3980 = vmatprep.subr.bf16.mxu0 0
        %3981 = vmatpush2.bf16.xpose.msra.mxu0 0
        %3982 = vmatprep.mubr.bf16.mxu0 0
        %3983 = vmatmul.mubr.bf16.gmra.mxu0 %v3945
        %v3984 = vpop.f32.mrf.mxu0
        %v3985 = vadd.f32 %v842, %v3984
        %v3986 = vpop.f32.mrf.mxu0
        %v3987 = vpop.f32.mrf.mxu0
        %v3988 = vpop.f32.mrf.mxu0
        %3989 = vdwg.mxu0
        %v3990 = vsel %vm959, %v3635, -inf
        %3991 = vmax.xlane.f32.xlu0 %v3990
        %v3992 = vpop.xlane.xlu0 %3991
        %v3993 = vsel %vm959, %v3685, -inf
        %3994 = vmax.xlane.f32.xlu0 %v3993
        %v3995 = vpop.xlane.xlu0 %3994
        %v3996 = vsel %vm959, %v3735, -inf
        %3997 = vmax.xlane.f32.xlu0 %v3996
        %v3998 = vpop.xlane.xlu0 %3997
        %v3999 = vsel %vm959, %v3785, -inf
        %4000 = vmax.xlane.f32.xlu0 %v3999
        %v4001 = vpop.xlane.xlu0 %4000
        %v4002 = vsel %vm959, %v3835, -inf
        %4003 = vmax.xlane.f32.xlu0 %v4002
        %v4004 = vpop.xlane.xlu0 %4003
        %v4005 = vsel %vm959, %v3885, -inf
        %4006 = vmax.xlane.f32.xlu0 %v4005
        %v4007 = vpop.xlane.xlu0 %4006
        %v4008 = vsel %vm959, %v3935, -inf
        %4009 = vmax.xlane.f32.xlu0 %v4008
        %v4010 = vpop.xlane.xlu0 %4009
        %v4011 = vsel %vm959, %v3985, -inf
        %4012 = vmax.xlane.f32.xlu0 %v4011
        %v4013 = vpop.xlane.xlu0 %4012
        %v4014 = vsub.f32 %v3635, %v3992
        %v4015 = vsub.f32 %v3685, %v3995
        %v4016 = vsub.f32 %v3735, %v3998
        %v4017 = vsub.f32 %v3785, %v4001
        %v4018 = vsub.f32 %v3835, %v4004
        %v4019 = vsub.f32 %v3885, %v4007
        %v4020 = vsub.f32 %v3935, %v4010
        %v4021 = vsub.f32 %v3985, %v4013
        %v4022 = vmul.f32 %v4014, 1.442695
        %v4023 = vpow.pop %v4022
        %v4024 = vmul.f32 %v4015, 1.442695
        %v4025 = vpow.pop %v4024
        %v4026 = vmul.f32 %v4016, 1.442695
        %v4027 = vpow.pop %v4026
        %v4028 = vmul.f32 %v4017, 1.442695
        %v4029 = vpow.pop %v4028
        %v4030 = vmul.f32 %v4018, 1.442695
        %v4031 = vpow.pop %v4030
        %v4032 = vmul.f32 %v4019, 1.442695
        %v4033 = vpow.pop %v4032
        %v4034 = vmul.f32 %v4020, 1.442695
        %v4035 = vpow.pop %v4034
        %v4036 = vmul.f32 %v4021, 1.442695
        %v4037 = vpow.pop %v4036
        %v4038 = vsel %vm959, %v4023, 0.0
        %4039 = vadd.xlane.f32.xlu0 %v4038
        %v4040 = vpop.xlane.xlu0 %4039
        %v4041 = vsel %vm959, %v4025, 0.0
        %4042 = vadd.xlane.f32.xlu0 %v4041
        %v4043 = vpop.xlane.xlu0 %4042
        %v4044 = vsel %vm959, %v4027, 0.0
        %4045 = vadd.xlane.f32.xlu0 %v4044
        %v4046 = vpop.xlane.xlu0 %4045
        %v4047 = vsel %vm959, %v4029, 0.0
        %4048 = vadd.xlane.f32.xlu0 %v4047
        %v4049 = vpop.xlane.xlu0 %4048
        %v4050 = vsel %vm959, %v4031, 0.0
        %4051 = vadd.xlane.f32.xlu0 %v4050
        %v4052 = vpop.xlane.xlu0 %4051
        %v4053 = vsel %vm959, %v4033, 0.0
        %4054 = vadd.xlane.f32.xlu0 %v4053
        %v4055 = vpop.xlane.xlu0 %4054
        %v4056 = vsel %vm959, %v4035, 0.0
        %4057 = vadd.xlane.f32.xlu0 %v4056
        %v4058 = vpop.xlane.xlu0 %4057
        %v4059 = vsel %vm959, %v4037, 0.0
        %4060 = vadd.xlane.f32.xlu0 %v4059
        %v4061 = vpop.xlane.xlu0 %4060
        %v4062 = vrcp.pop %v4040
        %v4063 = vrcp.pop %v4043
        %v4064 = vrcp.pop %v4046
        %v4065 = vrcp.pop %v4049
        %v4066 = vrcp.pop %v4052
        %v4067 = vrcp.pop %v4055
        %v4068 = vrcp.pop %v4058
        %v4069 = vrcp.pop %v4061
        %v4070 = vmul.f32 %v4023, %v4062
        %v4071 = vmul.f32 %v4025, %v4063
        %v4072 = vmul.f32 %v4027, %v4064
        %v4073 = vmul.f32 %v4029, %v4065
        %v4074 = vmul.f32 %v4031, %v4066
        %v4075 = vmul.f32 %v4033, %v4067
        %v4076 = vmul.f32 %v4035, %v4068
        %v4077 = vmul.f32 %v4037, %v4069
        %v4078 = vpack.c.bf16 %v4070, %v4070
        %v4079 = vpack.c.bf16 %v4071, %v4071
        %v4080 = vpack.c.bf16 %v4072, %v4072
        %v4081 = vpack.c.bf16 %v4073, %v4073
        %v4082 = vpack.c.bf16 %v4074, %v4074
        %v4083 = vpack.c.bf16 %v4075, %v4075
        %v4084 = vpack.c.bf16 %v4076, %v4076
        %v4085 = vpack.c.bf16 %v4077, %v4077
        %4086 = vrot.lane.b32.xlu0 %v948, 40
        %v4087 = vpop.permute.xlu0 %4086
        %v4089 = vsel %vm959, %v4078, 0
        %v4092 = vsel %vm1450, %v4087, 0
        %4094 = vmatprep.subr.bf16.mxu0 0
        %4095 = vmatpush1.bf16.msra.mxu0 0
        %4096 = vmatprep.subr.bf16.mxu0 0
        %4097 = vmatpush1.bf16.msra.mxu0 0
        %4098 = vmatprep.subr.bf16.mxu0 0
        %4099 = vmatpush1.bf16.msra.mxu0 0
        %4100 = vmatprep.subr.bf16.mxu0 0
        %4101 = vmatpush1.bf16.msra.mxu0 0
        %4102 = vmatprep.subr.bf16.mxu0 0
        %4103 = vmatpush1.bf16.msra.mxu0 0
        %4104 = vmatprep.subr.bf16.mxu0 0
        %4105 = vmatpush1.bf16.msra.mxu0 0
        %4106 = vmatprep.subr.bf16.mxu0 0
        %4107 = vmatpush1.bf16.msra.mxu0 0
        %4108 = vmatprep.subr.bf16.mxu0 0
        %4109 = vmatpush1.bf16.msra.mxu0 %v4092
        %4110 = vmatprep.subr.bf16.mxu0 0
        %4111 = vmatpush2.bf16.msra.mxu0 0
        %4112 = vmatprep.subr.bf16.mxu0 0
        %4113 = vmatpush2.bf16.msra.mxu0 0
        %4114 = vmatprep.subr.bf16.mxu0 0
        %4115 = vmatpush2.bf16.msra.mxu0 0
        %4116 = vmatprep.subr.bf16.mxu0 0
        %4117 = vmatpush2.bf16.msra.mxu0 0
        %4118 = vmatprep.subr.bf16.mxu0 0
        %4119 = vmatpush2.bf16.msra.mxu0 0
        %4120 = vmatprep.subr.bf16.mxu0 0
        %4121 = vmatpush2.bf16.msra.mxu0 0
        %4122 = vmatprep.subr.bf16.mxu0 0
        %4123 = vmatpush2.bf16.msra.mxu0 0
        %4124 = vmatprep.subr.bf16.mxu0 0
        %4125 = vmatpush2.bf16.msra.mxu0 0
        %4126 = vmatprep.mubr.bf16.mxu0 0
        %4127 = vmatmul.mubr.bf16.gmra.mxu0 %v4089
        %v4128 = vpop.f32.mrf.mxu0
        %v4129 = vadd.f32 0.0, %v4128
        %v4130 = vpop.f32.mrf.mxu0
        %v4131 = vpop.f32.mrf.mxu0
        %v4132 = vpop.f32.mrf.mxu0
        %4133 = vdwg.mxu0
        %4134 = vrot.lane.b32.xlu0 %v949, 40
        %v4135 = vpop.permute.xlu0 %4134
        %v4137 = vsel %vm959, %v4079, 0
        %v4140 = vsel %vm1450, %v4135, 0
        %4142 = vmatprep.subr.bf16.mxu0 0
        %4143 = vmatpush1.bf16.msra.mxu0 0
        %4144 = vmatprep.subr.bf16.mxu0 0
        %4145 = vmatpush1.bf16.msra.mxu0 0
        %4146 = vmatprep.subr.bf16.mxu0 0
        %4147 = vmatpush1.bf16.msra.mxu0 0
        %4148 = vmatprep.subr.bf16.mxu0 0
        %4149 = vmatpush1.bf16.msra.mxu0 0
        %4150 = vmatprep.subr.bf16.mxu0 0
        %4151 = vmatpush1.bf16.msra.mxu0 0
        %4152 = vmatprep.subr.bf16.mxu0 0
        %4153 = vmatpush1.bf16.msra.mxu0 0
        %4154 = vmatprep.subr.bf16.mxu0 0
        %4155 = vmatpush1.bf16.msra.mxu0 0
        %4156 = vmatprep.subr.bf16.mxu0 0
        %4157 = vmatpush1.bf16.msra.mxu0 %v4140
        %4158 = vmatprep.subr.bf16.mxu0 0
        %4159 = vmatpush2.bf16.msra.mxu0 0
        %4160 = vmatprep.subr.bf16.mxu0 0
        %4161 = vmatpush2.bf16.msra.mxu0 0
        %4162 = vmatprep.subr.bf16.mxu0 0
        %4163 = vmatpush2.bf16.msra.mxu0 0
        %4164 = vmatprep.subr.bf16.mxu0 0
        %4165 = vmatpush2.bf16.msra.mxu0 0
        %4166 = vmatprep.subr.bf16.mxu0 0
        %4167 = vmatpush2.bf16.msra.mxu0 0
        %4168 = vmatprep.subr.bf16.mxu0 0
        %4169 = vmatpush2.bf16.msra.mxu0 0
        %4170 = vmatprep.subr.bf16.mxu0 0
        %4171 = vmatpush2.bf16.msra.mxu0 0
        %4172 = vmatprep.subr.bf16.mxu0 0
        %4173 = vmatpush2.bf16.msra.mxu0 0
        %4174 = vmatprep.mubr.bf16.mxu0 0
        %4175 = vmatmul.mubr.bf16.gmra.mxu0 %v4137
        %v4176 = vpop.f32.mrf.mxu0
        %v4177 = vadd.f32 0.0, %v4176
        %v4178 = vpop.f32.mrf.mxu0
        %v4179 = vpop.f32.mrf.mxu0
        %v4180 = vpop.f32.mrf.mxu0
        %4181 = vdwg.mxu0
        %4182 = vrot.lane.b32.xlu0 %v950, 40
        %v4183 = vpop.permute.xlu0 %4182
        %v4185 = vsel %vm959, %v4080, 0
        %v4188 = vsel %vm1450, %v4183, 0
        %4190 = vmatprep.subr.bf16.mxu0 0
        %4191 = vmatpush1.bf16.msra.mxu0 0
        %4192 = vmatprep.subr.bf16.mxu0 0
        %4193 = vmatpush1.bf16.msra.mxu0 0
        %4194 = vmatprep.subr.bf16.mxu0 0
        %4195 = vmatpush1.bf16.msra.mxu0 0
        %4196 = vmatprep.subr.bf16.mxu0 0
        %4197 = vmatpush1.bf16.msra.mxu0 0
        %4198 = vmatprep.subr.bf16.mxu0 0
        %4199 = vmatpush1.bf16.msra.mxu0 0
        %4200 = vmatprep.subr.bf16.mxu0 0
        %4201 = vmatpush1.bf16.msra.mxu0 0
        %4202 = vmatprep.subr.bf16.mxu0 0
        %4203 = vmatpush1.bf16.msra.mxu0 0
        %4204 = vmatprep.subr.bf16.mxu0 0
        %4205 = vmatpush1.bf16.msra.mxu0 %v4188
        %4206 = vmatprep.subr.bf16.mxu0 0
        %4207 = vmatpush2.bf16.msra.mxu0 0
        %4208 = vmatprep.subr.bf16.mxu0 0
        %4209 = vmatpush2.bf16.msra.mxu0 0
        %4210 = vmatprep.subr.bf16.mxu0 0
        %4211 = vmatpush2.bf16.msra.mxu0 0
        %4212 = vmatprep.subr.bf16.mxu0 0
        %4213 = vmatpush2.bf16.msra.mxu0 0
        %4214 = vmatprep.subr.bf16.mxu0 0
        %4215 = vmatpush2.bf16.msra.mxu0 0
        %4216 = vmatprep.subr.bf16.mxu0 0
        %4217 = vmatpush2.bf16.msra.mxu0 0
        %4218 = vmatprep.subr.bf16.mxu0 0
        %4219 = vmatpush2.bf16.msra.mxu0 0
        %4220 = vmatprep.subr.bf16.mxu0 0
        %4221 = vmatpush2.bf16.msra.mxu0 0
        %4222 = vmatprep.mubr.bf16.mxu0 0
        %4223 = vmatmul.mubr.bf16.gmra.mxu0 %v4185
        %v4224 = vpop.f32.mrf.mxu0
        %v4225 = vadd.f32 0.0, %v4224
        %v4226 = vpop.f32.mrf.mxu0
        %v4227 = vpop.f32.mrf.mxu0
        %v4228 = vpop.f32.mrf.mxu0
        %4229 = vdwg.mxu0
        %4230 = vrot.lane.b32.xlu0 %v951, 40
        %v4231 = vpop.permute.xlu0 %4230
        %v4233 = vsel %vm959, %v4081, 0
        %v4236 = vsel %vm1450, %v4231, 0
        %4238 = vmatprep.subr.bf16.mxu0 0
        %4239 = vmatpush1.bf16.msra.mxu0 0
        %4240 = vmatprep.subr.bf16.mxu0 0
        %4241 = vmatpush1.bf16.msra.mxu0 0
        %4242 = vmatprep.subr.bf16.mxu0 0
        %4243 = vmatpush1.bf16.msra.mxu0 0
        %4244 = vmatprep.subr.bf16.mxu0 0
        %4245 = vmatpush1.bf16.msra.mxu0 0
        %4246 = vmatprep.subr.bf16.mxu0 0
        %4247 = vmatpush1.bf16.msra.mxu0 0
        %4248 = vmatprep.subr.bf16.mxu0 0
        %4249 = vmatpush1.bf16.msra.mxu0 0
        %4250 = vmatprep.subr.bf16.mxu0 0
        %4251 = vmatpush1.bf16.msra.mxu0 0
        %4252 = vmatprep.subr.bf16.mxu0 0
        %4253 = vmatpush1.bf16.msra.mxu0 %v4236
        %4254 = vmatprep.subr.bf16.mxu0 0
        %4255 = vmatpush2.bf16.msra.mxu0 0
        %4256 = vmatprep.subr.bf16.mxu0 0
        %4257 = vmatpush2.bf16.msra.mxu0 0
        %4258 = vmatprep.subr.bf16.mxu0 0
        %4259 = vmatpush2.bf16.msra.mxu0 0
        %4260 = vmatprep.subr.bf16.mxu0 0
        %4261 = vmatpush2.bf16.msra.mxu0 0
        %4262 = vmatprep.subr.bf16.mxu0 0
        %4263 = vmatpush2.bf16.msra.mxu0 0
        %4264 = vmatprep.subr.bf16.mxu0 0
        %4265 = vmatpush2.bf16.msra.mxu0 0
        %4266 = vmatprep.subr.bf16.mxu0 0
        %4267 = vmatpush2.bf16.msra.mxu0 0
        %4268 = vmatprep.subr.bf16.mxu0 0
        %4269 = vmatpush2.bf16.msra.mxu0 0
        %4270 = vmatprep.mubr.bf16.mxu0 0
        %4271 = vmatmul.mubr.bf16.gmra.mxu0 %v4233
        %v4272 = vpop.f32.mrf.mxu0
        %v4273 = vadd.f32 0.0, %v4272
        %v4274 = vpop.f32.mrf.mxu0
        %v4275 = vpop.f32.mrf.mxu0
        %v4276 = vpop.f32.mrf.mxu0
        %4277 = vdwg.mxu0
        %4278 = vrot.lane.b32.xlu0 %v952, 40
        %v4279 = vpop.permute.xlu0 %4278
        %v4281 = vsel %vm959, %v4082, 0
        %v4284 = vsel %vm1450, %v4279, 0
        %4286 = vmatprep.subr.bf16.mxu0 0
        %4287 = vmatpush1.bf16.msra.mxu0 0
        %4288 = vmatprep.subr.bf16.mxu0 0
        %4289 = vmatpush1.bf16.msra.mxu0 0
        %4290 = vmatprep.subr.bf16.mxu0 0
        %4291 = vmatpush1.bf16.msra.mxu0 0
        %4292 = vmatprep.subr.bf16.mxu0 0
        %4293 = vmatpush1.bf16.msra.mxu0 0
        %4294 = vmatprep.subr.bf16.mxu0 0
        %4295 = vmatpush1.bf16.msra.mxu0 0
        %4296 = vmatprep.subr.bf16.mxu0 0
        %4297 = vmatpush1.bf16.msra.mxu0 0
        %4298 = vmatprep.subr.bf16.mxu0 0
        %4299 = vmatpush1.bf16.msra.mxu0 0
        %4300 = vmatprep.subr.bf16.mxu0 0
        %4301 = vmatpush1.bf16.msra.mxu0 %v4284
        %4302 = vmatprep.subr.bf16.mxu0 0
        %4303 = vmatpush2.bf16.msra.mxu0 0
        %4304 = vmatprep.subr.bf16.mxu0 0
        %4305 = vmatpush2.bf16.msra.mxu0 0
        %4306 = vmatprep.subr.bf16.mxu0 0
        %4307 = vmatpush2.bf16.msra.mxu0 0
        %4308 = vmatprep.subr.bf16.mxu0 0
        %4309 = vmatpush2.bf16.msra.mxu0 0
        %4310 = vmatprep.subr.bf16.mxu0 0
        %4311 = vmatpush2.bf16.msra.mxu0 0
        %4312 = vmatprep.subr.bf16.mxu0 0
        %4313 = vmatpush2.bf16.msra.mxu0 0
        %4314 = vmatprep.subr.bf16.mxu0 0
        %4315 = vmatpush2.bf16.msra.mxu0 0
        %4316 = vmatprep.subr.bf16.mxu0 0
        %4317 = vmatpush2.bf16.msra.mxu0 0
        %4318 = vmatprep.mubr.bf16.mxu0 0
        %4319 = vmatmul.mubr.bf16.gmra.mxu0 %v4281
        %v4320 = vpop.f32.mrf.mxu0
        %v4321 = vadd.f32 0.0, %v4320
        %v4322 = vpop.f32.mrf.mxu0
        %v4323 = vpop.f32.mrf.mxu0
        %v4324 = vpop.f32.mrf.mxu0
        %4325 = vdwg.mxu0
        %4326 = vrot.lane.b32.xlu0 %v953, 40
        %v4327 = vpop.permute.xlu0 %4326
        %v4329 = vsel %vm959, %v4083, 0
        %v4332 = vsel %vm1450, %v4327, 0
        %4334 = vmatprep.subr.bf16.mxu0 0
        %4335 = vmatpush1.bf16.msra.mxu0 0
        %4336 = vmatprep.subr.bf16.mxu0 0
        %4337 = vmatpush1.bf16.msra.mxu0 0
        %4338 = vmatprep.subr.bf16.mxu0 0
        %4339 = vmatpush1.bf16.msra.mxu0 0
        %4340 = vmatprep.subr.bf16.mxu0 0
        %4341 = vmatpush1.bf16.msra.mxu0 0
        %4342 = vmatprep.subr.bf16.mxu0 0
        %4343 = vmatpush1.bf16.msra.mxu0 0
        %4344 = vmatprep.subr.bf16.mxu0 0
        %4345 = vmatpush1.bf16.msra.mxu0 0
        %4346 = vmatprep.subr.bf16.mxu0 0
        %4347 = vmatpush1.bf16.msra.mxu0 0
        %4348 = vmatprep.subr.bf16.mxu0 0
        %4349 = vmatpush1.bf16.msra.mxu0 %v4332
        %4350 = vmatprep.subr.bf16.mxu0 0
        %4351 = vmatpush2.bf16.msra.mxu0 0
        %4352 = vmatprep.subr.bf16.mxu0 0
        %4353 = vmatpush2.bf16.msra.mxu0 0
        %4354 = vmatprep.subr.bf16.mxu0 0
        %4355 = vmatpush2.bf16.msra.mxu0 0
        %4356 = vmatprep.subr.bf16.mxu0 0
        %4357 = vmatpush2.bf16.msra.mxu0 0
        %4358 = vmatprep.subr.bf16.mxu0 0
        %4359 = vmatpush2.bf16.msra.mxu0 0
        %4360 = vmatprep.subr.bf16.mxu0 0
        %4361 = vmatpush2.bf16.msra.mxu0 0
        %4362 = vmatprep.subr.bf16.mxu0 0
        %4363 = vmatpush2.bf16.msra.mxu0 0
        %4364 = vmatprep.subr.bf16.mxu0 0
        %4365 = vmatpush2.bf16.msra.mxu0 0
        %4366 = vmatprep.mubr.bf16.mxu0 0
        %4367 = vmatmul.mubr.bf16.gmra.mxu0 %v4329
        %v4368 = vpop.f32.mrf.mxu0
        %v4369 = vadd.f32 0.0, %v4368
        %v4370 = vpop.f32.mrf.mxu0
        %v4371 = vpop.f32.mrf.mxu0
        %v4372 = vpop.f32.mrf.mxu0
        %4373 = vdwg.mxu0
        %4374 = vrot.lane.b32.xlu0 %v954, 40
        %v4375 = vpop.permute.xlu0 %4374
        %v4377 = vsel %vm959, %v4084, 0
        %v4380 = vsel %vm1450, %v4375, 0
        %4382 = vmatprep.subr.bf16.mxu0 0
        %4383 = vmatpush1.bf16.msra.mxu0 0
        %4384 = vmatprep.subr.bf16.mxu0 0
        %4385 = vmatpush1.bf16.msra.mxu0 0
        %4386 = vmatprep.subr.bf16.mxu0 0
        %4387 = vmatpush1.bf16.msra.mxu0 0
        %4388 = vmatprep.subr.bf16.mxu0 0
        %4389 = vmatpush1.bf16.msra.mxu0 0
        %4390 = vmatprep.subr.bf16.mxu0 0
        %4391 = vmatpush1.bf16.msra.mxu0 0
        %4392 = vmatprep.subr.bf16.mxu0 0
        %4393 = vmatpush1.bf16.msra.mxu0 0
        %4394 = vmatprep.subr.bf16.mxu0 0
        %4395 = vmatpush1.bf16.msra.mxu0 0
        %4396 = vmatprep.subr.bf16.mxu0 0
        %4397 = vmatpush1.bf16.msra.mxu0 %v4380
        %4398 = vmatprep.subr.bf16.mxu0 0
        %4399 = vmatpush2.bf16.msra.mxu0 0
        %4400 = vmatprep.subr.bf16.mxu0 0
        %4401 = vmatpush2.bf16.msra.mxu0 0
        %4402 = vmatprep.subr.bf16.mxu0 0
        %4403 = vmatpush2.bf16.msra.mxu0 0
        %4404 = vmatprep.subr.bf16.mxu0 0
        %4405 = vmatpush2.bf16.msra.mxu0 0
        %4406 = vmatprep.subr.bf16.mxu0 0
        %4407 = vmatpush2.bf16.msra.mxu0 0
        %4408 = vmatprep.subr.bf16.mxu0 0
        %4409 = vmatpush2.bf16.msra.mxu0 0
        %4410 = vmatprep.subr.bf16.mxu0 0
        %4411 = vmatpush2.bf16.msra.mxu0 0
        %4412 = vmatprep.subr.bf16.mxu0 0
        %4413 = vmatpush2.bf16.msra.mxu0 0
        %4414 = vmatprep.mubr.bf16.mxu0 0
        %4415 = vmatmul.mubr.bf16.gmra.mxu0 %v4377
        %v4416 = vpop.f32.mrf.mxu0
        %v4417 = vadd.f32 0.0, %v4416
        %v4418 = vpop.f32.mrf.mxu0
        %v4419 = vpop.f32.mrf.mxu0
        %v4420 = vpop.f32.mrf.mxu0
        %4421 = vdwg.mxu0
        %4422 = vrot.lane.b32.xlu0 %v955, 40
        %v4423 = vpop.permute.xlu0 %4422
        %v4425 = vsel %vm959, %v4085, 0
        %v4428 = vsel %vm1450, %v4423, 0
        %4430 = vmatprep.subr.bf16.mxu0 0
        %4431 = vmatpush1.bf16.msra.mxu0 0
        %4432 = vmatprep.subr.bf16.mxu0 0
        %4433 = vmatpush1.bf16.msra.mxu0 0
        %4434 = vmatprep.subr.bf16.mxu0 0
        %4435 = vmatpush1.bf16.msra.mxu0 0
        %4436 = vmatprep.subr.bf16.mxu0 0
        %4437 = vmatpush1.bf16.msra.mxu0 0
        %4438 = vmatprep.subr.bf16.mxu0 0
        %4439 = vmatpush1.bf16.msra.mxu0 0
        %4440 = vmatprep.subr.bf16.mxu0 0
        %4441 = vmatpush1.bf16.msra.mxu0 0
        %4442 = vmatprep.subr.bf16.mxu0 0
        %4443 = vmatpush1.bf16.msra.mxu0 0
        %4444 = vmatprep.subr.bf16.mxu0 0
        %4445 = vmatpush1.bf16.msra.mxu0 %v4428
        %4446 = vmatprep.subr.bf16.mxu0 0
        %4447 = vmatpush2.bf16.msra.mxu0 0
        %4448 = vmatprep.subr.bf16.mxu0 0
        %4449 = vmatpush2.bf16.msra.mxu0 0
        %4450 = vmatprep.subr.bf16.mxu0 0
        %4451 = vmatpush2.bf16.msra.mxu0 0
        %4452 = vmatprep.subr.bf16.mxu0 0
        %4453 = vmatpush2.bf16.msra.mxu0 0
        %4454 = vmatprep.subr.bf16.mxu0 0
        %4455 = vmatpush2.bf16.msra.mxu0 0
        %4456 = vmatprep.subr.bf16.mxu0 0
        %4457 = vmatpush2.bf16.msra.mxu0 0
        %4458 = vmatprep.subr.bf16.mxu0 0
        %4459 = vmatpush2.bf16.msra.mxu0 0
        %4460 = vmatprep.subr.bf16.mxu0 0
        %4461 = vmatpush2.bf16.msra.mxu0 0
        %4462 = vmatprep.mubr.bf16.mxu0 0
        %4463 = vmatmul.mubr.bf16.gmra.mxu0 %v4425
        %v4464 = vpop.f32.mrf.mxu0
        %v4465 = vadd.f32 0.0, %v4464
        %v4466 = vpop.f32.mrf.mxu0
        %v4467 = vpop.f32.mrf.mxu0
        %v4468 = vpop.f32.mrf.mxu0
        %4469 = vdwg.mxu0
        %4478 = vrot.lane.b32.xlu0 %v2369, 8
        %v4479 = vpop.permute.xlu0 %4478
        %4480 = vrot.lane.b32.xlu0 %v2417, 8
        %v4481 = vpop.permute.xlu0 %4480
        %4482 = vrot.lane.b32.xlu0 %v2465, 8
        %v4483 = vpop.permute.xlu0 %4482
        %4484 = vrot.lane.b32.xlu0 %v2513, 8
        %v4485 = vpop.permute.xlu0 %4484
        %4486 = vrot.lane.b32.xlu0 %v2561, 8
        %v4487 = vpop.permute.xlu0 %4486
        %4488 = vrot.lane.b32.xlu0 %v2609, 8
        %v4489 = vpop.permute.xlu0 %4488
        %4490 = vrot.lane.b32.xlu0 %v2657, 8
        %v4491 = vpop.permute.xlu0 %4490
        %4492 = vrot.lane.b32.xlu0 %v2705, 8
        %v4493 = vpop.permute.xlu0 %4492
        %4510 = vrot.lane.b32.xlu0 %v3249, 16
        %v4511 = vpop.permute.xlu0 %4510
        %4512 = vrot.lane.b32.xlu0 %v3297, 16
        %v4513 = vpop.permute.xlu0 %4512
        %4514 = vrot.lane.b32.xlu0 %v3345, 16
        %v4515 = vpop.permute.xlu0 %4514
        %4516 = vrot.lane.b32.xlu0 %v3393, 16
        %v4517 = vpop.permute.xlu0 %4516
        %4518 = vrot.lane.b32.xlu0 %v3441, 16
        %v4519 = vpop.permute.xlu0 %4518
        %4520 = vrot.lane.b32.xlu0 %v3489, 16
        %v4521 = vpop.permute.xlu0 %4520
        %4522 = vrot.lane.b32.xlu0 %v3537, 16
        %v4523 = vpop.permute.xlu0 %4522
        %4524 = vrot.lane.b32.xlu0 %v3585, 16
        %v4525 = vpop.permute.xlu0 %4524
        %4542 = vrot.lane.b32.xlu0 %v4129, 24
        %v4543 = vpop.permute.xlu0 %4542
        %4544 = vrot.lane.b32.xlu0 %v4177, 24
        %v4545 = vpop.permute.xlu0 %4544
        %4546 = vrot.lane.b32.xlu0 %v4225, 24
        %v4547 = vpop.permute.xlu0 %4546
        %4548 = vrot.lane.b32.xlu0 %v4273, 24
        %v4549 = vpop.permute.xlu0 %4548
        %4550 = vrot.lane.b32.xlu0 %v4321, 24
        %v4551 = vpop.permute.xlu0 %4550
        %4552 = vrot.lane.b32.xlu0 %v4369, 24
        %v4553 = vpop.permute.xlu0 %4552
        %4554 = vrot.lane.b32.xlu0 %v4417, 24
        %v4555 = vpop.permute.xlu0 %4554
        %4556 = vrot.lane.b32.xlu0 %v4465, 24
        %v4557 = vpop.permute.xlu0 %4556
        %v4566 = vsel %vm959, %v1489, %v4479
        %v4567 = vsel %vm959, %v1537, %v4481
        %v4568 = vsel %vm959, %v1585, %v4483
        %v4569 = vsel %vm959, %v1633, %v4485
        %v4570 = vsel %vm959, %v1681, %v4487
        %v4571 = vsel %vm959, %v1729, %v4489
        %v4572 = vsel %vm959, %v1777, %v4491
        %v4573 = vsel %vm959, %v1825, %v4493
        %vm4574 = vcmask 130048
        %v4575 = vsel %vm4574, %v4566, %v4511
        %v4576 = vsel %vm4574, %v4567, %v4513
        %v4577 = vsel %vm4574, %v4568, %v4515
        %v4578 = vsel %vm4574, %v4569, %v4517
        %v4579 = vsel %vm4574, %v4570, %v4519
        %v4580 = vsel %vm4574, %v4571, %v4521
        %v4581 = vsel %vm4574, %v4572, %v4523
        %v4582 = vsel %vm4574, %v4573, %v4525
        %vm4583 = vcmask 195584
        %v4584 = vsel %vm4583, %v4575, %v4543
        %v4585 = vsel %vm4583, %v4576, %v4545
        %v4586 = vsel %vm4583, %v4577, %v4547
        %v4587 = vsel %vm4583, %v4578, %v4549
        %v4588 = vsel %vm4583, %v4579, %v4551
        %v4589 = vsel %vm4583, %v4580, %v4553
        %v4590 = vsel %vm4583, %v4581, %v4555
        %v4591 = vsel %vm4583, %v4582, %v4557
        %v4592 = vpack.c.bf16 %v4585, %v4584
        %v4593 = vpack.c.bf16 %v4587, %v4586
        %v4594 = vpack.c.bf16 %v4589, %v4588
        %v4595 = vpack.c.bf16 %v4591, %v4590
        %v4596 = vld [vmem:[%s657] sm:$0xf]
        %v4597 = vld [vmem:[%s657 + $0x4] sm:$0xf]
        %v4598 = vld [vmem:[%s657 + $0x8] sm:$0xf]
        %v4599 = vld [vmem:[%s657 + $0xc] sm:$0xf]
        %v4600 = vld [vmem:[%s660] sm:$0x1]
        %v4602 = vlaneseq
        %v4603 = vshrl.u32 %v4602, 7
        %v4604 = vsub.s32 0, %v4603
        %v4605 = vrot.slane %v4600, %v4604
        %v4611 = vunpack.c.l.b16 %v4596
        %v4612 = vunpack.c.l.b16 %v4597
        %v4613 = vunpack.c.l.b16 %v4598
        %v4614 = vunpack.c.l.b16 %v4599
        %v4615 = vpack.c.b16 %v4612, %v4611
        %v4616 = vpack.c.b16 %v4614, %v4613
        %v4620 = vsel %vm870, %v4592, 0
        %v4623 = vsel %vm870, %v4593, 0
        %v4626 = vsel %vm870, %v4594, 0
        %v4629 = vsel %vm870, %v4595, 0
        %4631 = vmatprep.subr.bf16.mxu0 0
        %4632 = vmatpush1.bf16.msra.mxu0 0
        %4633 = vmatprep.subr.bf16.mxu0 0
        %4634 = vmatpush1.bf16.msra.mxu0 0
        %4635 = vmatprep.subr.bf16.mxu0 0
        %4636 = vmatpush1.bf16.msra.mxu0 0
        %4637 = vmatprep.subr.bf16.mxu0 0
        %4638 = vmatpush1.bf16.msra.mxu0 0
        %4639 = vmatprep.subr.bf16.mxu0 0
        %4640 = vmatpush1.bf16.msra.mxu0 0
        %4641 = vmatprep.subr.bf16.mxu0 0
        %4642 = vmatpush1.bf16.msra.mxu0 0
        %4643 = vmatprep.subr.bf16.mxu0 0
        %4644 = vmatpush1.bf16.msra.mxu0 %v4616
        %4645 = vmatprep.subr.bf16.mxu0 0
        %4646 = vmatpush1.bf16.msra.mxu0 %v4615
        %4647 = vmatprep.subr.bf16.mxu0 0
        %4648 = vmatpush2.bf16.msra.mxu0 0
        %4649 = vmatprep.subr.bf16.mxu0 0
        %4650 = vmatpush2.bf16.msra.mxu0 0
        %4651 = vmatprep.subr.bf16.mxu0 0
        %4652 = vmatpush2.bf16.msra.mxu0 0
        %4653 = vmatprep.subr.bf16.mxu0 0
        %4654 = vmatpush2.bf16.msra.mxu0 0
        %4655 = vmatprep.subr.bf16.mxu0 0
        %4656 = vmatpush2.bf16.msra.mxu0 0
        %4657 = vmatprep.subr.bf16.mxu0 0
        %4658 = vmatpush2.bf16.msra.mxu0 0
        %4659 = vmatprep.subr.bf16.mxu0 0
        %4660 = vmatpush2.bf16.msra.mxu0 0
        %4661 = vmatprep.subr.bf16.mxu0 0
        %4662 = vmatpush2.bf16.msra.mxu0 0
        %4663 = vmatprep.mubr.bf16.mxu0 0
        %4664 = vmatmul.mubr.bf16.gmra.mxu0 %v4620
        %v4665 = vpop.f32.mrf.mxu0
        %v4666 = vadd.f32 %v4605, %v4665
        %v4667 = vpop.f32.mrf.mxu0
        %v4668 = vpop.f32.mrf.mxu0
        %v4669 = vadd.f32 %v4605, %v4668
        %v4670 = vpop.f32.mrf.mxu0
        %4671 = vmatprep.mubr.bf16.mxu0 0
        %4672 = vmatmul.mubr.bf16.gmra.mxu0 %v4623
        %v4673 = vpop.f32.mrf.mxu0
        %v4674 = vadd.f32 %v4605, %v4673
        %v4675 = vpop.f32.mrf.mxu0
        %v4676 = vpop.f32.mrf.mxu0
        %v4677 = vadd.f32 %v4605, %v4676
        %v4678 = vpop.f32.mrf.mxu0
        %4679 = vmatprep.mubr.bf16.mxu0 0
        %4680 = vmatmul.mubr.bf16.gmra.mxu0 %v4626
        %v4681 = vpop.f32.mrf.mxu0
        %v4682 = vadd.f32 %v4605, %v4681
        %v4683 = vpop.f32.mrf.mxu0
        %v4684 = vpop.f32.mrf.mxu0
        %v4685 = vadd.f32 %v4605, %v4684
        %v4686 = vpop.f32.mrf.mxu0
        %4687 = vmatprep.mubr.bf16.mxu0 0
        %4688 = vmatmul.mubr.bf16.gmra.mxu0 %v4629
        %v4689 = vpop.f32.mrf.mxu0
        %v4690 = vadd.f32 %v4605, %v4689
        %v4691 = vpop.f32.mrf.mxu0
        %v4692 = vpop.f32.mrf.mxu0
        %v4693 = vadd.f32 %v4605, %v4692
        %v4694 = vpop.f32.mrf.mxu0
        %4695 = vdwg.mxu0
        %v4696 = vadd.f32 %v827, %v4666
        %v4697 = vadd.f32 %v828, %v4669
        %v4698 = vadd.f32 %v829, %v4674
        %v4699 = vadd.f32 %v830, %v4677
        %v4700 = vadd.f32 %v831, %v4682
        %v4701 = vadd.f32 %v832, %v4685
        %v4702 = vadd.f32 %v833, %v4690
        %v4703 = vadd.f32 %v834, %v4693
        %v4704 = vsel %vm870, %v4696, 0.0
        %4705 = vadd.xlane.f32.xlu0 %v4704
        %v4706 = vpop.xlane.xlu0 %4705
        %v4707 = vsel %vm870, %v4697, 0.0
        %4708 = vadd.xlane.f32.xlu0 %v4707
        %v4709 = vpop.xlane.xlu0 %4708
        %v4710 = vsel %vm870, %v4698, 0.0
        %4711 = vadd.xlane.f32.xlu0 %v4710
        %v4712 = vpop.xlane.xlu0 %4711
        %v4713 = vsel %vm870, %v4699, 0.0
        %4714 = vadd.xlane.f32.xlu0 %v4713
        %v4715 = vpop.xlane.xlu0 %4714
        %v4716 = vsel %vm870, %v4700, 0.0
        %4717 = vadd.xlane.f32.xlu0 %v4716
        %v4718 = vpop.xlane.xlu0 %4717
        %v4719 = vsel %vm870, %v4701, 0.0
        %4720 = vadd.xlane.f32.xlu0 %v4719
        %v4721 = vpop.xlane.xlu0 %4720
        %v4722 = vsel %vm870, %v4702, 0.0
        %4723 = vadd.xlane.f32.xlu0 %v4722
        %v4724 = vpop.xlane.xlu0 %4723
        %v4725 = vsel %vm870, %v4703, 0.0
        %4726 = vadd.xlane.f32.xlu0 %v4725
        %v4727 = vpop.xlane.xlu0 %4726
        %v4728 = vrcp.pop 32.0
        %v4729 = vmul.f32 %v4706, %v4728
        %v4730 = vmul.f32 %v4709, %v4728
        %v4731 = vmul.f32 %v4712, %v4728
        %v4732 = vmul.f32 %v4715, %v4728
        %v4733 = vmul.f32 %v4718, %v4728
        %v4734 = vmul.f32 %v4721, %v4728
        %v4735 = vmul.f32 %v4724, %v4728
        %v4736 = vmul.f32 %v4727, %v4728
        %v4737 = vsub.f32 %v4696, %v4729
        %v4738 = vsub.f32 %v4697, %v4730
        %v4739 = vsub.f32 %v4698, %v4731
        %v4740 = vsub.f32 %v4699, %v4732
        %v4741 = vsub.f32 %v4700, %v4733
        %v4742 = vsub.f32 %v4701, %v4734
        %v4743 = vsub.f32 %v4702, %v4735
        %v4744 = vsub.f32 %v4703, %v4736
        %v4745 = vmul.f32 %v4737, %v4737
        %v4746 = vmul.f32 %v4738, %v4738
        %v4747 = vmul.f32 %v4739, %v4739
        %v4748 = vmul.f32 %v4740, %v4740
        %v4749 = vmul.f32 %v4741, %v4741
        %v4750 = vmul.f32 %v4742, %v4742
        %v4751 = vmul.f32 %v4743, %v4743
        %v4752 = vmul.f32 %v4744, %v4744
        %v4753 = vsel %vm870, %v4745, 0.0
        %4754 = vadd.xlane.f32.xlu0 %v4753
        %v4755 = vpop.xlane.xlu0 %4754
        %v4756 = vsel %vm870, %v4746, 0.0
        %4757 = vadd.xlane.f32.xlu0 %v4756
        %v4758 = vpop.xlane.xlu0 %4757
        %v4759 = vsel %vm870, %v4747, 0.0
        %4760 = vadd.xlane.f32.xlu0 %v4759
        %v4761 = vpop.xlane.xlu0 %4760
        %v4762 = vsel %vm870, %v4748, 0.0
        %4763 = vadd.xlane.f32.xlu0 %v4762
        %v4764 = vpop.xlane.xlu0 %4763
        %v4765 = vsel %vm870, %v4749, 0.0
        %4766 = vadd.xlane.f32.xlu0 %v4765
        %v4767 = vpop.xlane.xlu0 %4766
        %v4768 = vsel %vm870, %v4750, 0.0
        %4769 = vadd.xlane.f32.xlu0 %v4768
        %v4770 = vpop.xlane.xlu0 %4769
        %v4771 = vsel %vm870, %v4751, 0.0
        %4772 = vadd.xlane.f32.xlu0 %v4771
        %v4773 = vpop.xlane.xlu0 %4772
        %v4774 = vsel %vm870, %v4752, 0.0
        %4775 = vadd.xlane.f32.xlu0 %v4774
        %v4776 = vpop.xlane.xlu0 %4775
        %v4777 = vmul.f32 %v4755, %v4728
        %v4778 = vmul.f32 %v4758, %v4728
        %v4779 = vmul.f32 %v4761, %v4728
        %v4780 = vmul.f32 %v4764, %v4728
        %v4781 = vmul.f32 %v4767, %v4728
        %v4782 = vmul.f32 %v4770, %v4728
        %v4783 = vmul.f32 %v4773, %v4728
        %v4784 = vmul.f32 %v4776, %v4728
        %v4785 = vadd.f32 %v4777, 1e-05
        %v4786 = vadd.f32 %v4778, 1e-05
        %v4787 = vadd.f32 %v4779, 1e-05
        %v4788 = vadd.f32 %v4780, 1e-05
        %v4789 = vadd.f32 %v4781, 1e-05
        %v4790 = vadd.f32 %v4782, 1e-05
        %v4791 = vadd.f32 %v4783, 1e-05
        %v4792 = vadd.f32 %v4784, 1e-05
        %v4793 = vrsqrt.pop %v4785
        %v4794 = vrsqrt.pop %v4786
        %v4795 = vrsqrt.pop %v4787
        %v4796 = vrsqrt.pop %v4788
        %v4797 = vrsqrt.pop %v4789
        %v4798 = vrsqrt.pop %v4790
        %v4799 = vrsqrt.pop %v4791
        %v4800 = vrsqrt.pop %v4792
        %v4801 = vmul.f32 %v4737, %v4793
        %v4802 = vmul.f32 %v4738, %v4794
        %v4803 = vmul.f32 %v4739, %v4795
        %v4804 = vmul.f32 %v4740, %v4796
        %v4805 = vmul.f32 %v4741, %v4797
        %v4806 = vmul.f32 %v4742, %v4798
        %v4807 = vmul.f32 %v4743, %v4799
        %v4808 = vmul.f32 %v4744, %v4800
        %v4809 = vld [vmem:[%s663] sm:$0x1]
        %v4811 = vlaneseq
        %v4812 = vshrl.u32 %v4811, 7
        %v4813 = vsub.s32 0, %v4812
        %v4814 = vrot.slane %v4809, %v4813
        %v4816 = vmul.f32 %v4801, %v4814
        %v4817 = vmul.f32 %v4802, %v4814
        %v4818 = vmul.f32 %v4803, %v4814
        %v4819 = vmul.f32 %v4804, %v4814
        %v4820 = vmul.f32 %v4805, %v4814
        %v4821 = vmul.f32 %v4806, %v4814
        %v4822 = vmul.f32 %v4807, %v4814
        %v4823 = vmul.f32 %v4808, %v4814
        %v4824 = vld [vmem:[%s666] sm:$0x1]
        %v4826 = vlaneseq
        %v4827 = vshrl.u32 %v4826, 7
        %v4828 = vsub.s32 0, %v4827
        %v4829 = vrot.slane %v4824, %v4828
        %v4831 = vadd.f32 %v4816, %v4829
        %v4832 = vadd.f32 %v4817, %v4829
        %v4833 = vadd.f32 %v4818, %v4829
        %v4834 = vadd.f32 %v4819, %v4829
        %v4835 = vadd.f32 %v4820, %v4829
        %v4836 = vadd.f32 %v4821, %v4829
        %v4837 = vadd.f32 %v4822, %v4829
        %v4838 = vadd.f32 %v4823, %v4829
        %v4839 = vpack.c.bf16 %v4832, %v4831
        %v4840 = vpack.c.bf16 %v4834, %v4833
        %v4841 = vpack.c.bf16 %v4836, %v4835
        %v4842 = vpack.c.bf16 %v4838, %v4837
        %v4843 = vld [vmem:[%s671] sm:$0xf]
        %v4844 = vld [vmem:[%s671 + $0x4] sm:$0xf]
        %v4845 = vld [vmem:[%s671 + $0x8] sm:$0xf]
        %v4846 = vld [vmem:[%s671 + $0xc] sm:$0xf]
        %v4847 = vld [vmem:[%s674] sm:$0x1]
        %v4849 = vlaneseq
        %v4850 = vshrl.u32 %v4849, 7
        %v4851 = vsub.s32 0, %v4850
        %v4852 = vrot.slane %v4847, %v4851
        %v4858 = vunpack.c.l.b16 %v4843
        %v4859 = vunpack.c.l.b16 %v4844
        %v4860 = vunpack.c.l.b16 %v4845
        %v4861 = vunpack.c.l.b16 %v4846
        %v4862 = vpack.c.b16 %v4859, %v4858
        %v4863 = vpack.c.b16 %v4861, %v4860
        %v4867 = vsel %vm870, %v4839, 0
        %v4870 = vsel %vm870, %v4840, 0
        %v4873 = vsel %vm870, %v4841, 0
        %v4876 = vsel %vm870, %v4842, 0
        %4878 = vmatprep.subr.bf16.mxu0 0
        %4879 = vmatpush1.bf16.msra.mxu0 0
        %4880 = vmatprep.subr.bf16.mxu0 0
        %4881 = vmatpush1.bf16.msra.mxu0 0
        %4882 = vmatprep.subr.bf16.mxu0 0
        %4883 = vmatpush1.bf16.msra.mxu0 0
        %4884 = vmatprep.subr.bf16.mxu0 0
        %4885 = vmatpush1.bf16.msra.mxu0 0
        %4886 = vmatprep.subr.bf16.mxu0 0
        %4887 = vmatpush1.bf16.msra.mxu0 0
        %4888 = vmatprep.subr.bf16.mxu0 0
        %4889 = vmatpush1.bf16.msra.mxu0 0
        %4890 = vmatprep.subr.bf16.mxu0 0
        %4891 = vmatpush1.bf16.msra.mxu0 %v4863
        %4892 = vmatprep.subr.bf16.mxu0 0
        %4893 = vmatpush1.bf16.msra.mxu0 %v4862
        %4894 = vmatprep.subr.bf16.mxu0 0
        %4895 = vmatpush2.bf16.msra.mxu0 0
        %4896 = vmatprep.subr.bf16.mxu0 0
        %4897 = vmatpush2.bf16.msra.mxu0 0
        %4898 = vmatprep.subr.bf16.mxu0 0
        %4899 = vmatpush2.bf16.msra.mxu0 0
        %4900 = vmatprep.subr.bf16.mxu0 0
        %4901 = vmatpush2.bf16.msra.mxu0 0
        %4902 = vmatprep.subr.bf16.mxu0 0
        %4903 = vmatpush2.bf16.msra.mxu0 0
        %4904 = vmatprep.subr.bf16.mxu0 0
        %4905 = vmatpush2.bf16.msra.mxu0 0
        %4906 = vmatprep.subr.bf16.mxu0 0
        %4907 = vmatpush2.bf16.msra.mxu0 0
        %4908 = vmatprep.subr.bf16.mxu0 0
        %4909 = vmatpush2.bf16.msra.mxu0 0
        %4910 = vmatprep.mubr.bf16.mxu0 0
        %4911 = vmatmul.mubr.bf16.gmra.mxu0 %v4867
        %v4912 = vpop.f32.mrf.mxu0
        %v4913 = vadd.f32 %v4852, %v4912
        %v4914 = vpop.f32.mrf.mxu0
        %v4915 = vpop.f32.mrf.mxu0
        %v4916 = vadd.f32 %v4852, %v4915
        %v4917 = vpop.f32.mrf.mxu0
        %4918 = vmatprep.mubr.bf16.mxu0 0
        %4919 = vmatmul.mubr.bf16.gmra.mxu0 %v4870
        %v4920 = vpop.f32.mrf.mxu0
        %v4921 = vadd.f32 %v4852, %v4920
        %v4922 = vpop.f32.mrf.mxu0
        %v4923 = vpop.f32.mrf.mxu0
        %v4924 = vadd.f32 %v4852, %v4923
        %v4925 = vpop.f32.mrf.mxu0
        %4926 = vmatprep.mubr.bf16.mxu0 0
        %4927 = vmatmul.mubr.bf16.gmra.mxu0 %v4873
        %v4928 = vpop.f32.mrf.mxu0
        %v4929 = vadd.f32 %v4852, %v4928
        %v4930 = vpop.f32.mrf.mxu0
        %v4931 = vpop.f32.mrf.mxu0
        %v4932 = vadd.f32 %v4852, %v4931
        %v4933 = vpop.f32.mrf.mxu0
        %4934 = vmatprep.mubr.bf16.mxu0 0
        %4935 = vmatmul.mubr.bf16.gmra.mxu0 %v4876
        %v4936 = vpop.f32.mrf.mxu0
        %v4937 = vadd.f32 %v4852, %v4936
        %v4938 = vpop.f32.mrf.mxu0
        %v4939 = vpop.f32.mrf.mxu0
        %v4940 = vadd.f32 %v4852, %v4939
        %v4941 = vpop.f32.mrf.mxu0
        %4942 = vdwg.mxu0
        %v4943 = vmax.f32 %v4913, 0.0
        %v4944 = vmax.f32 %v4916, 0.0
        %v4945 = vmax.f32 %v4921, 0.0
        %v4946 = vmax.f32 %v4924, 0.0
        %v4947 = vmax.f32 %v4929, 0.0
        %v4948 = vmax.f32 %v4932, 0.0
        %v4949 = vmax.f32 %v4937, 0.0
        %v4950 = vmax.f32 %v4940, 0.0
        %v4951 = vpack.c.bf16 %v4944, %v4943
        %v4952 = vpack.c.bf16 %v4946, %v4945
        %v4953 = vpack.c.bf16 %v4948, %v4947
        %v4954 = vpack.c.bf16 %v4950, %v4949
        %v4955 = vld [vmem:[%s679] sm:$0xf]
        %v4956 = vld [vmem:[%s679 + $0x4] sm:$0xf]
        %v4957 = vld [vmem:[%s679 + $0x8] sm:$0xf]
        %v4958 = vld [vmem:[%s679 + $0xc] sm:$0xf]
        %v4959 = vld [vmem:[%s679 + $0x10] sm:$0xf]
        %v4960 = vld [vmem:[%s679 + $0x14] sm:$0xf]
        %v4961 = vld [vmem:[%s679 + $0x18] sm:$0xf]
        %v4962 = vld [vmem:[%s679 + $0x1c] sm:$0xf]
        %v4963 = vld [vmem:[%s682] sm:$0x1]
        %v4965 = vlaneseq
        %v4966 = vshrl.u32 %v4965, 7
        %v4967 = vsub.s32 0, %v4966
        %v4968 = vrot.slane %v4963, %v4967
        %v4978 = vunpack.c.l.b16 %v4955
        %v4979 = vunpack.c.l.b16 %v4956
        %v4980 = vunpack.c.l.b16 %v4957
        %v4981 = vunpack.c.l.b16 %v4958
        %v4982 = vunpack.c.l.b16 %v4959
        %v4983 = vunpack.c.l.b16 %v4960
        %v4984 = vunpack.c.l.b16 %v4961
        %v4985 = vunpack.c.l.b16 %v4962
        %v4986 = vpack.c.b16 %v4979, %v4978
        %v4987 = vpack.c.b16 %v4981, %v4980
        %v4988 = vpack.c.b16 %v4983, %v4982
        %v4989 = vpack.c.b16 %v4985, %v4984
        %vm4994 = vcmask 523264
        %v4996 = vsel %vm4994, %v4951, 0
        %v4999 = vsel %vm4994, %v4952, 0
        %v5002 = vsel %vm4994, %v4953, 0
        %v5005 = vsel %vm4994, %v4954, 0
        %5007 = vmatprep.subr.bf16.mxu0 0
        %5008 = vmatpush1.bf16.msra.mxu0 0
        %5009 = vmatprep.subr.bf16.mxu0 0
        %5010 = vmatpush1.bf16.msra.mxu0 0
        %5011 = vmatprep.subr.bf16.mxu0 0
        %5012 = vmatpush1.bf16.msra.mxu0 0
        %5013 = vmatprep.subr.bf16.mxu0 0
        %5014 = vmatpush1.bf16.msra.mxu0 0
        %5015 = vmatprep.subr.bf16.mxu0 0
        %5016 = vmatpush1.bf16.msra.mxu0 %v4989
        %5017 = vmatprep.subr.bf16.mxu0 0
        %5018 = vmatpush1.bf16.msra.mxu0 %v4988
        %5019 = vmatprep.subr.bf16.mxu0 0
        %5020 = vmatpush1.bf16.msra.mxu0 %v4987
        %5021 = vmatprep.subr.bf16.mxu0 0
        %5022 = vmatpush1.bf16.msra.mxu0 %v4986
        %5023 = vmatprep.subr.bf16.mxu0 0
        %5024 = vmatpush2.bf16.msra.mxu0 0
        %5025 = vmatprep.subr.bf16.mxu0 0
        %5026 = vmatpush2.bf16.msra.mxu0 0
        %5027 = vmatprep.subr.bf16.mxu0 0
        %5028 = vmatpush2.bf16.msra.mxu0 0
        %5029 = vmatprep.subr.bf16.mxu0 0
        %5030 = vmatpush2.bf16.msra.mxu0 0
        %5031 = vmatprep.subr.bf16.mxu0 0
        %5032 = vmatpush2.bf16.msra.mxu0 0
        %5033 = vmatprep.subr.bf16.mxu0 0
        %5034 = vmatpush2.bf16.msra.mxu0 0
        %5035 = vmatprep.subr.bf16.mxu0 0
        %5036 = vmatpush2.bf16.msra.mxu0 0
        %5037 = vmatprep.subr.bf16.mxu0 0
        %5038 = vmatpush2.bf16.msra.mxu0 0
        %5039 = vmatprep.mubr.bf16.mxu0 0
        %5040 = vmatmul.mubr.bf16.gmra.mxu0 %v4996
        %v5041 = vpop.f32.mrf.mxu0
        %v5042 = vadd.f32 %v4968, %v5041
        %v5043 = vpop.f32.mrf.mxu0
        %v5044 = vpop.f32.mrf.mxu0
        %v5045 = vadd.f32 %v4968, %v5044
        %v5046 = vpop.f32.mrf.mxu0
        %5047 = vmatprep.mubr.bf16.mxu0 0
        %5048 = vmatmul.mubr.bf16.gmra.mxu0 %v4999
        %v5049 = vpop.f32.mrf.mxu0
        %v5050 = vadd.f32 %v4968, %v5049
        %v5051 = vpop.f32.mrf.mxu0
        %v5052 = vpop.f32.mrf.mxu0
        %v5053 = vadd.f32 %v4968, %v5052
        %v5054 = vpop.f32.mrf.mxu0
        %5055 = vmatprep.mubr.bf16.mxu0 0
        %5056 = vmatmul.mubr.bf16.gmra.mxu0 %v5002
        %v5057 = vpop.f32.mrf.mxu0
        %v5058 = vadd.f32 %v4968, %v5057
        %v5059 = vpop.f32.mrf.mxu0
        %v5060 = vpop.f32.mrf.mxu0
        %v5061 = vadd.f32 %v4968, %v5060
        %v5062 = vpop.f32.mrf.mxu0
        %5063 = vmatprep.mubr.bf16.mxu0 0
        %5064 = vmatmul.mubr.bf16.gmra.mxu0 %v5005
        %v5065 = vpop.f32.mrf.mxu0
        %v5066 = vadd.f32 %v4968, %v5065
        %v5067 = vpop.f32.mrf.mxu0
        %v5068 = vpop.f32.mrf.mxu0
        %v5069 = vadd.f32 %v4968, %v5068
        %v5070 = vpop.f32.mrf.mxu0
        %5071 = vdwg.mxu0
        %v5072 = vadd.f32 %v4831, %v5042
        %v5073 = vadd.f32 %v4832, %v5045
        %v5074 = vadd.f32 %v4833, %v5050
        %v5075 = vadd.f32 %v4834, %v5053
        %v5076 = vadd.f32 %v4835, %v5058
        %v5077 = vadd.f32 %v4836, %v5061
        %v5078 = vadd.f32 %v4837, %v5066
        %v5079 = vadd.f32 %v4838, %v5069
        %v5080 = vsel %vm870, %v5072, 0.0
        %5081 = vadd.xlane.f32.xlu0 %v5080
        %v5082 = vpop.xlane.xlu0 %5081
        %v5083 = vsel %vm870, %v5073, 0.0
        %5084 = vadd.xlane.f32.xlu0 %v5083
        %v5085 = vpop.xlane.xlu0 %5084
        %v5086 = vsel %vm870, %v5074, 0.0
        %5087 = vadd.xlane.f32.xlu0 %v5086
        %v5088 = vpop.xlane.xlu0 %5087
        %v5089 = vsel %vm870, %v5075, 0.0
        %5090 = vadd.xlane.f32.xlu0 %v5089
        %v5091 = vpop.xlane.xlu0 %5090
        %v5092 = vsel %vm870, %v5076, 0.0
        %5093 = vadd.xlane.f32.xlu0 %v5092
        %v5094 = vpop.xlane.xlu0 %5093
        %v5095 = vsel %vm870, %v5077, 0.0
        %5096 = vadd.xlane.f32.xlu0 %v5095
        %v5097 = vpop.xlane.xlu0 %5096
        %v5098 = vsel %vm870, %v5078, 0.0
        %5099 = vadd.xlane.f32.xlu0 %v5098
        %v5100 = vpop.xlane.xlu0 %5099
        %v5101 = vsel %vm870, %v5079, 0.0
        %5102 = vadd.xlane.f32.xlu0 %v5101
        %v5103 = vpop.xlane.xlu0 %5102
        %v5104 = vmul.f32 %v5082, %v4728
        %v5105 = vmul.f32 %v5085, %v4728
        %v5106 = vmul.f32 %v5088, %v4728
        %v5107 = vmul.f32 %v5091, %v4728
        %v5108 = vmul.f32 %v5094, %v4728
        %v5109 = vmul.f32 %v5097, %v4728
        %v5110 = vmul.f32 %v5100, %v4728
        %v5111 = vmul.f32 %v5103, %v4728
        %v5112 = vsub.f32 %v5072, %v5104
        %v5113 = vsub.f32 %v5073, %v5105
        %v5114 = vsub.f32 %v5074, %v5106
        %v5115 = vsub.f32 %v5075, %v5107
        %v5116 = vsub.f32 %v5076, %v5108
        %v5117 = vsub.f32 %v5077, %v5109
        %v5118 = vsub.f32 %v5078, %v5110
        %v5119 = vsub.f32 %v5079, %v5111
        %v5120 = vmul.f32 %v5112, %v5112
        %v5121 = vmul.f32 %v5113, %v5113
        %v5122 = vmul.f32 %v5114, %v5114
        %v5123 = vmul.f32 %v5115, %v5115
        %v5124 = vmul.f32 %v5116, %v5116
        %v5125 = vmul.f32 %v5117, %v5117
        %v5126 = vmul.f32 %v5118, %v5118
        %v5127 = vmul.f32 %v5119, %v5119
        %v5128 = vsel %vm870, %v5120, 0.0
        %5129 = vadd.xlane.f32.xlu0 %v5128
        %v5130 = vpop.xlane.xlu0 %5129
        %v5131 = vsel %vm870, %v5121, 0.0
        %5132 = vadd.xlane.f32.xlu0 %v5131
        %v5133 = vpop.xlane.xlu0 %5132
        %v5134 = vsel %vm870, %v5122, 0.0
        %5135 = vadd.xlane.f32.xlu0 %v5134
        %v5136 = vpop.xlane.xlu0 %5135
        %v5137 = vsel %vm870, %v5123, 0.0
        %5138 = vadd.xlane.f32.xlu0 %v5137
        %v5139 = vpop.xlane.xlu0 %5138
        %v5140 = vsel %vm870, %v5124, 0.0
        %5141 = vadd.xlane.f32.xlu0 %v5140
        %v5142 = vpop.xlane.xlu0 %5141
        %v5143 = vsel %vm870, %v5125, 0.0
        %5144 = vadd.xlane.f32.xlu0 %v5143
        %v5145 = vpop.xlane.xlu0 %5144
        %v5146 = vsel %vm870, %v5126, 0.0
        %5147 = vadd.xlane.f32.xlu0 %v5146
        %v5148 = vpop.xlane.xlu0 %5147
        %v5149 = vsel %vm870, %v5127, 0.0
        %5150 = vadd.xlane.f32.xlu0 %v5149
        %v5151 = vpop.xlane.xlu0 %5150
        %v5152 = vmul.f32 %v5130, %v4728
        %v5153 = vmul.f32 %v5133, %v4728
        %v5154 = vmul.f32 %v5136, %v4728
        %v5155 = vmul.f32 %v5139, %v4728
        %v5156 = vmul.f32 %v5142, %v4728
        %v5157 = vmul.f32 %v5145, %v4728
        %v5158 = vmul.f32 %v5148, %v4728
        %v5159 = vmul.f32 %v5151, %v4728
        %v5160 = vadd.f32 %v5152, 1e-05
        %v5161 = vadd.f32 %v5153, 1e-05
        %v5162 = vadd.f32 %v5154, 1e-05
        %v5163 = vadd.f32 %v5155, 1e-05
        %v5164 = vadd.f32 %v5156, 1e-05
        %v5165 = vadd.f32 %v5157, 1e-05
        %v5166 = vadd.f32 %v5158, 1e-05
        %v5167 = vadd.f32 %v5159, 1e-05
        %v5168 = vrsqrt.pop %v5160
        %v5169 = vrsqrt.pop %v5161
        %v5170 = vrsqrt.pop %v5162
        %v5171 = vrsqrt.pop %v5163
        %v5172 = vrsqrt.pop %v5164
        %v5173 = vrsqrt.pop %v5165
        %v5174 = vrsqrt.pop %v5166
        %v5175 = vrsqrt.pop %v5167
        %v5176 = vmul.f32 %v5112, %v5168
        %v5177 = vmul.f32 %v5113, %v5169
        %v5178 = vmul.f32 %v5114, %v5170
        %v5179 = vmul.f32 %v5115, %v5171
        %v5180 = vmul.f32 %v5116, %v5172
        %v5181 = vmul.f32 %v5117, %v5173
        %v5182 = vmul.f32 %v5118, %v5174
        %v5183 = vmul.f32 %v5119, %v5175
        %v5184 = vld [vmem:[%s685] sm:$0x1]
        %v5186 = vlaneseq
        %v5187 = vshrl.u32 %v5186, 7
        %v5188 = vsub.s32 0, %v5187
        %v5189 = vrot.slane %v5184, %v5188
        %v5191 = vmul.f32 %v5176, %v5189
        %v5192 = vmul.f32 %v5177, %v5189
        %v5193 = vmul.f32 %v5178, %v5189
        %v5194 = vmul.f32 %v5179, %v5189
        %v5195 = vmul.f32 %v5180, %v5189
        %v5196 = vmul.f32 %v5181, %v5189
        %v5197 = vmul.f32 %v5182, %v5189
        %v5198 = vmul.f32 %v5183, %v5189
        %v5199 = vld [vmem:[%s688] sm:$0x1]
        %v5201 = vlaneseq
        %v5202 = vshrl.u32 %v5201, 7
        %v5203 = vsub.s32 0, %v5202
        %v5204 = vrot.slane %v5199, %v5203
        %v5206 = vadd.f32 %v5191, %v5204
        %v5207 = vadd.f32 %v5192, %v5204
        %v5208 = vadd.f32 %v5193, %v5204
        %v5209 = vadd.f32 %v5194, %v5204
        %v5210 = vadd.f32 %v5195, %v5204
        %v5211 = vadd.f32 %v5196, %v5204
        %v5212 = vadd.f32 %v5197, %v5204
        %v5213 = vadd.f32 %v5198, %v5204
        %5214 = vst.msk [vmem:[#allocation2] sm:$0xff] %vm870, %v5206
        %5215 = vst.msk [vmem:[#allocation2 + $0x8] sm:$0xff] %vm870, %v5207
        %5216 = vst.msk [vmem:[#allocation2 + $0x10] sm:$0xff] %vm870, %v5208
        %5217 = vst.msk [vmem:[#allocation2 + $0x18] sm:$0xff] %vm870, %v5209
        %5218 = vst.msk [vmem:[#allocation2 + $0x20] sm:$0xff] %vm870, %v5210
        %5219 = vst.msk [vmem:[#allocation2 + $0x28] sm:$0xff] %vm870, %v5211
        %5220 = vst.msk [vmem:[#allocation2 + $0x30] sm:$0xff] %vm870, %v5212
        %5221 = vst.msk [vmem:[#allocation2 + $0x38] sm:$0xff] %vm870, %v5213
        %p5222 = scmp.eq.s32.totalorder %s33, 1
        // Predicated region
        $region81: #{encoder_forward.1} parent=75 // pred_check
          %p5223 = pneg %p5222
        $region82: #{encoder_forward.1} parent=75 // pred_check_branch
          %5225 = sbr.rel (%p5223) target = $region84
        $region83: #{encoder_forward.1} parent=75 // pred_region
          %v5234 = vrot.slane %v5207, 7
          %v5235 = vrot.slane %v5208, 6
          %vm5236 = vcmask 1041409
          %v5237 = vsel %vm5236, %v5235, %v5234
          %v5238 = vrot.slane %v5209, 5
          %vm5239 = vcmask 1042434
          %v5240 = vsel %vm5239, %v5238, %v5237
          %v5241 = vrot.slane %v5210, 4
          %vm5242 = vcmask 1043459
          %v5243 = vsel %vm5242, %v5241, %v5240
          %v5244 = vrot.slane %v5211, 3
          %vm5245 = vcmask 1044484
          %v5246 = vsel %vm5245, %v5244, %v5243
          %v5247 = vrot.slane %v5212, 2
          %vm5248 = vcmask 1045509
          %v5249 = vsel %vm5248, %v5247, %v5246
          %v5250 = vrot.slane %v5213, 1
          %vm5251 = vcmask 1046534
          %v5252 = vsel %vm5251, %v5250, %v5249
          %vm5255 = vcmask 261127
          %5256 = vst.msk [vmem:[%s634 - $0x7] sm:$0x80] %vm5255, %v5206
          %vm5257 = vcmask 260096
          %5258 = vst.msk [vmem:[%s634 + $0x1] sm:$0x7f] %vm5257, %v5252
        $region84: #{encoder_forward.1} parent=75 // pred_fallthru
          _
        %s5259 = sand.u32 %s412, 1
        %s5260 = scalar_lea.sflag [#allocation5], %s5259
        %s5261 = sand.u32 %s412, 1
        %s5262 = smul.addr %s5261, 8
        %s5263 = scalar_lea.vmem [#allocation4], %s5262
        // Predicated region
        $region85: #{encoder_forward.1} parent=75 // pred_check
          %p5264 = pneg %p422
        $region86: #{encoder_forward.1} parent=75 // pred_check_branch
          %5266 = sbr.rel (%p5264) target = $region88
        $region87: #{encoder_forward.1} parent=75 // pred_region
          %s5268 = ssub.s32 128, 128
          %5269 = vsyncadd %s5260, %s5268
          %s5270 = smul.addr %s32, 128
          %s5271 = scalar_lea.hbm %s14, %s5270
          %s5273 = sshll.u32 %s5263, 4
          %s5274 = int_to_ptr.vmem [resolvable:$true] %s5273
          %5276 = dma.vmem_to_hbm [thread:$0]  %s5274, 128, %s5271, %s5260
        $region88: #{encoder_forward.1} parent=75 // pred_fallthru
          _
      $region76: #{encoder_forward.1} parent=5 // pred_fallthru
        _
      %p5277 = scmp.le.s32.totalorder 2, %s23
      // Predicated region
      $region89: #{encoder_forward.1} parent=5 // pred_check
        %p5278 = pneg %p5277
      $region90: #{encoder_forward.1} parent=5 // pred_check_branch
        %5280 = sbr.rel (%p5278) target = $region92
      $region91: #{encoder_forward.1} parent=5 // pred_region
        %s5281 = ssub.s32 %s23, 2
        // Predicated region
        $region93: #{encoder_forward.1} parent=91 // pred_check
          %p5282 = pneg %p428
        $region94: #{encoder_forward.1} parent=91 // pred_check_branch
          %5284 = sbr.rel (%p5282) target = $region96
        $region95: #{encoder_forward.1} parent=91 // pred_region
          %s5285 = sand.u32 %s413, 1
          %s5286 = scalar_lea.sflag [#allocation5], %s5285
          %s5287 = sand.u32 %s413, 1
          %s5288 = smul.addr %s5287, 8
          %s5289 = scalar_lea.vmem [#allocation4], %s5288
          %5290 = dma.done %s5286, 128
        $region96: #{encoder_forward.1} parent=91 // pred_fallthru
          _
      $region92: #{encoder_forward.1} parent=5 // pred_fallthru
        _
    $region6: #{encoder_forward.1} parent=1 // loop_footer
      %s27 = sadd.s32 1, %s23
    $region7: #{encoder_forward.1} parent=1 // loop_footer_branch
      %22 = sbr.rel target = $region3
    $region8: #{encoder_forward.1} parent=1 // loop_exit
      _
    %5291 = vsyncpa [#allocation5], 1
    %s5292 = scalar_lea.sflag [#allocation5], 1
    %5293 = vsyncpa %s5292, 1

</llo_original>
